<compile_context>
chip_gen: v6e
topology: v6e:2x2x1
jax: 0.10.0
libtpu: 0.0.40
codegen_flags: <defaults>
</compile_context>

<pallas_src>
import jax
import jax.numpy as jnp
from jax import lax
from jax.experimental import pallas as pl
from jax.experimental.pallas import tpu as pltpu


# ---------------------------------------------------------------------------
# Fused kernel: conv1(im2col matmul)+ReLU -> conv2(9 taps from VMEM)+ReLU -> 1x1
# ---------------------------------------------------------------------------
def ds_layer_fused_kernel(x_ref, w1_ref, b1_ref, w2_ref, b2_ref, w3_ref, b3_ref,
                          o_ref, hp_ref):
    # x_ref : (1, H*W, 9*Cin)   im2col'd input patches for one batch element
    # w1_ref: (9*Cin, C)        conv1 weight, (ky,kx,cin) flattened into K
    # b1_ref: (1, C)
    # w2_ref: (3, 3, C, C)      conv2 weight (HWIO)
    # b2_ref: (1, C)
    # w3_ref: (1, C)            1x1 predlayer weight (row vector)
    # b3_ref: (1, 1)
    # o_ref : (1, 1, H*W)       lane-dense output row
    # hp_ref: (H+2, W+2, C)     VMEM scratch: zero-padded hidden activation
    H = hp_ref.shape[0] - 2
    W = hp_ref.shape[1] - 2
    C = hp_ref.shape[2]

    # ---- stage 1: conv1 as a single K=9*Cin MXU matmul, bias + ReLU ----------
    h = jnp.dot(x_ref[0], w1_ref[...], preferred_element_type=jnp.float32)
    h = jnp.maximum(h + b1_ref[...], 0.0)                      # (H*W, C) f32

    # Keep the hidden activation on-chip: write it into the zero-padded scratch.
    # (Zero the whole scratch each step so the pad ring is always zero; this is
    #  parallel-safe across grid steps / cores.)
    hp_ref[...] = jnp.zeros_like(hp_ref)
    hp_ref[1:H + 1, 1:W + 1, :] = h.reshape(H, W, C)

    # ---- stage 2: conv2 as 9 shifted-tap matmuls accumulated in f32 ----------
    acc = jnp.zeros((H * W, C), jnp.float32)
    for ky in range(3):
        for kx in range(3):
            patch = hp_ref[ky:ky + H, kx:kx + W, :].reshape(H * W, C)
            acc = acc + jnp.dot(patch, w2_ref[ky, kx],
                                preferred_element_type=jnp.float32)
    y2 = jnp.maximum(acc + b2_ref[...], 0.0)                   # (H*W, C) f32

    # ---- predlayer: 1x1 conv (Cout=1), produced directly as a lane-dense row -
    # (1, C) contracted against (H*W, C) on the channel axis -> (1, H*W).
    out_row = lax.dot_general(w3_ref[...], y2,
                              (((1,), (1,)), ((), ())),
                              preferred_element_type=jnp.float32)
    out_row = out_row + b3_ref[...]                            # (1, H*W)
    o_ref[...] = out_row.reshape(1, 1, H * W).astype(o_ref.dtype)


# ---------------------------------------------------------------------------
# Wrapper: NCHW in/out, im2col of the (tiny) input + weight reshapes as glue
# ---------------------------------------------------------------------------
def ds_layer_pallas(x_nchw, params):
    """Forward pass of DSLayer. x_nchw: (B, Cin, H, W) f32 -> (B, 1, H, W)."""
    w1, b1, w2, b2, w3, b3 = params        # w1/w2 HWIO, w3 (C, 1), biases (cout,)
    B, Cin, H, W = x_nchw.shape
    Chid = w1.shape[-1]                    # 64

    # Glue: NHWC layout + im2col of the Cin-channel input (K = 9*Cin).
    x = jnp.transpose(x_nchw, (0, 2, 3, 1))                      # NHWC
    xp = jnp.pad(x, ((0, 0), (1, 1), (1, 1), (0, 0)))            # pad=1
    taps = [xp[:, ky:ky + H, kx:kx + W, :]
            for ky in range(3) for kx in range(3)]
    patches = jnp.concatenate(taps, axis=-1).reshape(B, H * W, 9 * Cin)

    w1r = w1.reshape(9 * Cin, Chid)        # (ky,kx,cin) -> K, matches tap order
    w3r = w3.reshape(1, Chid)              # row vector for the 1x1 conv

    flops = 2 * B * H * W * (9 * Cin * Chid + 9 * Chid * Chid + Chid)
    bytes_accessed = 4 * (patches.size + w1r.size + w2.size + w3r.size
                          + b1.size + b2.size + b3.size + B * H * W)

    out_flat = pl.pallas_call(
        ds_layer_fused_kernel,
        out_shape=jax.ShapeDtypeStruct((B, 1, H * W), jnp.float32),
        grid_spec=pltpu.PrefetchScalarGridSpec(
            num_scalar_prefetch=0,
            grid=(B,),
            in_specs=[
                pl.BlockSpec((1, H * W, 9 * Cin), lambda b: (b, 0, 0)),
                pl.BlockSpec((9 * Cin, Chid), lambda b: (0, 0)),
                pl.BlockSpec((1, Chid), lambda b: (0, 0)),
                pl.BlockSpec((3, 3, Chid, Chid), lambda b: (0, 0, 0, 0)),
                pl.BlockSpec((1, Chid), lambda b: (0, 0)),
                pl.BlockSpec((1, Chid), lambda b: (0, 0)),
                pl.BlockSpec((1, 1), lambda b: (0, 0)),
            ],
            out_specs=pl.BlockSpec((1, 1, H * W), lambda b: (b, 0, 0)),
            scratch_shapes=[pltpu.VMEM((H + 2, W + 2, Chid), jnp.float32)],
        ),
        compiler_params=pltpu.CompilerParams(
            dimension_semantics=("parallel",),
            vmem_limit_bytes=32 * 1024 * 1024),
        cost_estimate=pl.CostEstimate(
            flops=flops, transcendentals=0, bytes_accessed=bytes_accessed),
    )(patches, w1r, b1.reshape(1, Chid), w2, b2.reshape(1, Chid),
      w3r, b3.reshape(1, 1))

    # Cout == 1, so this is a pure reshape (no transpose needed).
    return out_flat.reshape(B, 1, H, W)


# ---------------------------------------------------------------------------
# Pure-JAX reference (lax conv) for correctness checking
# ---------------------------------------------------------------------------
def ds_layer_ref(x_nchw, params):
    w1, b1, w2, b2, w3, b3 = params

    def conv3(x, w_hwio, b):
        w_oihw = jnp.transpose(w_hwio, (3, 2, 0, 1))
        y = lax.conv_general_dilated(
            x, w_oihw, (1, 1), [(1, 1), (1, 1)],
            dimension_numbers=("NCHW", "OIHW", "NCHW"),
            precision=lax.Precision.HIGHEST)
        return y + b.reshape(1, -1, 1, 1)

    h = jax.nn.relu(conv3(x_nchw, w1, b1))
    h = jax.nn.relu(conv3(h, w2, b2))
    # predlayer: 1x1 conv == channel contraction with w3 of shape (C, 1)
    out = jnp.einsum("bchw,co->bohw", h, w3,
                     precision=lax.Precision.HIGHEST)
    return out + b3.reshape(1, -1, 1, 1)


def make_params(key, cin, chid=64):
    ks = jax.random.split(key, 6)
    w1 = jax.random.normal(ks[0], (3, 3, cin, chid), jnp.float32) * 0.1
    b1 = jax.random.normal(ks[1], (chid,), jnp.float32) * 0.01
    w2 = jax.random.normal(ks[2], (3, 3, chid, chid), jnp.float32) * 0.05
    b2 = jax.random.normal(ks[3], (chid,), jnp.float32) * 0.01
    w3 = jax.random.normal(ks[4], (chid, 1), jnp.float32) * 0.1
    b3 = jax.random.normal(ks[5], (1,), jnp.float32) * 0.01
    return (w1, b1, w2, b2, w3, b3)


if __name__ == "__main__":
    key = jax.random.PRNGKey(0)
    k_x, k_p = jax.random.split(key)

    B, Cin, H, W = 2, 4, 16, 16            # small synthetic shapes (in_channel=4)
    x = jax.random.normal(k_x, (B, Cin, H, W), jnp.float32)
    params = make_params(k_p, Cin, chid=64)

    out = jax.jit(ds_layer_pallas)(x, params)
    out = jax.block_until_ready(out)

    ref = ds_layer_ref(x, params)
    assert out.shape == (B, 1, H, W), out.shape
    max_err = float(jnp.max(jnp.abs(out - ref)))
    assert jnp.allclose(out, ref, atol=1e-2, rtol=1e-2), max_err

    print("KERNEL_OK")
</pallas_src>

<mosaic_0001>
module attributes {stable_mosaic.version = 11 : i64} {
  func.func @ds_layer_fused_kernel(%arg0: i32, %arg1: memref<1x256x36xf32, #tpu.memory_space<vmem>>, %arg2: memref<36x64xf32, #tpu.memory_space<vmem>>, %arg3: memref<1x64xf32, #tpu.memory_space<vmem>>, %arg4: memref<3x3x64x64xf32, #tpu.memory_space<vmem>>, %arg5: memref<1x64xf32, #tpu.memory_space<vmem>>, %arg6: memref<1x64xf32, #tpu.memory_space<vmem>>, %arg7: memref<1x1xf32, #tpu.memory_space<vmem>>, %arg8: memref<1x1x256xf32, #tpu.memory_space<vmem>>, %arg9: memref<18x18x64xf32, #tpu.memory_space<vmem>>) attributes {dimension_semantics = [#tpu.dimension_semantics<parallel>], iteration_bounds = array<i64: 2>, scalar_prefetch = 0 : i64, scratch_operands = 1 : i64, tpu.core_type = #tpu.core_type<tc>, window_params = [{transform_indices = @transform_0, window_bounds = array<i64: 1, 256, 36>}, {pipeline_mode = #tpu.pipeline_mode<synchronous>, transform_indices = @transform_1, window_bounds = array<i64: 36, 64>}, {pipeline_mode = #tpu.pipeline_mode<synchronous>, transform_indices = @transform_2, window_bounds = array<i64: 1, 64>}, {pipeline_mode = #tpu.pipeline_mode<synchronous>, transform_indices = @transform_3, window_bounds = array<i64: 3, 3, 64, 64>}, {pipeline_mode = #tpu.pipeline_mode<synchronous>, transform_indices = @transform_4, window_bounds = array<i64: 1, 64>}, {pipeline_mode = #tpu.pipeline_mode<synchronous>, transform_indices = @transform_5, window_bounds = array<i64: 1, 64>}, {pipeline_mode = #tpu.pipeline_mode<synchronous>, transform_indices = @transform_6, window_bounds = array<i64: 1, 1>}, {transform_indices = @transform_7, window_bounds = array<i64: 1, 1, 256>}]} {
    %c0 = arith.constant 0 : index
    %c0_0 = arith.constant 0 : index
    %c0_1 = arith.constant 0 : index
    %0 = vector.load %arg1[%c0, %c0_0, %c0_1] : memref<1x256x36xf32, #tpu.memory_space<vmem>>, vector<1x256x36xf32>
    %1 = vector.shape_cast %0 : vector<1x256x36xf32> to vector<256x36xf32>
    %c0_2 = arith.constant 0 : index
    %c0_3 = arith.constant 0 : index
    %2 = vector.load %arg2[%c0_2, %c0_3] : memref<36x64xf32, #tpu.memory_space<vmem>>, vector<36x64xf32>
    %cst = arith.constant dense<0.000000e+00> : vector<256x64xf32>
    %3 = tpu.matmul %1, %2, %cst {dimension_numbers = #tpu.dot_dimension_numbers<[1], [0], [0], [1], [0, 0, 1, 1], [], []>} : vector<256x36xf32>, vector<36x64xf32>, vector<256x64xf32> -> vector<256x64xf32>
    %c0_4 = arith.constant 0 : index
    %c0_5 = arith.constant 0 : index
    %4 = vector.load %arg3[%c0_4, %c0_5] : memref<1x64xf32, #tpu.memory_space<vmem>>, vector<1x64xf32>
    %5 = vector.broadcast %4 : vector<1x64xf32> to vector<256x64xf32>
    %6 = arith.addf %3, %5 : vector<256x64xf32>
    %cst_6 = arith.constant 0.000000e+00 : f32
    %7 = vector.broadcast %cst_6 : f32 to vector<256x64xf32>
    %8 = arith.maximumf %6, %7 : vector<256x64xf32>
    %cst_7 = arith.constant 0.000000e+00 : f32
    %9 = vector.broadcast %cst_7 : f32 to vector<18x18x64xf32>
    %c0_8 = arith.constant 0 : index
    %c0_9 = arith.constant 0 : index
    %c0_10 = arith.constant 0 : index
    %10 = vector.load %arg9[%c0_8, %c0_9, %c0_10] : memref<18x18x64xf32, #tpu.memory_space<vmem>>, vector<18x18x64xf32>
    tpu.vector_store %arg9[%c0_8, %c0_9, %c0_10], %9 {strides = array<i32>} : memref<18x18x64xf32, #tpu.memory_space<vmem>>, vector<18x18x64xf32>,
    %11 = vector.shape_cast %8 : vector<256x64xf32> to vector<16x16x64xf32>
    %c1 = arith.constant 1 : index
    %c1_11 = arith.constant 1 : index
    %c0_12 = arith.constant 0 : index
    %12 = vector.load %arg9[%c1, %c1_11, %c0_12] : memref<18x18x64xf32, #tpu.memory_space<vmem>>, vector<16x16x64xf32>
    tpu.vector_store %arg9[%c1, %c1_11, %c0_12], %11 {strides = array<i32>} : memref<18x18x64xf32, #tpu.memory_space<vmem>>, vector<16x16x64xf32>,
    %cst_13 = arith.constant 0.000000e+00 : f32
    %13 = vector.broadcast %cst_13 : f32 to vector<256x64xf32>
    %c0_14 = arith.constant 0 : index
    %c0_15 = arith.constant 0 : index
    %c0_16 = arith.constant 0 : index
    %14 = vector.load %arg9[%c0_14, %c0_15, %c0_16] : memref<18x18x64xf32, #tpu.memory_space<vmem>>, vector<16x16x64xf32>
    %15 = vector.shape_cast %14 : vector<16x16x64xf32> to vector<256x64xf32>
    %c0_17 = arith.constant 0 : index
    %c0_18 = arith.constant 0 : index
    %c0_19 = arith.constant 0 : index
    %c0_20 = arith.constant 0 : index
    %16 = vector.load %arg4[%c0_17, %c0_18, %c0_19, %c0_20] : memref<3x3x64x64xf32, #tpu.memory_space<vmem>>, vector<1x1x64x64xf32>
    %17 = vector.shape_cast %16 : vector<1x1x64x64xf32> to vector<64x64xf32>
    %cst_21 = arith.constant dense<0.000000e+00> : vector<256x64xf32>
    %18 = tpu.matmul %15, %17, %cst_21 {dimension_numbers = #tpu.dot_dimension_numbers<[1], [0], [0], [1], [0, 0, 1, 1], [], []>} : vector<256x64xf32>, vector<64x64xf32>, vector<256x64xf32> -> vector<256x64xf32>
    %19 = arith.addf %13, %18 : vector<256x64xf32>
    %c0_22 = arith.constant 0 : index
    %c1_23 = arith.constant 1 : index
    %c0_24 = arith.constant 0 : index
    %20 = vector.load %arg9[%c0_22, %c1_23, %c0_24] : memref<18x18x64xf32, #tpu.memory_space<vmem>>, vector<16x16x64xf32>
    %21 = vector.shape_cast %20 : vector<16x16x64xf32> to vector<256x64xf32>
    %c0_25 = arith.constant 0 : index
    %c1_26 = arith.constant 1 : index
    %c0_27 = arith.constant 0 : index
    %c0_28 = arith.constant 0 : index
    %22 = vector.load %arg4[%c0_25, %c1_26, %c0_27, %c0_28] : memref<3x3x64x64xf32, #tpu.memory_space<vmem>>, vector<1x1x64x64xf32>
    %23 = vector.shape_cast %22 : vector<1x1x64x64xf32> to vector<64x64xf32>
    %cst_29 = arith.constant dense<0.000000e+00> : vector<256x64xf32>
    %24 = tpu.matmul %21, %23, %cst_29 {dimension_numbers = #tpu.dot_dimension_numbers<[1], [0], [0], [1], [0, 0, 1, 1], [], []>} : vector<256x64xf32>, vector<64x64xf32>, vector<256x64xf32> -> vector<256x64xf32>
    %25 = arith.addf %19, %24 : vector<256x64xf32>
    %c0_30 = arith.constant 0 : index
    %c2 = arith.constant 2 : index
    %c0_31 = arith.constant 0 : index
    %26 = vector.load %arg9[%c0_30, %c2, %c0_31] : memref<18x18x64xf32, #tpu.memory_space<vmem>>, vector<16x16x64xf32>
    %27 = vector.shape_cast %26 : vector<16x16x64xf32> to vector<256x64xf32>
    %c0_32 = arith.constant 0 : index
    %c2_33 = arith.constant 2 : index
    %c0_34 = arith.constant 0 : index
    %c0_35 = arith.constant 0 : index
    %28 = vector.load %arg4[%c0_32, %c2_33, %c0_34, %c0_35] : memref<3x3x64x64xf32, #tpu.memory_space<vmem>>, vector<1x1x64x64xf32>
    %29 = vector.shape_cast %28 : vector<1x1x64x64xf32> to vector<64x64xf32>
    %cst_36 = arith.constant dense<0.000000e+00> : vector<256x64xf32>
    %30 = tpu.matmul %27, %29, %cst_36 {dimension_numbers = #tpu.dot_dimension_numbers<[1], [0], [0], [1], [0, 0, 1, 1], [], []>} : vector<256x64xf32>, vector<64x64xf32>, vector<256x64xf32> -> vector<256x64xf32>
    %31 = arith.addf %25, %30 : vector<256x64xf32>
    %c1_37 = arith.constant 1 : index
    %c0_38 = arith.constant 0 : index
    %c0_39 = arith.constant 0 : index
    %32 = vector.load %arg9[%c1_37, %c0_38, %c0_39] : memref<18x18x64xf32, #tpu.memory_space<vmem>>, vector<16x16x64xf32>
    %33 = vector.shape_cast %32 : vector<16x16x64xf32> to vector<256x64xf32>
    %c1_40 = arith.constant 1 : index
    %c0_41 = arith.constant 0 : index
    %c0_42 = arith.constant 0 : index
    %c0_43 = arith.constant 0 : index
    %34 = vector.load %arg4[%c1_40, %c0_41, %c0_42, %c0_43] : memref<3x3x64x64xf32, #tpu.memory_space<vmem>>, vector<1x1x64x64xf32>
    %35 = vector.shape_cast %34 : vector<1x1x64x64xf32> to vector<64x64xf32>
    %cst_44 = arith.constant dense<0.000000e+00> : vector<256x64xf32>
    %36 = tpu.matmul %33, %35, %cst_44 {dimension_numbers = #tpu.dot_dimension_numbers<[1], [0], [0], [1], [0, 0, 1, 1], [], []>} : vector<256x64xf32>, vector<64x64xf32>, vector<256x64xf32> -> vector<256x64xf32>
    %37 = arith.addf %31, %36 : vector<256x64xf32>
    %c1_45 = arith.constant 1 : index
    %c1_46 = arith.constant 1 : index
    %c0_47 = arith.constant 0 : index
    %38 = vector.load %arg9[%c1_45, %c1_46, %c0_47] : memref<18x18x64xf32, #tpu.memory_space<vmem>>, vector<16x16x64xf32>
    %39 = vector.shape_cast %38 : vector<16x16x64xf32> to vector<256x64xf32>
    %c1_48 = arith.constant 1 : index
    %c1_49 = arith.constant 1 : index
    %c0_50 = arith.constant 0 : index
    %c0_51 = arith.constant 0 : index
    %40 = vector.load %arg4[%c1_48, %c1_49, %c0_50, %c0_51] : memref<3x3x64x64xf32, #tpu.memory_space<vmem>>, vector<1x1x64x64xf32>
    %41 = vector.shape_cast %40 : vector<1x1x64x64xf32> to vector<64x64xf32>
    %cst_52 = arith.constant dense<0.000000e+00> : vector<256x64xf32>
    %42 = tpu.matmul %39, %41, %cst_52 {dimension_numbers = #tpu.dot_dimension_numbers<[1], [0], [0], [1], [0, 0, 1, 1], [], []>} : vector<256x64xf32>, vector<64x64xf32>, vector<256x64xf32> -> vector<256x64xf32>
    %43 = arith.addf %37, %42 : vector<256x64xf32>
    %c1_53 = arith.constant 1 : index
    %c2_54 = arith.constant 2 : index
    %c0_55 = arith.constant 0 : index
    %44 = vector.load %arg9[%c1_53, %c2_54, %c0_55] : memref<18x18x64xf32, #tpu.memory_space<vmem>>, vector<16x16x64xf32>
    %45 = vector.shape_cast %44 : vector<16x16x64xf32> to vector<256x64xf32>
    %c1_56 = arith.constant 1 : index
    %c2_57 = arith.constant 2 : index
    %c0_58 = arith.constant 0 : index
    %c0_59 = arith.constant 0 : index
    %46 = vector.load %arg4[%c1_56, %c2_57, %c0_58, %c0_59] : memref<3x3x64x64xf32, #tpu.memory_space<vmem>>, vector<1x1x64x64xf32>
    %47 = vector.shape_cast %46 : vector<1x1x64x64xf32> to vector<64x64xf32>
    %cst_60 = arith.constant dense<0.000000e+00> : vector<256x64xf32>
    %48 = tpu.matmul %45, %47, %cst_60 {dimension_numbers = #tpu.dot_dimension_numbers<[1], [0], [0], [1], [0, 0, 1, 1], [], []>} : vector<256x64xf32>, vector<64x64xf32>, vector<256x64xf32> -> vector<256x64xf32>
    %49 = arith.addf %43, %48 : vector<256x64xf32>
    %c2_61 = arith.constant 2 : index
    %c0_62 = arith.constant 0 : index
    %c0_63 = arith.constant 0 : index
    %50 = vector.load %arg9[%c2_61, %c0_62, %c0_63] : memref<18x18x64xf32, #tpu.memory_space<vmem>>, vector<16x16x64xf32>
    %51 = vector.shape_cast %50 : vector<16x16x64xf32> to vector<256x64xf32>
    %c2_64 = arith.constant 2 : index
    %c0_65 = arith.constant 0 : index
    %c0_66 = arith.constant 0 : index
    %c0_67 = arith.constant 0 : index
    %52 = vector.load %arg4[%c2_64, %c0_65, %c0_66, %c0_67] : memref<3x3x64x64xf32, #tpu.memory_space<vmem>>, vector<1x1x64x64xf32>
    %53 = vector.shape_cast %52 : vector<1x1x64x64xf32> to vector<64x64xf32>
    %cst_68 = arith.constant dense<0.000000e+00> : vector<256x64xf32>
    %54 = tpu.matmul %51, %53, %cst_68 {dimension_numbers = #tpu.dot_dimension_numbers<[1], [0], [0], [1], [0, 0, 1, 1], [], []>} : vector<256x64xf32>, vector<64x64xf32>, vector<256x64xf32> -> vector<256x64xf32>
    %55 = arith.addf %49, %54 : vector<256x64xf32>
    %c2_69 = arith.constant 2 : index
    %c1_70 = arith.constant 1 : index
    %c0_71 = arith.constant 0 : index
    %56 = vector.load %arg9[%c2_69, %c1_70, %c0_71] : memref<18x18x64xf32, #tpu.memory_space<vmem>>, vector<16x16x64xf32>
    %57 = vector.shape_cast %56 : vector<16x16x64xf32> to vector<256x64xf32>
    %c2_72 = arith.constant 2 : index
    %c1_73 = arith.constant 1 : index
    %c0_74 = arith.constant 0 : index
    %c0_75 = arith.constant 0 : index
    %58 = vector.load %arg4[%c2_72, %c1_73, %c0_74, %c0_75] : memref<3x3x64x64xf32, #tpu.memory_space<vmem>>, vector<1x1x64x64xf32>
    %59 = vector.shape_cast %58 : vector<1x1x64x64xf32> to vector<64x64xf32>
    %cst_76 = arith.constant dense<0.000000e+00> : vector<256x64xf32>
    %60 = tpu.matmul %57, %59, %cst_76 {dimension_numbers = #tpu.dot_dimension_numbers<[1], [0], [0], [1], [0, 0, 1, 1], [], []>} : vector<256x64xf32>, vector<64x64xf32>, vector<256x64xf32> -> vector<256x64xf32>
    %61 = arith.addf %55, %60 : vector<256x64xf32>
    %c2_77 = arith.constant 2 : index
    %c2_78 = arith.constant 2 : index
    %c0_79 = arith.constant 0 : index
    %62 = vector.load %arg9[%c2_77, %c2_78, %c0_79] : memref<18x18x64xf32, #tpu.memory_space<vmem>>, vector<16x16x64xf32>
    %63 = vector.shape_cast %62 : vector<16x16x64xf32> to vector<256x64xf32>
    %c2_80 = arith.constant 2 : index
    %c2_81 = arith.constant 2 : index
    %c0_82 = arith.constant 0 : index
    %c0_83 = arith.constant 0 : index
    %64 = vector.load %arg4[%c2_80, %c2_81, %c0_82, %c0_83] : memref<3x3x64x64xf32, #tpu.memory_space<vmem>>, vector<1x1x64x64xf32>
    %65 = vector.shape_cast %64 : vector<1x1x64x64xf32> to vector<64x64xf32>
    %cst_84 = arith.constant dense<0.000000e+00> : vector<256x64xf32>
    %66 = tpu.matmul %63, %65, %cst_84 {dimension_numbers = #tpu.dot_dimension_numbers<[1], [0], [0], [1], [0, 0, 1, 1], [], []>} : vector<256x64xf32>, vector<64x64xf32>, vector<256x64xf32> -> vector<256x64xf32>
    %67 = arith.addf %61, %66 : vector<256x64xf32>
    %c0_85 = arith.constant 0 : index
    %c0_86 = arith.constant 0 : index
    %68 = vector.load %arg5[%c0_85, %c0_86] : memref<1x64xf32, #tpu.memory_space<vmem>>, vector<1x64xf32>
    %69 = vector.broadcast %68 : vector<1x64xf32> to vector<256x64xf32>
    %70 = arith.addf %67, %69 : vector<256x64xf32>
    %cst_87 = arith.constant 0.000000e+00 : f32
    %71 = vector.broadcast %cst_87 : f32 to vector<256x64xf32>
    %72 = arith.maximumf %70, %71 : vector<256x64xf32>
    %c0_88 = arith.constant 0 : index
    %c0_89 = arith.constant 0 : index
    %73 = vector.load %arg6[%c0_88, %c0_89] : memref<1x64xf32, #tpu.memory_space<vmem>>, vector<1x64xf32>
    %cst_90 = arith.constant dense<0.000000e+00> : vector<1x256xf32>
    %74 = tpu.matmul %73, %72, %cst_90 {dimension_numbers = #tpu.dot_dimension_numbers<[1], [1], [0], [0], [0, 0, 1, 0], [], []>} : vector<1x64xf32>, vector<256x64xf32>, vector<1x256xf32> -> vector<1x256xf32>
    %c0_91 = arith.constant 0 : index
    %c0_92 = arith.constant 0 : index
    %75 = vector.load %arg7[%c0_91, %c0_92] : memref<1x1xf32, #tpu.memory_space<vmem>>, vector<1x1xf32>
    %76 = vector.broadcast %75 : vector<1x1xf32> to vector<1x256xf32>
    %77 = arith.addf %74, %76 : vector<1x256xf32>
    %78 = vector.shape_cast %77 : vector<1x256xf32> to vector<1x1x256xf32>
    %c0_93 = arith.constant 0 : index
    %c0_94 = arith.constant 0 : index
    %c0_95 = arith.constant 0 : index
    %79 = vector.load %arg8[%c0_93, %c0_94, %c0_95] : memref<1x1x256xf32, #tpu.memory_space<vmem>>, vector<1x1x256xf32>
    tpu.vector_store %arg8[%c0_93, %c0_94, %c0_95], %78 {strides = array<i32>} : memref<1x1x256xf32, #tpu.memory_space<vmem>>, vector<1x1x256xf32>,
    return
  }
  func.func @transform_0(%arg0: i32) -> (i32, i32, i32) {
    %c0_i32 = arith.constant 0 : i32
    %c0_i32_0 = arith.constant 0 : i32
    %c0_i32_1 = arith.constant 0 : i32
    return %arg0, %c0_i32, %c0_i32_0 : i32, i32, i32
  }
  func.func @transform_1(%arg0: i32) -> (i32, i32) {
    %c0_i32 = arith.constant 0 : i32
    %c0_i32_0 = arith.constant 0 : i32
    %c0_i32_1 = arith.constant 0 : i32
    return %c0_i32, %c0_i32_0 : i32, i32
  }
  func.func @transform_2(%arg0: i32) -> (i32, i32) {
    %c0_i32 = arith.constant 0 : i32
    %c0_i32_0 = arith.constant 0 : i32
    %c0_i32_1 = arith.constant 0 : i32
    return %c0_i32, %c0_i32_0 : i32, i32
  }
  func.func @transform_3(%arg0: i32) -> (i32, i32, i32, i32) {
    %c0_i32 = arith.constant 0 : i32
    %c0_i32_0 = arith.constant 0 : i32
    %c0_i32_1 = arith.constant 0 : i32
    %c0_i32_2 = arith.constant 0 : i32
    %c0_i32_3 = arith.constant 0 : i32
    return %c0_i32, %c0_i32_0, %c0_i32_1, %c0_i32_2 : i32, i32, i32, i32
  }
  func.func @transform_4(%arg0: i32) -> (i32, i32) {
    %c0_i32 = arith.constant 0 : i32
    %c0_i32_0 = arith.constant 0 : i32
    %c0_i32_1 = arith.constant 0 : i32
    return %c0_i32, %c0_i32_0 : i32, i32
  }
  func.func @transform_5(%arg0: i32) -> (i32, i32) {
    %c0_i32 = arith.constant 0 : i32
    %c0_i32_0 = arith.constant 0 : i32
    %c0_i32_1 = arith.constant 0 : i32
    return %c0_i32, %c0_i32_0 : i32, i32
  }
  func.func @transform_6(%arg0: i32) -> (i32, i32) {
    %c0_i32 = arith.constant 0 : i32
    %c0_i32_0 = arith.constant 0 : i32
    %c0_i32_1 = arith.constant 0 : i32
    return %c0_i32, %c0_i32_0 : i32, i32
  }
  func.func @transform_7(%arg0: i32) -> (i32, i32, i32) {
    %c0_i32 = arith.constant 0 : i32
    %c0_i32_0 = arith.constant 0 : i32
    %c0_i32_1 = arith.constant 0 : i32
    return %arg0, %c0_i32, %c0_i32_0 : i32, i32, i32
  }
}

</mosaic_0001>

<llo_original>
// kernel: ds_layer_pallas.1
$region0: #{ds_layer_pallas.1}
  #allocation0 [shape = 'u32[]', space=smem, size = 0x4, offset = 0x4, fixed_abs, tag = 'smem constant byte address 0x4 - core index']
  #allocation1 [shape = 'u32[144,128]{1,0:T(1,128)}', space=vmem, size = 0x12000, scoped, tag = 'internal scratch']
  #allocation2 [shape = 'f32[18,18,64]{2,1,0:T(8,128)}', space=vmem, size = 0x36000, scoped, tag = 'scratch operand']
  #allocation3 [shape = 'f32[1,1]{1,0:T(1,128)S(1)}', space=vmem, size = 0x200, scoped, tag = 'scoped memory for ds_layer_pallas.1']
  %s0 = inlined_call_operand.vmem [shape: f32[2,256,36], index: 0, kind: input, shape index: {}]
  %s1 = inlined_call_operand.vmem [shape: f32[36,64], index: 1, kind: input, shape index: {}]
  %s2 = inlined_call_operand.vmem [shape: f32[1,64], index: 2, kind: input, shape index: {}]
  %s3 = inlined_call_operand.vmem [shape: f32[3,3,64,64], index: 3, kind: input, shape index: {}]
  %s4 = inlined_call_operand.vmem [shape: f32[1,64], index: 4, kind: input, shape index: {}]
  %s5 = inlined_call_operand.vmem [shape: f32[1,64], index: 5, kind: input, shape index: {}]
  %s6 = inlined_call_operand.<no memory space> [shape: f32[1,1], index: 6, kind: input, shape index: {}]
  %s7 = inlined_call_operand.vmem [shape: f32[2,1,256], index: 7, kind: output, shape index: {}]
  %s8 = sld [smem:[#allocation0]]
  $region61: #{ds_layer_pallas.1} parent=0
    _
  %s10 = ssub.s32 1, %s8
  %s11 = scalar_select 0, %s10, %s8
  %v12 = vstv %s6
  %13 = vst [vmem:[#allocation3] sm:$0x1] %v12
  loop: start=0, step=1, limit=4
  $region2: #{ds_layer_pallas.1} parent=0 // loop_pre_header
    _
  $region3: #{ds_layer_pallas.1} parent=0 // loop_header
    %s15 = sphi 0, %s19
    %p16 = scmp.ge.s32.totalorder %s15, 4
    %s25 = sphi 0, %s27
    %s28 = sphi 0, %s25
    %s29 = sphi 0, %s28
    %s45 = sphi 0, %s29
    %s49 = sphi 0, %s49
    %s51 = sphi 0, %s49
    %s52 = sphi 0, %s51
    %s66 = sphi 0, %s52
    %s70 = sphi 0, %s70
    %s72 = sphi 0, %s70
    %s73 = sphi 0, %s72
    %s87 = sphi 0, %s73
    %s91 = sphi 0, %s91
    %s93 = sphi 0, %s91
    %s94 = sphi 0, %s93
    %s108 = sphi 0, %s94
    %s112 = sphi 0, %s112
    %s114 = sphi 0, %s112
    %s115 = sphi 0, %s114
    %s129 = sphi 0, %s115
    %s133 = sphi 0, %s133
    %s135 = sphi 0, %s133
    %s136 = sphi 0, %s135
    %s150 = sphi 0, %s136
    %s154 = sphi 0, %s154
    %s156 = sphi 0, %s154
    %s157 = sphi 0, %s156
    %s171 = sphi 0, %s157
    %s177 = sphi 0, %s179
    %s180 = sphi 0, %s177
    %s181 = sphi 0, %s180
    %s197 = sphi 0, %s181
  $region4: #{ds_layer_pallas.1} parent=0 // loop_header_branch
    %18 = sbr.rel (%p16) target = $region8
  $region5: #{ds_layer_pallas.1} parent=0 // loop_body
    %s20 = ssub.s32 %s15, 1
    %s21 = ssub.s32 %s15, 2
    %s22 = sadd.s32 %s15, 1
    %s23 = ssub.s32 %s15, %s22
    %p24 = scmp.eq.s32.totalorder %s23, 0
    %s26 = sadd.s32 %s25, 1
    %s27 = scalar_select %p24, %s25, %s26
    %p30 = pneg %p24
    %p31 = scmp.eq.s32.totalorder %s15, 1
    %p32 = por %p30, %p31
    %p33 = scmp.ne.s32.totalorder %s25, %s28
    %p34 = scmp.eq.s32.totalorder %s15, 0
    %p35 = por %p33, %p34
    %p36 = scmp.ne.s32.totalorder %s25, %s28
    %p37 = scmp.eq.s32.totalorder %s20, 1
    %p38 = por %p36, %p37
    %p39 = scmp.ne.s32.totalorder %s28, %s29
    %p40 = scmp.eq.s32.totalorder %s20, 0
    %p41 = por %p39, %p40
    %p42 = scmp.ne.s32.totalorder %s28, %s29
    %p43 = scmp.eq.s32.totalorder %s21, 1
    %p44 = por %p42, %p43
    %p46 = scmp.ne.s32.totalorder %s29, %s45
    %p47 = scmp.eq.s32.totalorder %s21, 0
    %p48 = por %p46, %p47
    %s50 = sadd.s32 %s49, 1
    %p53 = scmp.eq.s32.totalorder %s15, 1
    %p54 = scmp.ne.s32.totalorder %s49, %s51
    %p55 = scmp.eq.s32.totalorder %s15, 0
    %p56 = por %p54, %p55
    %p57 = scmp.ne.s32.totalorder %s49, %s51
    %p58 = scmp.eq.s32.totalorder %s20, 1
    %p59 = por %p57, %p58
    %p60 = scmp.ne.s32.totalorder %s51, %s52
    %p61 = scmp.eq.s32.totalorder %s20, 0
    %p62 = por %p60, %p61
    %p63 = scmp.ne.s32.totalorder %s51, %s52
    %p64 = scmp.eq.s32.totalorder %s21, 1
    %p65 = por %p63, %p64
    %p67 = scmp.ne.s32.totalorder %s52, %s66
    %p68 = scmp.eq.s32.totalorder %s21, 0
    %p69 = por %p67, %p68
    %s71 = sadd.s32 %s70, 1
    %p74 = scmp.eq.s32.totalorder %s15, 1
    %p75 = scmp.ne.s32.totalorder %s70, %s72
    %p76 = scmp.eq.s32.totalorder %s15, 0
    %p77 = por %p75, %p76
    %p78 = scmp.ne.s32.totalorder %s70, %s72
    %p79 = scmp.eq.s32.totalorder %s20, 1
    %p80 = por %p78, %p79
    %p81 = scmp.ne.s32.totalorder %s72, %s73
    %p82 = scmp.eq.s32.totalorder %s20, 0
    %p83 = por %p81, %p82
    %p84 = scmp.ne.s32.totalorder %s72, %s73
    %p85 = scmp.eq.s32.totalorder %s21, 1
    %p86 = por %p84, %p85
    %p88 = scmp.ne.s32.totalorder %s73, %s87
    %p89 = scmp.eq.s32.totalorder %s21, 0
    %p90 = por %p88, %p89
    %s92 = sadd.s32 %s91, 1
    %p95 = scmp.eq.s32.totalorder %s15, 1
    %p96 = scmp.ne.s32.totalorder %s91, %s93
    %p97 = scmp.eq.s32.totalorder %s15, 0
    %p98 = por %p96, %p97
    %p99 = scmp.ne.s32.totalorder %s91, %s93
    %p100 = scmp.eq.s32.totalorder %s20, 1
    %p101 = por %p99, %p100
    %p102 = scmp.ne.s32.totalorder %s93, %s94
    %p103 = scmp.eq.s32.totalorder %s20, 0
    %p104 = por %p102, %p103
    %p105 = scmp.ne.s32.totalorder %s93, %s94
    %p106 = scmp.eq.s32.totalorder %s21, 1
    %p107 = por %p105, %p106
    %p109 = scmp.ne.s32.totalorder %s94, %s108
    %p110 = scmp.eq.s32.totalorder %s21, 0
    %p111 = por %p109, %p110
    %s113 = sadd.s32 %s112, 1
    %p116 = scmp.eq.s32.totalorder %s15, 1
    %p117 = scmp.ne.s32.totalorder %s112, %s114
    %p118 = scmp.eq.s32.totalorder %s15, 0
    %p119 = por %p117, %p118
    %p120 = scmp.ne.s32.totalorder %s112, %s114
    %p121 = scmp.eq.s32.totalorder %s20, 1
    %p122 = por %p120, %p121
    %p123 = scmp.ne.s32.totalorder %s114, %s115
    %p124 = scmp.eq.s32.totalorder %s20, 0
    %p125 = por %p123, %p124
    %p126 = scmp.ne.s32.totalorder %s114, %s115
    %p127 = scmp.eq.s32.totalorder %s21, 1
    %p128 = por %p126, %p127
    %p130 = scmp.ne.s32.totalorder %s115, %s129
    %p131 = scmp.eq.s32.totalorder %s21, 0
    %p132 = por %p130, %p131
    %s134 = sadd.s32 %s133, 1
    %p137 = scmp.eq.s32.totalorder %s15, 1
    %p138 = scmp.ne.s32.totalorder %s133, %s135
    %p139 = scmp.eq.s32.totalorder %s15, 0
    %p140 = por %p138, %p139
    %p141 = scmp.ne.s32.totalorder %s133, %s135
    %p142 = scmp.eq.s32.totalorder %s20, 1
    %p143 = por %p141, %p142
    %p144 = scmp.ne.s32.totalorder %s135, %s136
    %p145 = scmp.eq.s32.totalorder %s20, 0
    %p146 = por %p144, %p145
    %p147 = scmp.ne.s32.totalorder %s135, %s136
    %p148 = scmp.eq.s32.totalorder %s21, 1
    %p149 = por %p147, %p148
    %p151 = scmp.ne.s32.totalorder %s136, %s150
    %p152 = scmp.eq.s32.totalorder %s21, 0
    %p153 = por %p151, %p152
    %s155 = sadd.s32 %s154, 1
    %p158 = scmp.eq.s32.totalorder %s15, 1
    %p159 = scmp.ne.s32.totalorder %s154, %s156
    %p160 = scmp.eq.s32.totalorder %s15, 0
    %p161 = por %p159, %p160
    %p162 = scmp.ne.s32.totalorder %s154, %s156
    %p163 = scmp.eq.s32.totalorder %s20, 1
    %p164 = por %p162, %p163
    %p165 = scmp.ne.s32.totalorder %s156, %s157
    %p166 = scmp.eq.s32.totalorder %s20, 0
    %p167 = por %p165, %p166
    %p168 = scmp.ne.s32.totalorder %s156, %s157
    %p169 = scmp.eq.s32.totalorder %s21, 1
    %p170 = por %p168, %p169
    %p172 = scmp.ne.s32.totalorder %s157, %s171
    %p173 = scmp.eq.s32.totalorder %s21, 0
    %p174 = por %p172, %p173
    %s175 = ssub.s32 %s15, %s22
    %p176 = scmp.eq.s32.totalorder %s175, 0
    %s178 = sadd.s32 %s177, 1
    %s179 = scalar_select %p176, %s177, %s178
    %p182 = pneg %p176
    %p183 = scmp.eq.s32.totalorder %s15, 1
    %p184 = por %p182, %p183
    %p185 = scmp.ne.s32.totalorder %s177, %s180
    %p186 = scmp.eq.s32.totalorder %s15, 0
    %p187 = por %p185, %p186
    %p188 = scmp.ne.s32.totalorder %s177, %s180
    %p189 = scmp.eq.s32.totalorder %s20, 1
    %p190 = por %p188, %p189
    %p191 = scmp.ne.s32.totalorder %s180, %s181
    %p192 = scmp.eq.s32.totalorder %s20, 0
    %p193 = por %p191, %p192
    %p194 = scmp.ne.s32.totalorder %s180, %s181
    %p195 = scmp.eq.s32.totalorder %s21, 1
    %p196 = por %p194, %p195
    %p198 = scmp.ne.s32.totalorder %s181, %s197
    %p199 = scmp.eq.s32.totalorder %s21, 0
    %p200 = por %p198, %p199
    %p201 = scmp.le.s32.totalorder 1, %s15
    %p202 = scmp.lt.s32.totalorder %s15, 3
    %p203 = pnand %p201, %p202
    %p204 = pneg %p203
    // Predicated region
    $region9: #{ds_layer_pallas.1} parent=5 // pred_check
      _
    $region10: #{ds_layer_pallas.1} parent=5 // pred_check_branch
      %206 = sbr.rel (%p203) target = $region12
    $region11: #{ds_layer_pallas.1} parent=5 // pred_region
      %s207 = ssub.s32 %s15, 1
      // Predicated region
      $region13: #{ds_layer_pallas.1} parent=11 // pred_check
        %p208 = pneg %p62
      $region14: #{ds_layer_pallas.1} parent=11 // pred_check_branch
        %210 = sbr.rel (%p208) target = $region16
      $region15: #{ds_layer_pallas.1} parent=11 // pred_region
        _
      $region16: #{ds_layer_pallas.1} parent=11 // pred_fallthru
        _
      // Predicated region
      $region17: #{ds_layer_pallas.1} parent=11 // pred_check
        %p211 = pneg %p83
      $region18: #{ds_layer_pallas.1} parent=11 // pred_check_branch
        %213 = sbr.rel (%p211) target = $region20
      $region19: #{ds_layer_pallas.1} parent=11 // pred_region
        _
      $region20: #{ds_layer_pallas.1} parent=11 // pred_fallthru
        _
      // Predicated region
      $region21: #{ds_layer_pallas.1} parent=11 // pred_check
        %p214 = pneg %p104
      $region22: #{ds_layer_pallas.1} parent=11 // pred_check_branch
        %216 = sbr.rel (%p214) target = $region24
      $region23: #{ds_layer_pallas.1} parent=11 // pred_region
        _
      $region24: #{ds_layer_pallas.1} parent=11 // pred_fallthru
        _
      // Predicated region
      $region25: #{ds_layer_pallas.1} parent=11 // pred_check
        %p217 = pneg %p125
      $region26: #{ds_layer_pallas.1} parent=11 // pred_check_branch
        %219 = sbr.rel (%p217) target = $region28
      $region27: #{ds_layer_pallas.1} parent=11 // pred_region
        _
      $region28: #{ds_layer_pallas.1} parent=11 // pred_fallthru
        _
      // Predicated region
      $region29: #{ds_layer_pallas.1} parent=11 // pred_check
        %p220 = pneg %p146
      $region30: #{ds_layer_pallas.1} parent=11 // pred_check_branch
        %222 = sbr.rel (%p220) target = $region32
      $region31: #{ds_layer_pallas.1} parent=11 // pred_region
        _
      $region32: #{ds_layer_pallas.1} parent=11 // pred_fallthru
        _
      // Predicated region
      $region33: #{ds_layer_pallas.1} parent=11 // pred_check
        %p223 = pneg %p167
      $region34: #{ds_layer_pallas.1} parent=11 // pred_check_branch
        %225 = sbr.rel (%p223) target = $region36
      $region35: #{ds_layer_pallas.1} parent=11 // pred_region
        _
      $region36: #{ds_layer_pallas.1} parent=11 // pred_fallthru
        _
    $region12: #{ds_layer_pallas.1} parent=5 // pred_fallthru
      _
    %p226 = scmp.lt.s32.totalorder %s15, 2
    // Predicated region
    $region37: #{ds_layer_pallas.1} parent=5 // pred_check
      %p227 = pneg %p226
    $region38: #{ds_layer_pallas.1} parent=5 // pred_check_branch
      %229 = sbr.rel (%p227) target = $region40
    $region39: #{ds_layer_pallas.1} parent=5 // pred_region
      // Predicated region
      $region41: #{ds_layer_pallas.1} parent=39 // pred_check
        %p230 = pneg %p35
      $region42: #{ds_layer_pallas.1} parent=39 // pred_check_branch
        %232 = sbr.rel (%p230) target = $region44
      $region43: #{ds_layer_pallas.1} parent=39 // pred_region
        %p233 = scmp.lt.s32.totalorder %s15, 1
        %s234 = scalar_select %p233, %s15, 1
        %s235 = smul.addr %s234, 32
        %s236 = smul.addr %s235, 8
        %s237 = scalar_lea.vmem %s0, %s236
      $region44: #{ds_layer_pallas.1} parent=39 // pred_fallthru
        _
    $region40: #{ds_layer_pallas.1} parent=5 // pred_fallthru
      _
    %p238 = scmp.le.s32.totalorder 1, %s15
    %p239 = scmp.lt.s32.totalorder %s15, 3
    %p240 = pnand %p238, %p239
    %p241 = pneg %p240
    // Predicated region
    $region45: #{ds_layer_pallas.1} parent=5 // pred_check
      _
    $region46: #{ds_layer_pallas.1} parent=5 // pred_check_branch
      %243 = sbr.rel (%p240) target = $region48
    $region47: #{ds_layer_pallas.1} parent=5 // pred_region
      %s244 = ssub.s32 %s15, 1
      %p245 = scmp.lt.s32.totalorder %s20, 1
      %s246 = scalar_select %p245, %s20, 1
      %s247 = smul.addr %s246, 32
      %s248 = smul.addr %s247, 8
      %s249 = scalar_lea.vmem %s0, %s248
      %p250 = pneg %p41
      %p251 = pneg %p38
      %p252 = pneg %p62
      %p253 = pneg %p59
      %p254 = pneg %p83
      %p255 = pneg %p80
      %p256 = pneg %p104
      %p257 = pneg %p101
      %p258 = pneg %p125
      %p259 = pneg %p122
      %p260 = pneg %p146
      %p261 = pneg %p143
      %p262 = pneg %p167
      %p263 = pneg %p164
      %p264 = pneg %p193
      %p265 = pneg %p190
      %p266 = scmp.lt.s32.totalorder %s20, 1
      %s267 = scalar_select %p266, %s20, 1
      %s268 = smul.addr %s267, 2
      %s269 = scalar_lea.vmem %s7, %s268
      %p270 = scmp.lt.s32.totalorder %s20, 1
      %s271 = scalar_select %p270, %s20, 1
      %s272 = smul.addr %s271, 32
      %s273 = smul.addr %s272, 8
      %s274 = scalar_lea.vmem %s0, %s273
      %p275 = scmp.lt.s32.totalorder %s20, 1
      %s276 = scalar_select %p275, %s20, 1
      %s277 = smul.addr %s276, 2
      %s278 = scalar_lea.vmem %s7, %s277
      %v279 = vld [vmem:[%s274] sm:$0xff]
      %v280 = vld [vmem:[%s274 + $0x8] sm:$0xff]
      %v281 = vld [vmem:[%s274 + $0x10] sm:$0xff]
      %v282 = vld [vmem:[%s274 + $0x18] sm:$0xff]
      %v283 = vld [vmem:[%s274 + $0x20] sm:$0xff]
      %v284 = vld [vmem:[%s274 + $0x28] sm:$0xff]
      %v285 = vld [vmem:[%s274 + $0x30] sm:$0xff]
      %v286 = vld [vmem:[%s274 + $0x38] sm:$0xff]
      %v287 = vld [vmem:[%s274 + $0x40] sm:$0xff]
      %v288 = vld [vmem:[%s274 + $0x48] sm:$0xff]
      %v289 = vld [vmem:[%s274 + $0x50] sm:$0xff]
      %v290 = vld [vmem:[%s274 + $0x58] sm:$0xff]
      %v291 = vld [vmem:[%s274 + $0x60] sm:$0xff]
      %v292 = vld [vmem:[%s274 + $0x68] sm:$0xff]
      %v293 = vld [vmem:[%s274 + $0x70] sm:$0xff]
      %v294 = vld [vmem:[%s274 + $0x78] sm:$0xff]
      %v295 = vld [vmem:[%s274 + $0x80] sm:$0xff]
      %v296 = vld [vmem:[%s274 + $0x88] sm:$0xff]
      %v297 = vld [vmem:[%s274 + $0x90] sm:$0xff]
      %v298 = vld [vmem:[%s274 + $0x98] sm:$0xff]
      %v299 = vld [vmem:[%s274 + $0xa0] sm:$0xff]
      %v300 = vld [vmem:[%s274 + $0xa8] sm:$0xff]
      %v301 = vld [vmem:[%s274 + $0xb0] sm:$0xff]
      %v302 = vld [vmem:[%s274 + $0xb8] sm:$0xff]
      %v303 = vld [vmem:[%s274 + $0xc0] sm:$0xff]
      %v304 = vld [vmem:[%s274 + $0xc8] sm:$0xff]
      %v305 = vld [vmem:[%s274 + $0xd0] sm:$0xff]
      %v306 = vld [vmem:[%s274 + $0xd8] sm:$0xff]
      %v307 = vld [vmem:[%s274 + $0xe0] sm:$0xff]
      %v308 = vld [vmem:[%s274 + $0xe8] sm:$0xff]
      %v309 = vld [vmem:[%s274 + $0xf0] sm:$0xff]
      %v310 = vld [vmem:[%s274 + $0xf8] sm:$0xff]
      %v311 = vld [vmem:[%s1] sm:$0xff]
      %v312 = vld [vmem:[%s1 + $0x8] sm:$0xff]
      %v313 = vld [vmem:[%s1 + $0x10] sm:$0xff]
      %v314 = vld [vmem:[%s1 + $0x18] sm:$0xff]
      %v315 = vld [vmem:[%s1 + $0x20] sm:$0xf]
      %v316 = vld [vmem:[%s2] sm:$0x1]
      %v318 = vlaneseq
      %v319 = vshrl.u32 %v318, 7
      %v320 = vsub.s32 0, %v319
      %v321 = vrot.slane %v316, %v320
      %vm323 = vcmask 293888
      %v325 = vsel %vm323, %v279, 0
      %v328 = vsel %vm323, %v280, 0
      %v331 = vsel %vm323, %v281, 0
      %v334 = vsel %vm323, %v282, 0
      %v337 = vsel %vm323, %v283, 0
      %v340 = vsel %vm323, %v284, 0
      %v343 = vsel %vm323, %v285, 0
      %v346 = vsel %vm323, %v286, 0
      %v349 = vsel %vm323, %v287, 0
      %v352 = vsel %vm323, %v288, 0
      %v355 = vsel %vm323, %v289, 0
      %v358 = vsel %vm323, %v290, 0
      %v361 = vsel %vm323, %v291, 0
      %v364 = vsel %vm323, %v292, 0
      %v367 = vsel %vm323, %v293, 0
      %v370 = vsel %vm323, %v294, 0
      %v373 = vsel %vm323, %v295, 0
      %v376 = vsel %vm323, %v296, 0
      %v379 = vsel %vm323, %v297, 0
      %v382 = vsel %vm323, %v298, 0
      %v385 = vsel %vm323, %v299, 0
      %v388 = vsel %vm323, %v300, 0
      %v391 = vsel %vm323, %v301, 0
      %v394 = vsel %vm323, %v302, 0
      %v397 = vsel %vm323, %v303, 0
      %v400 = vsel %vm323, %v304, 0
      %v403 = vsel %vm323, %v305, 0
      %v406 = vsel %vm323, %v306, 0
      %v409 = vsel %vm323, %v307, 0
      %v412 = vsel %vm323, %v308, 0
      %v415 = vsel %vm323, %v309, 0
      %v418 = vsel %vm323, %v310, 0
      %vm420 = vcmask 1043456
      %v422 = vsel %vm420, %v315, 0
      %424 = vmatprep.subr.mxu0 0.0
      %425 = vmatpush1.msra.mxu0 0.0
      %426 = vmatprep.subr.mxu0 0.0
      %427 = vmatpush1.msra.mxu0 0.0
      %428 = vmatprep.subr.mxu0 0.0
      %429 = vmatpush1.msra.mxu0 0.0
      %430 = vmatprep.subr.mxu0 0.0
      %431 = vmatpush1.msra.mxu0 0.0
      %432 = vmatprep.subr.mxu0 0.0
      %433 = vmatpush1.msra.mxu0 0.0
      %434 = vmatprep.subr.mxu0 0.0
      %435 = vmatpush1.msra.mxu0 0.0
      %436 = vmatprep.subr.mxu0 0.0
      %437 = vmatpush1.msra.mxu0 0.0
      %438 = vmatprep.subr.mxu0 0.0
      %439 = vmatpush1.msra.mxu0 0.0
      %440 = vmatprep.subr.mxu0 0.0
      %441 = vmatpush1.msra.mxu0 0.0
      %442 = vmatprep.subr.mxu0 0.0
      %443 = vmatpush1.msra.mxu0 0.0
      %444 = vmatprep.subr.mxu0 0.0
      %445 = vmatpush1.msra.mxu0 0.0
      %446 = vmatprep.subr.mxu0 0.0
      %447 = vmatpush1.msra.mxu0 %v422
      %448 = vmatprep.subr.mxu0 0.0
      %449 = vmatpush1.msra.mxu0 %v314
      %450 = vmatprep.subr.mxu0 0.0
      %451 = vmatpush1.msra.mxu0 %v313
      %452 = vmatprep.subr.mxu0 0.0
      %453 = vmatpush1.msra.mxu0 %v312
      %454 = vmatprep.subr.mxu0 0.0
      %455 = vmatpush1.msra.mxu0 %v311
      %456 = vmatprep.subr.mxu0 0.0
      %457 = vmatpush2.msra.mxu0 0.0
      %458 = vmatprep.subr.mxu0 0.0
      %459 = vmatpush2.msra.mxu0 0.0
      %460 = vmatprep.subr.mxu0 0.0
      %461 = vmatpush2.msra.mxu0 0.0
      %462 = vmatprep.subr.mxu0 0.0
      %463 = vmatpush2.msra.mxu0 0.0
      %464 = vmatprep.subr.mxu0 0.0
      %465 = vmatpush2.msra.mxu0 0.0
      %466 = vmatprep.subr.mxu0 0.0
      %467 = vmatpush2.msra.mxu0 0.0
      %468 = vmatprep.subr.mxu0 0.0
      %469 = vmatpush2.msra.mxu0 0.0
      %470 = vmatprep.subr.mxu0 0.0
      %471 = vmatpush2.msra.mxu0 0.0
      %472 = vmatprep.subr.mxu0 0.0
      %473 = vmatpush2.msra.mxu0 0.0
      %474 = vmatprep.subr.mxu0 0.0
      %475 = vmatpush2.msra.mxu0 0.0
      %476 = vmatprep.subr.mxu0 0.0
      %477 = vmatpush2.msra.mxu0 0.0
      %478 = vmatprep.subr.mxu0 0.0
      %479 = vmatpush2.msra.mxu0 0.0
      %480 = vmatprep.subr.mxu0 0.0
      %481 = vmatpush2.msra.mxu0 0.0
      %482 = vmatprep.subr.mxu0 0.0
      %483 = vmatpush2.msra.mxu0 0.0
      %484 = vmatprep.subr.mxu0 0.0
      %485 = vmatpush2.msra.mxu0 0.0
      %486 = vmatprep.subr.mxu0 0.0
      %487 = vmatpush2.msra.mxu0 0.0
      %488 = vmatprep.mubr.f32.mxu0 0.0
      %489 = vmatmul.mubr.f32.gmra.mxu0 %v325
      %v490 = vpop.f32.mrf.mxu0
      %v491 = vadd.f32 %v321, %v490
      %v492 = vpop.f32.mrf.mxu0
      %493 = vmatprep.mubr.f32.mxu0 0.0
      %494 = vmatmul.mubr.f32.gmra.mxu0 %v328
      %v495 = vpop.f32.mrf.mxu0
      %v496 = vadd.f32 %v321, %v495
      %v497 = vpop.f32.mrf.mxu0
      %498 = vmatprep.mubr.f32.mxu0 0.0
      %499 = vmatmul.mubr.f32.gmra.mxu0 %v331
      %v500 = vpop.f32.mrf.mxu0
      %v501 = vadd.f32 %v321, %v500
      %v502 = vpop.f32.mrf.mxu0
      %503 = vmatprep.mubr.f32.mxu0 0.0
      %504 = vmatmul.mubr.f32.gmra.mxu0 %v334
      %v505 = vpop.f32.mrf.mxu0
      %v506 = vadd.f32 %v321, %v505
      %v507 = vpop.f32.mrf.mxu0
      %508 = vmatprep.mubr.f32.mxu0 0.0
      %509 = vmatmul.mubr.f32.gmra.mxu0 %v337
      %v510 = vpop.f32.mrf.mxu0
      %v511 = vadd.f32 %v321, %v510
      %v512 = vpop.f32.mrf.mxu0
      %513 = vmatprep.mubr.f32.mxu0 0.0
      %514 = vmatmul.mubr.f32.gmra.mxu0 %v340
      %v515 = vpop.f32.mrf.mxu0
      %v516 = vadd.f32 %v321, %v515
      %v517 = vpop.f32.mrf.mxu0
      %518 = vmatprep.mubr.f32.mxu0 0.0
      %519 = vmatmul.mubr.f32.gmra.mxu0 %v343
      %v520 = vpop.f32.mrf.mxu0
      %v521 = vadd.f32 %v321, %v520
      %v522 = vpop.f32.mrf.mxu0
      %523 = vmatprep.mubr.f32.mxu0 0.0
      %524 = vmatmul.mubr.f32.gmra.mxu0 %v346
      %v525 = vpop.f32.mrf.mxu0
      %v526 = vadd.f32 %v321, %v525
      %v527 = vpop.f32.mrf.mxu0
      %528 = vmatprep.mubr.f32.mxu0 0.0
      %529 = vmatmul.mubr.f32.gmra.mxu0 %v349
      %v530 = vpop.f32.mrf.mxu0
      %v531 = vadd.f32 %v321, %v530
      %v532 = vpop.f32.mrf.mxu0
      %533 = vmatprep.mubr.f32.mxu0 0.0
      %534 = vmatmul.mubr.f32.gmra.mxu0 %v352
      %v535 = vpop.f32.mrf.mxu0
      %v536 = vadd.f32 %v321, %v535
      %v537 = vpop.f32.mrf.mxu0
      %538 = vmatprep.mubr.f32.mxu0 0.0
      %539 = vmatmul.mubr.f32.gmra.mxu0 %v355
      %v540 = vpop.f32.mrf.mxu0
      %v541 = vadd.f32 %v321, %v540
      %v542 = vpop.f32.mrf.mxu0
      %543 = vmatprep.mubr.f32.mxu0 0.0
      %544 = vmatmul.mubr.f32.gmra.mxu0 %v358
      %v545 = vpop.f32.mrf.mxu0
      %v546 = vadd.f32 %v321, %v545
      %v547 = vpop.f32.mrf.mxu0
      %548 = vmatprep.mubr.f32.mxu0 0.0
      %549 = vmatmul.mubr.f32.gmra.mxu0 %v361
      %v550 = vpop.f32.mrf.mxu0
      %v551 = vadd.f32 %v321, %v550
      %v552 = vpop.f32.mrf.mxu0
      %553 = vmatprep.mubr.f32.mxu0 0.0
      %554 = vmatmul.mubr.f32.gmra.mxu0 %v364
      %v555 = vpop.f32.mrf.mxu0
      %v556 = vadd.f32 %v321, %v555
      %v557 = vpop.f32.mrf.mxu0
      %558 = vmatprep.mubr.f32.mxu0 0.0
      %559 = vmatmul.mubr.f32.gmra.mxu0 %v367
      %v560 = vpop.f32.mrf.mxu0
      %v561 = vadd.f32 %v321, %v560
      %v562 = vpop.f32.mrf.mxu0
      %563 = vmatprep.mubr.f32.mxu0 0.0
      %564 = vmatmul.mubr.f32.gmra.mxu0 %v370
      %v565 = vpop.f32.mrf.mxu0
      %v566 = vadd.f32 %v321, %v565
      %v567 = vpop.f32.mrf.mxu0
      %568 = vmatprep.mubr.f32.mxu0 0.0
      %569 = vmatmul.mubr.f32.gmra.mxu0 %v373
      %v570 = vpop.f32.mrf.mxu0
      %v571 = vadd.f32 %v321, %v570
      %v572 = vpop.f32.mrf.mxu0
      %573 = vmatprep.mubr.f32.mxu0 0.0
      %574 = vmatmul.mubr.f32.gmra.mxu0 %v376
      %v575 = vpop.f32.mrf.mxu0
      %v576 = vadd.f32 %v321, %v575
      %v577 = vpop.f32.mrf.mxu0
      %578 = vmatprep.mubr.f32.mxu0 0.0
      %579 = vmatmul.mubr.f32.gmra.mxu0 %v379
      %v580 = vpop.f32.mrf.mxu0
      %v581 = vadd.f32 %v321, %v580
      %v582 = vpop.f32.mrf.mxu0
      %583 = vmatprep.mubr.f32.mxu0 0.0
      %584 = vmatmul.mubr.f32.gmra.mxu0 %v382
      %v585 = vpop.f32.mrf.mxu0
      %v586 = vadd.f32 %v321, %v585
      %v587 = vpop.f32.mrf.mxu0
      %588 = vmatprep.mubr.f32.mxu0 0.0
      %589 = vmatmul.mubr.f32.gmra.mxu0 %v385
      %v590 = vpop.f32.mrf.mxu0
      %v591 = vadd.f32 %v321, %v590
      %v592 = vpop.f32.mrf.mxu0
      %593 = vmatprep.mubr.f32.mxu0 0.0
      %594 = vmatmul.mubr.f32.gmra.mxu0 %v388
      %v595 = vpop.f32.mrf.mxu0
      %v596 = vadd.f32 %v321, %v595
      %v597 = vpop.f32.mrf.mxu0
      %598 = vmatprep.mubr.f32.mxu0 0.0
      %599 = vmatmul.mubr.f32.gmra.mxu0 %v391
      %v600 = vpop.f32.mrf.mxu0
      %v601 = vadd.f32 %v321, %v600
      %v602 = vpop.f32.mrf.mxu0
      %603 = vmatprep.mubr.f32.mxu0 0.0
      %604 = vmatmul.mubr.f32.gmra.mxu0 %v394
      %v605 = vpop.f32.mrf.mxu0
      %v606 = vadd.f32 %v321, %v605
      %v607 = vpop.f32.mrf.mxu0
      %608 = vmatprep.mubr.f32.mxu0 0.0
      %609 = vmatmul.mubr.f32.gmra.mxu0 %v397
      %v610 = vpop.f32.mrf.mxu0
      %v611 = vadd.f32 %v321, %v610
      %v612 = vpop.f32.mrf.mxu0
      %613 = vmatprep.mubr.f32.mxu0 0.0
      %614 = vmatmul.mubr.f32.gmra.mxu0 %v400
      %v615 = vpop.f32.mrf.mxu0
      %v616 = vadd.f32 %v321, %v615
      %v617 = vpop.f32.mrf.mxu0
      %618 = vmatprep.mubr.f32.mxu0 0.0
      %619 = vmatmul.mubr.f32.gmra.mxu0 %v403
      %v620 = vpop.f32.mrf.mxu0
      %v621 = vadd.f32 %v321, %v620
      %v622 = vpop.f32.mrf.mxu0
      %623 = vmatprep.mubr.f32.mxu0 0.0
      %624 = vmatmul.mubr.f32.gmra.mxu0 %v406
      %v625 = vpop.f32.mrf.mxu0
      %v626 = vadd.f32 %v321, %v625
      %v627 = vpop.f32.mrf.mxu0
      %628 = vmatprep.mubr.f32.mxu0 0.0
      %629 = vmatmul.mubr.f32.gmra.mxu0 %v409
      %v630 = vpop.f32.mrf.mxu0
      %v631 = vadd.f32 %v321, %v630
      %v632 = vpop.f32.mrf.mxu0
      %633 = vmatprep.mubr.f32.mxu0 0.0
      %634 = vmatmul.mubr.f32.gmra.mxu0 %v412
      %v635 = vpop.f32.mrf.mxu0
      %v636 = vadd.f32 %v321, %v635
      %v637 = vpop.f32.mrf.mxu0
      %638 = vmatprep.mubr.f32.mxu0 0.0
      %639 = vmatmul.mubr.f32.gmra.mxu0 %v415
      %v640 = vpop.f32.mrf.mxu0
      %v641 = vadd.f32 %v321, %v640
      %v642 = vpop.f32.mrf.mxu0
      %643 = vmatprep.mubr.f32.mxu0 0.0
      %644 = vmatmul.mubr.f32.gmra.mxu0 %v418
      %v645 = vpop.f32.mrf.mxu0
      %v646 = vadd.f32 %v321, %v645
      %v647 = vpop.f32.mrf.mxu0
      %648 = vdwg.mxu0
      %v649 = vmax.f32 %v491, 0.0
      %v650 = vmax.f32 %v496, 0.0
      %v651 = vmax.f32 %v501, 0.0
      %v652 = vmax.f32 %v506, 0.0
      %v653 = vmax.f32 %v511, 0.0
      %v654 = vmax.f32 %v516, 0.0
      %v655 = vmax.f32 %v521, 0.0
      %v656 = vmax.f32 %v526, 0.0
      %v657 = vmax.f32 %v531, 0.0
      %v658 = vmax.f32 %v536, 0.0
      %v659 = vmax.f32 %v541, 0.0
      %v660 = vmax.f32 %v546, 0.0
      %v661 = vmax.f32 %v551, 0.0
      %v662 = vmax.f32 %v556, 0.0
      %v663 = vmax.f32 %v561, 0.0
      %v664 = vmax.f32 %v566, 0.0
      %v665 = vmax.f32 %v571, 0.0
      %v666 = vmax.f32 %v576, 0.0
      %v667 = vmax.f32 %v581, 0.0
      %v668 = vmax.f32 %v586, 0.0
      %v669 = vmax.f32 %v591, 0.0
      %v670 = vmax.f32 %v596, 0.0
      %v671 = vmax.f32 %v601, 0.0
      %v672 = vmax.f32 %v606, 0.0
      %v673 = vmax.f32 %v611, 0.0
      %v674 = vmax.f32 %v616, 0.0
      %v675 = vmax.f32 %v621, 0.0
      %v676 = vmax.f32 %v626, 0.0
      %v677 = vmax.f32 %v631, 0.0
      %v678 = vmax.f32 %v636, 0.0
      %v679 = vmax.f32 %v641, 0.0
      %v680 = vmax.f32 %v646, 0.0
      %vm681 = vcmask 523264
      %682 = vst.msk [vmem:[#allocation2] sm:$0xff] %vm681, 0.0
      %683 = vst.msk [vmem:[#allocation2 + $0x8] sm:$0xff] %vm681, 0.0
      %vm684 = vcmask 517120
      %685 = vst.msk [vmem:[#allocation2 + $0x10] sm:$0x3] %vm684, 0.0
      %686 = vst.msk [vmem:[#allocation2 + $0x18] sm:$0xff] %vm681, 0.0
      %687 = vst.msk [vmem:[#allocation2 + $0x20] sm:$0xff] %vm681, 0.0
      %688 = vst.msk [vmem:[#allocation2 + $0x28] sm:$0x3] %vm684, 0.0
      %689 = vst.msk [vmem:[#allocation2 + $0x30] sm:$0xff] %vm681, 0.0
      %690 = vst.msk [vmem:[#allocation2 + $0x38] sm:$0xff] %vm681, 0.0
      %691 = vst.msk [vmem:[#allocation2 + $0x40] sm:$0x3] %vm684, 0.0
      %692 = vst.msk [vmem:[#allocation2 + $0x48] sm:$0xff] %vm681, 0.0
      %693 = vst.msk [vmem:[#allocation2 + $0x50] sm:$0xff] %vm681, 0.0
      %694 = vst.msk [vmem:[#allocation2 + $0x58] sm:$0x3] %vm684, 0.0
      %695 = vst.msk [vmem:[#allocation2 + $0x60] sm:$0xff] %vm681, 0.0
      %696 = vst.msk [vmem:[#allocation2 + $0x68] sm:$0xff] %vm681, 0.0
      %697 = vst.msk [vmem:[#allocation2 + $0x70] sm:$0x3] %vm684, 0.0
      %698 = vst.msk [vmem:[#allocation2 + $0x78] sm:$0xff] %vm681, 0.0
      %699 = vst.msk [vmem:[#allocation2 + $0x80] sm:$0xff] %vm681, 0.0
      %700 = vst.msk [vmem:[#allocation2 + $0x88] sm:$0x3] %vm684, 0.0
      %701 = vst.msk [vmem:[#allocation2 + $0x90] sm:$0xff] %vm681, 0.0
      %702 = vst.msk [vmem:[#allocation2 + $0x98] sm:$0xff] %vm681, 0.0
      %703 = vst.msk [vmem:[#allocation2 + $0xa0] sm:$0x3] %vm684, 0.0
      %704 = vst.msk [vmem:[#allocation2 + $0xa8] sm:$0xff] %vm681, 0.0
      %705 = vst.msk [vmem:[#allocation2 + $0xb0] sm:$0xff] %vm681, 0.0
      %706 = vst.msk [vmem:[#allocation2 + $0xb8] sm:$0x3] %vm684, 0.0
      %707 = vst.msk [vmem:[#allocation2 + $0xc0] sm:$0xff] %vm681, 0.0
      %708 = vst.msk [vmem:[#allocation2 + $0xc8] sm:$0xff] %vm681, 0.0
      %709 = vst.msk [vmem:[#allocation2 + $0xd0] sm:$0x3] %vm684, 0.0
      %710 = vst.msk [vmem:[#allocation2 + $0xd8] sm:$0xff] %vm681, 0.0
      %711 = vst.msk [vmem:[#allocation2 + $0xe0] sm:$0xff] %vm681, 0.0
      %712 = vst.msk [vmem:[#allocation2 + $0xe8] sm:$0x3] %vm684, 0.0
      %713 = vst.msk [vmem:[#allocation2 + $0xf0] sm:$0xff] %vm681, 0.0
      %714 = vst.msk [vmem:[#allocation2 + $0xf8] sm:$0xff] %vm681, 0.0
      %715 = vst.msk [vmem:[#allocation2 + $0x100] sm:$0x3] %vm684, 0.0
      %716 = vst.msk [vmem:[#allocation2 + $0x108] sm:$0xff] %vm681, 0.0
      %717 = vst.msk [vmem:[#allocation2 + $0x110] sm:$0xff] %vm681, 0.0
      %718 = vst.msk [vmem:[#allocation2 + $0x118] sm:$0x3] %vm684, 0.0
      %719 = vst.msk [vmem:[#allocation2 + $0x120] sm:$0xff] %vm681, 0.0
      %720 = vst.msk [vmem:[#allocation2 + $0x128] sm:$0xff] %vm681, 0.0
      %721 = vst.msk [vmem:[#allocation2 + $0x130] sm:$0x3] %vm684, 0.0
      %722 = vst.msk [vmem:[#allocation2 + $0x138] sm:$0xff] %vm681, 0.0
      %723 = vst.msk [vmem:[#allocation2 + $0x140] sm:$0xff] %vm681, 0.0
      %724 = vst.msk [vmem:[#allocation2 + $0x148] sm:$0x3] %vm684, 0.0
      %725 = vst.msk [vmem:[#allocation2 + $0x150] sm:$0xff] %vm681, 0.0
      %726 = vst.msk [vmem:[#allocation2 + $0x158] sm:$0xff] %vm681, 0.0
      %727 = vst.msk [vmem:[#allocation2 + $0x160] sm:$0x3] %vm684, 0.0
      %728 = vst.msk [vmem:[#allocation2 + $0x168] sm:$0xff] %vm681, 0.0
      %729 = vst.msk [vmem:[#allocation2 + $0x170] sm:$0xff] %vm681, 0.0
      %730 = vst.msk [vmem:[#allocation2 + $0x178] sm:$0x3] %vm684, 0.0
      %731 = vst.msk [vmem:[#allocation2 + $0x180] sm:$0xff] %vm681, 0.0
      %732 = vst.msk [vmem:[#allocation2 + $0x188] sm:$0xff] %vm681, 0.0
      %733 = vst.msk [vmem:[#allocation2 + $0x190] sm:$0x3] %vm684, 0.0
      %734 = vst.msk [vmem:[#allocation2 + $0x198] sm:$0xff] %vm681, 0.0
      %735 = vst.msk [vmem:[#allocation2 + $0x1a0] sm:$0xff] %vm681, 0.0
      %736 = vst.msk [vmem:[#allocation2 + $0x1a8] sm:$0x3] %vm684, 0.0
      %s737 = scalar_lea.vmem [#allocation2], 24
      %738 = vst.msk [vmem:[%s737 + $0x1] sm:$0xff] %vm681, %v649
      %739 = vst.msk [vmem:[%s737 + $0x9] sm:$0xff] %vm681, %v650
      %740 = vst.msk [vmem:[%s737 + $0x19] sm:$0xff] %vm681, %v651
      %741 = vst.msk [vmem:[%s737 + $0x21] sm:$0xff] %vm681, %v652
      %742 = vst.msk [vmem:[%s737 + $0x31] sm:$0xff] %vm681, %v653
      %743 = vst.msk [vmem:[%s737 + $0x39] sm:$0xff] %vm681, %v654
      %744 = vst.msk [vmem:[%s737 + $0x49] sm:$0xff] %vm681, %v655
      %745 = vst.msk [vmem:[%s737 + $0x51] sm:$0xff] %vm681, %v656
      %746 = vst.msk [vmem:[%s737 + $0x61] sm:$0xff] %vm681, %v657
      %747 = vst.msk [vmem:[%s737 + $0x69] sm:$0xff] %vm681, %v658
      %748 = vst.msk [vmem:[%s737 + $0x79] sm:$0xff] %vm681, %v659
      %749 = vst.msk [vmem:[%s737 + $0x81] sm:$0xff] %vm681, %v660
      %750 = vst.msk [vmem:[%s737 + $0x91] sm:$0xff] %vm681, %v661
      %751 = vst.msk [vmem:[%s737 + $0x99] sm:$0xff] %vm681, %v662
      %752 = vst.msk [vmem:[%s737 + $0xa9] sm:$0xff] %vm681, %v663
      %753 = vst.msk [vmem:[%s737 + $0xb1] sm:$0xff] %vm681, %v664
      %754 = vst.msk [vmem:[%s737 + $0xc1] sm:$0xff] %vm681, %v665
      %755 = vst.msk [vmem:[%s737 + $0xc9] sm:$0xff] %vm681, %v666
      %756 = vst.msk [vmem:[%s737 + $0xd9] sm:$0xff] %vm681, %v667
      %757 = vst.msk [vmem:[%s737 + $0xe1] sm:$0xff] %vm681, %v668
      %758 = vst.msk [vmem:[%s737 + $0xf1] sm:$0xff] %vm681, %v669
      %759 = vst.msk [vmem:[%s737 + $0xf9] sm:$0xff] %vm681, %v670
      %760 = vst.msk [vmem:[%s737 + $0x109] sm:$0xff] %vm681, %v671
      %761 = vst.msk [vmem:[%s737 + $0x111] sm:$0xff] %vm681, %v672
      %762 = vst.msk [vmem:[%s737 + $0x121] sm:$0xff] %vm681, %v673
      %763 = vst.msk [vmem:[%s737 + $0x129] sm:$0xff] %vm681, %v674
      %764 = vst.msk [vmem:[%s737 + $0x139] sm:$0xff] %vm681, %v675
      %765 = vst.msk [vmem:[%s737 + $0x141] sm:$0xff] %vm681, %v676
      %766 = vst.msk [vmem:[%s737 + $0x151] sm:$0xff] %vm681, %v677
      %767 = vst.msk [vmem:[%s737 + $0x159] sm:$0xff] %vm681, %v678
      %768 = vst.msk [vmem:[%s737 + $0x169] sm:$0xff] %vm681, %v679
      %769 = vst.msk [vmem:[%s737 + $0x171] sm:$0xff] %vm681, %v680
      %v770 = vld [vmem:[#allocation2] sm:$0xff]
      %v771 = vld [vmem:[#allocation2 + $0x8] sm:$0xff]
      %v772 = vld [vmem:[#allocation2 + $0x18] sm:$0xff]
      %v773 = vld [vmem:[#allocation2 + $0x20] sm:$0xff]
      %v774 = vld [vmem:[#allocation2 + $0x30] sm:$0xff]
      %v775 = vld [vmem:[#allocation2 + $0x38] sm:$0xff]
      %v776 = vld [vmem:[#allocation2 + $0x48] sm:$0xff]
      %v777 = vld [vmem:[#allocation2 + $0x50] sm:$0xff]
      %v778 = vld [vmem:[#allocation2 + $0x60] sm:$0xff]
      %v779 = vld [vmem:[#allocation2 + $0x68] sm:$0xff]
      %v780 = vld [vmem:[#allocation2 + $0x78] sm:$0xff]
      %v781 = vld [vmem:[#allocation2 + $0x80] sm:$0xff]
      %v782 = vld [vmem:[#allocation2 + $0x90] sm:$0xff]
      %v783 = vld [vmem:[#allocation2 + $0x98] sm:$0xff]
      %v784 = vld [vmem:[#allocation2 + $0xa8] sm:$0xff]
      %v785 = vld [vmem:[#allocation2 + $0xb0] sm:$0xff]
      %v786 = vld [vmem:[#allocation2 + $0xc0] sm:$0xff]
      %v787 = vld [vmem:[#allocation2 + $0xc8] sm:$0xff]
      %v788 = vld [vmem:[#allocation2 + $0xd8] sm:$0xff]
      %v789 = vld [vmem:[#allocation2 + $0xe0] sm:$0xff]
      %v790 = vld [vmem:[#allocation2 + $0xf0] sm:$0xff]
      %v791 = vld [vmem:[#allocation2 + $0xf8] sm:$0xff]
      %v792 = vld [vmem:[#allocation2 + $0x108] sm:$0xff]
      %v793 = vld [vmem:[#allocation2 + $0x110] sm:$0xff]
      %v794 = vld [vmem:[#allocation2 + $0x120] sm:$0xff]
      %v795 = vld [vmem:[#allocation2 + $0x128] sm:$0xff]
      %v796 = vld [vmem:[#allocation2 + $0x138] sm:$0xff]
      %v797 = vld [vmem:[#allocation2 + $0x140] sm:$0xff]
      %v798 = vld [vmem:[#allocation2 + $0x150] sm:$0xff]
      %v799 = vld [vmem:[#allocation2 + $0x158] sm:$0xff]
      %v800 = vld [vmem:[#allocation2 + $0x168] sm:$0xff]
      %v801 = vld [vmem:[#allocation2 + $0x170] sm:$0xff]
      %v802 = vld [vmem:[%s3] sm:$0xff]
      %v803 = vld [vmem:[%s3 + $0x8] sm:$0xff]
      %v804 = vld [vmem:[%s3 + $0x10] sm:$0xff]
      %v805 = vld [vmem:[%s3 + $0x18] sm:$0xff]
      %v806 = vld [vmem:[%s3 + $0x20] sm:$0xff]
      %v807 = vld [vmem:[%s3 + $0x28] sm:$0xff]
      %v808 = vld [vmem:[%s3 + $0x30] sm:$0xff]
      %v809 = vld [vmem:[%s3 + $0x38] sm:$0xff]
      %v810 = vld [vmem:[#allocation2 + $0x1] sm:$0xff]
      %v811 = vld [vmem:[#allocation2 + $0x9] sm:$0xff]
      %v812 = vld [vmem:[#allocation2 + $0x19] sm:$0xff]
      %v813 = vld [vmem:[#allocation2 + $0x21] sm:$0xff]
      %v814 = vld [vmem:[#allocation2 + $0x31] sm:$0xff]
      %v815 = vld [vmem:[#allocation2 + $0x39] sm:$0xff]
      %v816 = vld [vmem:[#allocation2 + $0x49] sm:$0xff]
      %v817 = vld [vmem:[#allocation2 + $0x51] sm:$0xff]
      %v818 = vld [vmem:[#allocation2 + $0x61] sm:$0xff]
      %v819 = vld [vmem:[#allocation2 + $0x69] sm:$0xff]
      %v820 = vld [vmem:[#allocation2 + $0x79] sm:$0xff]
      %v821 = vld [vmem:[#allocation2 + $0x81] sm:$0xff]
      %v822 = vld [vmem:[#allocation2 + $0x91] sm:$0xff]
      %v823 = vld [vmem:[#allocation2 + $0x99] sm:$0xff]
      %v824 = vld [vmem:[#allocation2 + $0xa9] sm:$0xff]
      %v825 = vld [vmem:[#allocation2 + $0xb1] sm:$0xff]
      %v826 = vld [vmem:[#allocation2 + $0xc1] sm:$0xff]
      %v827 = vld [vmem:[#allocation2 + $0xc9] sm:$0xff]
      %v828 = vld [vmem:[#allocation2 + $0xd9] sm:$0xff]
      %v829 = vld [vmem:[#allocation2 + $0xe1] sm:$0xff]
      %v830 = vld [vmem:[#allocation2 + $0xf1] sm:$0xff]
      %v831 = vld [vmem:[#allocation2 + $0xf9] sm:$0xff]
      %v832 = vld [vmem:[#allocation2 + $0x109] sm:$0xff]
      %v833 = vld [vmem:[#allocation2 + $0x111] sm:$0xff]
      %v834 = vld [vmem:[#allocation2 + $0x121] sm:$0xff]
      %v835 = vld [vmem:[#allocation2 + $0x129] sm:$0xff]
      %v836 = vld [vmem:[#allocation2 + $0x139] sm:$0xff]
      %v837 = vld [vmem:[#allocation2 + $0x141] sm:$0xff]
      %v838 = vld [vmem:[#allocation2 + $0x151] sm:$0xff]
      %v839 = vld [vmem:[#allocation2 + $0x159] sm:$0xff]
      %v840 = vld [vmem:[#allocation2 + $0x169] sm:$0xff]
      %v841 = vld [vmem:[#allocation2 + $0x171] sm:$0xff]
      %s842 = scalar_lea.vmem %s3, 64
      %v843 = vld [vmem:[%s842] sm:$0xff]
      %v844 = vld [vmem:[%s842 + $0x8] sm:$0xff]
      %v845 = vld [vmem:[%s842 + $0x10] sm:$0xff]
      %v846 = vld [vmem:[%s842 + $0x18] sm:$0xff]
      %v847 = vld [vmem:[%s842 + $0x20] sm:$0xff]
      %v848 = vld [vmem:[%s842 + $0x28] sm:$0xff]
      %v849 = vld [vmem:[%s842 + $0x30] sm:$0xff]
      %v850 = vld [vmem:[%s842 + $0x38] sm:$0xff]
      %v852 = vsel %vm681, %v810, 0
      %v855 = vsel %vm681, %v811, 0
      %v858 = vsel %vm681, %v812, 0
      %v861 = vsel %vm681, %v813, 0
      %v864 = vsel %vm681, %v814, 0
      %v867 = vsel %vm681, %v815, 0
      %v870 = vsel %vm681, %v816, 0
      %v873 = vsel %vm681, %v817, 0
      %v876 = vsel %vm681, %v818, 0
      %v879 = vsel %vm681, %v819, 0
      %v882 = vsel %vm681, %v820, 0
      %v885 = vsel %vm681, %v821, 0
      %v888 = vsel %vm681, %v822, 0
      %v891 = vsel %vm681, %v823, 0
      %v894 = vsel %vm681, %v824, 0
      %v897 = vsel %vm681, %v825, 0
      %v900 = vsel %vm681, %v826, 0
      %v903 = vsel %vm681, %v827, 0
      %v906 = vsel %vm681, %v828, 0
      %v909 = vsel %vm681, %v829, 0
      %v912 = vsel %vm681, %v830, 0
      %v915 = vsel %vm681, %v831, 0
      %v918 = vsel %vm681, %v832, 0
      %v921 = vsel %vm681, %v833, 0
      %v924 = vsel %vm681, %v834, 0
      %v927 = vsel %vm681, %v835, 0
      %v930 = vsel %vm681, %v836, 0
      %v933 = vsel %vm681, %v837, 0
      %v936 = vsel %vm681, %v838, 0
      %v939 = vsel %vm681, %v839, 0
      %v942 = vsel %vm681, %v840, 0
      %v945 = vsel %vm681, %v841, 0
      %947 = vmatprep.subr.mxu0 0.0
      %948 = vmatpush1.msra.mxu0 0.0
      %949 = vmatprep.subr.mxu0 0.0
      %950 = vmatpush1.msra.mxu0 0.0
      %951 = vmatprep.subr.mxu0 0.0
      %952 = vmatpush1.msra.mxu0 0.0
      %953 = vmatprep.subr.mxu0 0.0
      %954 = vmatpush1.msra.mxu0 0.0
      %955 = vmatprep.subr.mxu0 0.0
      %956 = vmatpush1.msra.mxu0 0.0
      %957 = vmatprep.subr.mxu0 0.0
      %958 = vmatpush1.msra.mxu0 0.0
      %959 = vmatprep.subr.mxu0 0.0
      %960 = vmatpush1.msra.mxu0 0.0
      %961 = vmatprep.subr.mxu0 0.0
      %962 = vmatpush1.msra.mxu0 0.0
      %963 = vmatprep.subr.mxu0 0.0
      %964 = vmatpush1.msra.mxu0 %v850
      %965 = vmatprep.subr.mxu0 0.0
      %966 = vmatpush1.msra.mxu0 %v849
      %967 = vmatprep.subr.mxu0 0.0
      %968 = vmatpush1.msra.mxu0 %v848
      %969 = vmatprep.subr.mxu0 0.0
      %970 = vmatpush1.msra.mxu0 %v847
      %971 = vmatprep.subr.mxu0 0.0
      %972 = vmatpush1.msra.mxu0 %v846
      %973 = vmatprep.subr.mxu0 0.0
      %974 = vmatpush1.msra.mxu0 %v845
      %975 = vmatprep.subr.mxu0 0.0
      %976 = vmatpush1.msra.mxu0 %v844
      %977 = vmatprep.subr.mxu0 0.0
      %978 = vmatpush1.msra.mxu0 %v843
      %979 = vmatprep.subr.mxu0 0.0
      %980 = vmatpush2.msra.mxu0 0.0
      %981 = vmatprep.subr.mxu0 0.0
      %982 = vmatpush2.msra.mxu0 0.0
      %983 = vmatprep.subr.mxu0 0.0
      %984 = vmatpush2.msra.mxu0 0.0
      %985 = vmatprep.subr.mxu0 0.0
      %986 = vmatpush2.msra.mxu0 0.0
      %987 = vmatprep.subr.mxu0 0.0
      %988 = vmatpush2.msra.mxu0 0.0
      %989 = vmatprep.subr.mxu0 0.0
      %990 = vmatpush2.msra.mxu0 0.0
      %991 = vmatprep.subr.mxu0 0.0
      %992 = vmatpush2.msra.mxu0 0.0
      %993 = vmatprep.subr.mxu0 0.0
      %994 = vmatpush2.msra.mxu0 0.0
      %995 = vmatprep.subr.mxu0 0.0
      %996 = vmatpush2.msra.mxu0 0.0
      %997 = vmatprep.subr.mxu0 0.0
      %998 = vmatpush2.msra.mxu0 0.0
      %999 = vmatprep.subr.mxu0 0.0
      %1000 = vmatpush2.msra.mxu0 0.0
      %1001 = vmatprep.subr.mxu0 0.0
      %1002 = vmatpush2.msra.mxu0 0.0
      %1003 = vmatprep.subr.mxu0 0.0
      %1004 = vmatpush2.msra.mxu0 0.0
      %1005 = vmatprep.subr.mxu0 0.0
      %1006 = vmatpush2.msra.mxu0 0.0
      %1007 = vmatprep.subr.mxu0 0.0
      %1008 = vmatpush2.msra.mxu0 0.0
      %1009 = vmatprep.subr.mxu0 0.0
      %1010 = vmatpush2.msra.mxu0 0.0
      %1011 = vmatprep.mubr.f32.mxu0 0.0
      %1012 = vmatmul.mubr.f32.gmra.mxu0 %v852
      %v1013 = vpop.f32.mrf.mxu0
      %v1014 = vadd.f32 0.0, %v1013
      %v1015 = vpop.f32.mrf.mxu0
      %1016 = vmatprep.mubr.f32.mxu0 0.0
      %1017 = vmatmul.mubr.f32.gmra.mxu0 %v855
      %v1018 = vpop.f32.mrf.mxu0
      %v1019 = vadd.f32 0.0, %v1018
      %v1020 = vpop.f32.mrf.mxu0
      %1021 = vmatprep.mubr.f32.mxu0 0.0
      %1022 = vmatmul.mubr.f32.gmra.mxu0 %v858
      %v1023 = vpop.f32.mrf.mxu0
      %v1024 = vadd.f32 0.0, %v1023
      %v1025 = vpop.f32.mrf.mxu0
      %1026 = vmatprep.mubr.f32.mxu0 0.0
      %1027 = vmatmul.mubr.f32.gmra.mxu0 %v861
      %v1028 = vpop.f32.mrf.mxu0
      %v1029 = vadd.f32 0.0, %v1028
      %v1030 = vpop.f32.mrf.mxu0
      %1031 = vmatprep.mubr.f32.mxu0 0.0
      %1032 = vmatmul.mubr.f32.gmra.mxu0 %v864
      %v1033 = vpop.f32.mrf.mxu0
      %v1034 = vadd.f32 0.0, %v1033
      %v1035 = vpop.f32.mrf.mxu0
      %1036 = vmatprep.mubr.f32.mxu0 0.0
      %1037 = vmatmul.mubr.f32.gmra.mxu0 %v867
      %v1038 = vpop.f32.mrf.mxu0
      %v1039 = vadd.f32 0.0, %v1038
      %v1040 = vpop.f32.mrf.mxu0
      %1041 = vmatprep.mubr.f32.mxu0 0.0
      %1042 = vmatmul.mubr.f32.gmra.mxu0 %v870
      %v1043 = vpop.f32.mrf.mxu0
      %v1044 = vadd.f32 0.0, %v1043
      %v1045 = vpop.f32.mrf.mxu0
      %1046 = vmatprep.mubr.f32.mxu0 0.0
      %1047 = vmatmul.mubr.f32.gmra.mxu0 %v873
      %v1048 = vpop.f32.mrf.mxu0
      %v1049 = vadd.f32 0.0, %v1048
      %v1050 = vpop.f32.mrf.mxu0
      %1051 = vmatprep.mubr.f32.mxu0 0.0
      %1052 = vmatmul.mubr.f32.gmra.mxu0 %v876
      %v1053 = vpop.f32.mrf.mxu0
      %v1054 = vadd.f32 0.0, %v1053
      %v1055 = vpop.f32.mrf.mxu0
      %1056 = vmatprep.mubr.f32.mxu0 0.0
      %1057 = vmatmul.mubr.f32.gmra.mxu0 %v879
      %v1058 = vpop.f32.mrf.mxu0
      %v1059 = vadd.f32 0.0, %v1058
      %v1060 = vpop.f32.mrf.mxu0
      %1061 = vmatprep.mubr.f32.mxu0 0.0
      %1062 = vmatmul.mubr.f32.gmra.mxu0 %v882
      %v1063 = vpop.f32.mrf.mxu0
      %v1064 = vadd.f32 0.0, %v1063
      %v1065 = vpop.f32.mrf.mxu0
      %1066 = vmatprep.mubr.f32.mxu0 0.0
      %1067 = vmatmul.mubr.f32.gmra.mxu0 %v885
      %v1068 = vpop.f32.mrf.mxu0
      %v1069 = vadd.f32 0.0, %v1068
      %v1070 = vpop.f32.mrf.mxu0
      %1071 = vmatprep.mubr.f32.mxu0 0.0
      %1072 = vmatmul.mubr.f32.gmra.mxu0 %v888
      %v1073 = vpop.f32.mrf.mxu0
      %v1074 = vadd.f32 0.0, %v1073
      %v1075 = vpop.f32.mrf.mxu0
      %1076 = vmatprep.mubr.f32.mxu0 0.0
      %1077 = vmatmul.mubr.f32.gmra.mxu0 %v891
      %v1078 = vpop.f32.mrf.mxu0
      %v1079 = vadd.f32 0.0, %v1078
      %v1080 = vpop.f32.mrf.mxu0
      %1081 = vmatprep.mubr.f32.mxu0 0.0
      %1082 = vmatmul.mubr.f32.gmra.mxu0 %v894
      %v1083 = vpop.f32.mrf.mxu0
      %v1084 = vadd.f32 0.0, %v1083
      %v1085 = vpop.f32.mrf.mxu0
      %1086 = vmatprep.mubr.f32.mxu0 0.0
      %1087 = vmatmul.mubr.f32.gmra.mxu0 %v897
      %v1088 = vpop.f32.mrf.mxu0
      %v1089 = vadd.f32 0.0, %v1088
      %v1090 = vpop.f32.mrf.mxu0
      %1091 = vmatprep.mubr.f32.mxu0 0.0
      %1092 = vmatmul.mubr.f32.gmra.mxu0 %v900
      %v1093 = vpop.f32.mrf.mxu0
      %v1094 = vadd.f32 0.0, %v1093
      %v1095 = vpop.f32.mrf.mxu0
      %1096 = vmatprep.mubr.f32.mxu0 0.0
      %1097 = vmatmul.mubr.f32.gmra.mxu0 %v903
      %v1098 = vpop.f32.mrf.mxu0
      %v1099 = vadd.f32 0.0, %v1098
      %v1100 = vpop.f32.mrf.mxu0
      %1101 = vmatprep.mubr.f32.mxu0 0.0
      %1102 = vmatmul.mubr.f32.gmra.mxu0 %v906
      %v1103 = vpop.f32.mrf.mxu0
      %v1104 = vadd.f32 0.0, %v1103
      %v1105 = vpop.f32.mrf.mxu0
      %1106 = vmatprep.mubr.f32.mxu0 0.0
      %1107 = vmatmul.mubr.f32.gmra.mxu0 %v909
      %v1108 = vpop.f32.mrf.mxu0
      %v1109 = vadd.f32 0.0, %v1108
      %v1110 = vpop.f32.mrf.mxu0
      %1111 = vmatprep.mubr.f32.mxu0 0.0
      %1112 = vmatmul.mubr.f32.gmra.mxu0 %v912
      %v1113 = vpop.f32.mrf.mxu0
      %v1114 = vadd.f32 0.0, %v1113
      %v1115 = vpop.f32.mrf.mxu0
      %1116 = vmatprep.mubr.f32.mxu0 0.0
      %1117 = vmatmul.mubr.f32.gmra.mxu0 %v915
      %v1118 = vpop.f32.mrf.mxu0
      %v1119 = vadd.f32 0.0, %v1118
      %v1120 = vpop.f32.mrf.mxu0
      %1121 = vmatprep.mubr.f32.mxu0 0.0
      %1122 = vmatmul.mubr.f32.gmra.mxu0 %v918
      %v1123 = vpop.f32.mrf.mxu0
      %v1124 = vadd.f32 0.0, %v1123
      %v1125 = vpop.f32.mrf.mxu0
      %1126 = vmatprep.mubr.f32.mxu0 0.0
      %1127 = vmatmul.mubr.f32.gmra.mxu0 %v921
      %v1128 = vpop.f32.mrf.mxu0
      %v1129 = vadd.f32 0.0, %v1128
      %v1130 = vpop.f32.mrf.mxu0
      %1131 = vmatprep.mubr.f32.mxu0 0.0
      %1132 = vmatmul.mubr.f32.gmra.mxu0 %v924
      %v1133 = vpop.f32.mrf.mxu0
      %v1134 = vadd.f32 0.0, %v1133
      %v1135 = vpop.f32.mrf.mxu0
      %1136 = vmatprep.mubr.f32.mxu0 0.0
      %1137 = vmatmul.mubr.f32.gmra.mxu0 %v927
      %v1138 = vpop.f32.mrf.mxu0
      %v1139 = vadd.f32 0.0, %v1138
      %v1140 = vpop.f32.mrf.mxu0
      %1141 = vmatprep.mubr.f32.mxu0 0.0
      %1142 = vmatmul.mubr.f32.gmra.mxu0 %v930
      %v1143 = vpop.f32.mrf.mxu0
      %v1144 = vadd.f32 0.0, %v1143
      %v1145 = vpop.f32.mrf.mxu0
      %1146 = vmatprep.mubr.f32.mxu0 0.0
      %1147 = vmatmul.mubr.f32.gmra.mxu0 %v933
      %v1148 = vpop.f32.mrf.mxu0
      %v1149 = vadd.f32 0.0, %v1148
      %v1150 = vpop.f32.mrf.mxu0
      %1151 = vmatprep.mubr.f32.mxu0 0.0
      %1152 = vmatmul.mubr.f32.gmra.mxu0 %v936
      %v1153 = vpop.f32.mrf.mxu0
      %v1154 = vadd.f32 0.0, %v1153
      %v1155 = vpop.f32.mrf.mxu0
      %1156 = vmatprep.mubr.f32.mxu0 0.0
      %1157 = vmatmul.mubr.f32.gmra.mxu0 %v939
      %v1158 = vpop.f32.mrf.mxu0
      %v1159 = vadd.f32 0.0, %v1158
      %v1160 = vpop.f32.mrf.mxu0
      %1161 = vmatprep.mubr.f32.mxu0 0.0
      %1162 = vmatmul.mubr.f32.gmra.mxu0 %v942
      %v1163 = vpop.f32.mrf.mxu0
      %v1164 = vadd.f32 0.0, %v1163
      %v1165 = vpop.f32.mrf.mxu0
      %1166 = vmatprep.mubr.f32.mxu0 0.0
      %1167 = vmatmul.mubr.f32.gmra.mxu0 %v945
      %v1168 = vpop.f32.mrf.mxu0
      %v1169 = vadd.f32 0.0, %v1168
      %v1170 = vpop.f32.mrf.mxu0
      %1171 = vdwg.mxu0
      %v1173 = vsel %vm681, %v770, 0
      %v1176 = vsel %vm681, %v771, 0
      %v1179 = vsel %vm681, %v772, 0
      %v1182 = vsel %vm681, %v773, 0
      %v1185 = vsel %vm681, %v774, 0
      %v1188 = vsel %vm681, %v775, 0
      %v1191 = vsel %vm681, %v776, 0
      %v1194 = vsel %vm681, %v777, 0
      %v1197 = vsel %vm681, %v778, 0
      %v1200 = vsel %vm681, %v779, 0
      %v1203 = vsel %vm681, %v780, 0
      %v1206 = vsel %vm681, %v781, 0
      %v1209 = vsel %vm681, %v782, 0
      %v1212 = vsel %vm681, %v783, 0
      %v1215 = vsel %vm681, %v784, 0
      %v1218 = vsel %vm681, %v785, 0
      %v1221 = vsel %vm681, %v786, 0
      %v1224 = vsel %vm681, %v787, 0
      %v1227 = vsel %vm681, %v788, 0
      %v1230 = vsel %vm681, %v789, 0
      %v1233 = vsel %vm681, %v790, 0
      %v1236 = vsel %vm681, %v791, 0
      %v1239 = vsel %vm681, %v792, 0
      %v1242 = vsel %vm681, %v793, 0
      %v1245 = vsel %vm681, %v794, 0
      %v1248 = vsel %vm681, %v795, 0
      %v1251 = vsel %vm681, %v796, 0
      %v1254 = vsel %vm681, %v797, 0
      %v1257 = vsel %vm681, %v798, 0
      %v1260 = vsel %vm681, %v799, 0
      %v1263 = vsel %vm681, %v800, 0
      %v1266 = vsel %vm681, %v801, 0
      %1268 = vmatprep.subr.mxu0 0.0
      %1269 = vmatpush1.msra.mxu0 0.0
      %1270 = vmatprep.subr.mxu0 0.0
      %1271 = vmatpush1.msra.mxu0 0.0
      %1272 = vmatprep.subr.mxu0 0.0
      %1273 = vmatpush1.msra.mxu0 0.0
      %1274 = vmatprep.subr.mxu0 0.0
      %1275 = vmatpush1.msra.mxu0 0.0
      %1276 = vmatprep.subr.mxu0 0.0
      %1277 = vmatpush1.msra.mxu0 0.0
      %1278 = vmatprep.subr.mxu0 0.0
      %1279 = vmatpush1.msra.mxu0 0.0
      %1280 = vmatprep.subr.mxu0 0.0
      %1281 = vmatpush1.msra.mxu0 0.0
      %1282 = vmatprep.subr.mxu0 0.0
      %1283 = vmatpush1.msra.mxu0 0.0
      %1284 = vmatprep.subr.mxu0 0.0
      %1285 = vmatpush1.msra.mxu0 %v809
      %1286 = vmatprep.subr.mxu0 0.0
      %1287 = vmatpush1.msra.mxu0 %v808
      %1288 = vmatprep.subr.mxu0 0.0
      %1289 = vmatpush1.msra.mxu0 %v807
      %1290 = vmatprep.subr.mxu0 0.0
      %1291 = vmatpush1.msra.mxu0 %v806
      %1292 = vmatprep.subr.mxu0 0.0
      %1293 = vmatpush1.msra.mxu0 %v805
      %1294 = vmatprep.subr.mxu0 0.0
      %1295 = vmatpush1.msra.mxu0 %v804
      %1296 = vmatprep.subr.mxu0 0.0
      %1297 = vmatpush1.msra.mxu0 %v803
      %1298 = vmatprep.subr.mxu0 0.0
      %1299 = vmatpush1.msra.mxu0 %v802
      %1300 = vmatprep.subr.mxu0 0.0
      %1301 = vmatpush2.msra.mxu0 0.0
      %1302 = vmatprep.subr.mxu0 0.0
      %1303 = vmatpush2.msra.mxu0 0.0
      %1304 = vmatprep.subr.mxu0 0.0
      %1305 = vmatpush2.msra.mxu0 0.0
      %1306 = vmatprep.subr.mxu0 0.0
      %1307 = vmatpush2.msra.mxu0 0.0
      %1308 = vmatprep.subr.mxu0 0.0
      %1309 = vmatpush2.msra.mxu0 0.0
      %1310 = vmatprep.subr.mxu0 0.0
      %1311 = vmatpush2.msra.mxu0 0.0
      %1312 = vmatprep.subr.mxu0 0.0
      %1313 = vmatpush2.msra.mxu0 0.0
      %1314 = vmatprep.subr.mxu0 0.0
      %1315 = vmatpush2.msra.mxu0 0.0
      %1316 = vmatprep.subr.mxu0 0.0
      %1317 = vmatpush2.msra.mxu0 0.0
      %1318 = vmatprep.subr.mxu0 0.0
      %1319 = vmatpush2.msra.mxu0 0.0
      %1320 = vmatprep.subr.mxu0 0.0
      %1321 = vmatpush2.msra.mxu0 0.0
      %1322 = vmatprep.subr.mxu0 0.0
      %1323 = vmatpush2.msra.mxu0 0.0
      %1324 = vmatprep.subr.mxu0 0.0
      %1325 = vmatpush2.msra.mxu0 0.0
      %1326 = vmatprep.subr.mxu0 0.0
      %1327 = vmatpush2.msra.mxu0 0.0
      %1328 = vmatprep.subr.mxu0 0.0
      %1329 = vmatpush2.msra.mxu0 0.0
      %1330 = vmatprep.subr.mxu0 0.0
      %1331 = vmatpush2.msra.mxu0 0.0
      %1332 = vmatprep.mubr.f32.mxu0 0.0
      %1333 = vmatmul.mubr.f32.gmra.mxu0 %v1173
      %v1334 = vpop.f32.mrf.mxu0
      %v1335 = vadd.f32 %v1014, %v1334
      %v1336 = vpop.f32.mrf.mxu0
      %1337 = vmatprep.mubr.f32.mxu0 0.0
      %1338 = vmatmul.mubr.f32.gmra.mxu0 %v1176
      %v1339 = vpop.f32.mrf.mxu0
      %v1340 = vadd.f32 %v1019, %v1339
      %v1341 = vpop.f32.mrf.mxu0
      %1342 = vmatprep.mubr.f32.mxu0 0.0
      %1343 = vmatmul.mubr.f32.gmra.mxu0 %v1179
      %v1344 = vpop.f32.mrf.mxu0
      %v1345 = vadd.f32 %v1024, %v1344
      %v1346 = vpop.f32.mrf.mxu0
      %1347 = vmatprep.mubr.f32.mxu0 0.0
      %1348 = vmatmul.mubr.f32.gmra.mxu0 %v1182
      %v1349 = vpop.f32.mrf.mxu0
      %v1350 = vadd.f32 %v1029, %v1349
      %v1351 = vpop.f32.mrf.mxu0
      %1352 = vmatprep.mubr.f32.mxu0 0.0
      %1353 = vmatmul.mubr.f32.gmra.mxu0 %v1185
      %v1354 = vpop.f32.mrf.mxu0
      %v1355 = vadd.f32 %v1034, %v1354
      %v1356 = vpop.f32.mrf.mxu0
      %1357 = vmatprep.mubr.f32.mxu0 0.0
      %1358 = vmatmul.mubr.f32.gmra.mxu0 %v1188
      %v1359 = vpop.f32.mrf.mxu0
      %v1360 = vadd.f32 %v1039, %v1359
      %v1361 = vpop.f32.mrf.mxu0
      %1362 = vmatprep.mubr.f32.mxu0 0.0
      %1363 = vmatmul.mubr.f32.gmra.mxu0 %v1191
      %v1364 = vpop.f32.mrf.mxu0
      %v1365 = vadd.f32 %v1044, %v1364
      %v1366 = vpop.f32.mrf.mxu0
      %1367 = vmatprep.mubr.f32.mxu0 0.0
      %1368 = vmatmul.mubr.f32.gmra.mxu0 %v1194
      %v1369 = vpop.f32.mrf.mxu0
      %v1370 = vadd.f32 %v1049, %v1369
      %v1371 = vpop.f32.mrf.mxu0
      %1372 = vmatprep.mubr.f32.mxu0 0.0
      %1373 = vmatmul.mubr.f32.gmra.mxu0 %v1197
      %v1374 = vpop.f32.mrf.mxu0
      %v1375 = vadd.f32 %v1054, %v1374
      %v1376 = vpop.f32.mrf.mxu0
      %1377 = vmatprep.mubr.f32.mxu0 0.0
      %1378 = vmatmul.mubr.f32.gmra.mxu0 %v1200
      %v1379 = vpop.f32.mrf.mxu0
      %v1380 = vadd.f32 %v1059, %v1379
      %v1381 = vpop.f32.mrf.mxu0
      %1382 = vmatprep.mubr.f32.mxu0 0.0
      %1383 = vmatmul.mubr.f32.gmra.mxu0 %v1203
      %v1384 = vpop.f32.mrf.mxu0
      %v1385 = vadd.f32 %v1064, %v1384
      %v1386 = vpop.f32.mrf.mxu0
      %1387 = vmatprep.mubr.f32.mxu0 0.0
      %1388 = vmatmul.mubr.f32.gmra.mxu0 %v1206
      %v1389 = vpop.f32.mrf.mxu0
      %v1390 = vadd.f32 %v1069, %v1389
      %v1391 = vpop.f32.mrf.mxu0
      %1392 = vmatprep.mubr.f32.mxu0 0.0
      %1393 = vmatmul.mubr.f32.gmra.mxu0 %v1209
      %v1394 = vpop.f32.mrf.mxu0
      %v1395 = vadd.f32 %v1074, %v1394
      %v1396 = vpop.f32.mrf.mxu0
      %1397 = vmatprep.mubr.f32.mxu0 0.0
      %1398 = vmatmul.mubr.f32.gmra.mxu0 %v1212
      %v1399 = vpop.f32.mrf.mxu0
      %v1400 = vadd.f32 %v1079, %v1399
      %v1401 = vpop.f32.mrf.mxu0
      %1402 = vmatprep.mubr.f32.mxu0 0.0
      %1403 = vmatmul.mubr.f32.gmra.mxu0 %v1215
      %v1404 = vpop.f32.mrf.mxu0
      %v1405 = vadd.f32 %v1084, %v1404
      %v1406 = vpop.f32.mrf.mxu0
      %1407 = vmatprep.mubr.f32.mxu0 0.0
      %1408 = vmatmul.mubr.f32.gmra.mxu0 %v1218
      %v1409 = vpop.f32.mrf.mxu0
      %v1410 = vadd.f32 %v1089, %v1409
      %v1411 = vpop.f32.mrf.mxu0
      %1412 = vmatprep.mubr.f32.mxu0 0.0
      %1413 = vmatmul.mubr.f32.gmra.mxu0 %v1221
      %v1414 = vpop.f32.mrf.mxu0
      %v1415 = vadd.f32 %v1094, %v1414
      %v1416 = vpop.f32.mrf.mxu0
      %1417 = vmatprep.mubr.f32.mxu0 0.0
      %1418 = vmatmul.mubr.f32.gmra.mxu0 %v1224
      %v1419 = vpop.f32.mrf.mxu0
      %v1420 = vadd.f32 %v1099, %v1419
      %v1421 = vpop.f32.mrf.mxu0
      %1422 = vmatprep.mubr.f32.mxu0 0.0
      %1423 = vmatmul.mubr.f32.gmra.mxu0 %v1227
      %v1424 = vpop.f32.mrf.mxu0
      %v1425 = vadd.f32 %v1104, %v1424
      %v1426 = vpop.f32.mrf.mxu0
      %1427 = vmatprep.mubr.f32.mxu0 0.0
      %1428 = vmatmul.mubr.f32.gmra.mxu0 %v1230
      %v1429 = vpop.f32.mrf.mxu0
      %v1430 = vadd.f32 %v1109, %v1429
      %v1431 = vpop.f32.mrf.mxu0
      %1432 = vmatprep.mubr.f32.mxu0 0.0
      %1433 = vmatmul.mubr.f32.gmra.mxu0 %v1233
      %v1434 = vpop.f32.mrf.mxu0
      %v1435 = vadd.f32 %v1114, %v1434
      %v1436 = vpop.f32.mrf.mxu0
      %1437 = vmatprep.mubr.f32.mxu0 0.0
      %1438 = vmatmul.mubr.f32.gmra.mxu0 %v1236
      %v1439 = vpop.f32.mrf.mxu0
      %v1440 = vadd.f32 %v1119, %v1439
      %v1441 = vpop.f32.mrf.mxu0
      %1442 = vmatprep.mubr.f32.mxu0 0.0
      %1443 = vmatmul.mubr.f32.gmra.mxu0 %v1239
      %v1444 = vpop.f32.mrf.mxu0
      %v1445 = vadd.f32 %v1124, %v1444
      %v1446 = vpop.f32.mrf.mxu0
      %1447 = vmatprep.mubr.f32.mxu0 0.0
      %1448 = vmatmul.mubr.f32.gmra.mxu0 %v1242
      %v1449 = vpop.f32.mrf.mxu0
      %v1450 = vadd.f32 %v1129, %v1449
      %v1451 = vpop.f32.mrf.mxu0
      %1452 = vmatprep.mubr.f32.mxu0 0.0
      %1453 = vmatmul.mubr.f32.gmra.mxu0 %v1245
      %v1454 = vpop.f32.mrf.mxu0
      %v1455 = vadd.f32 %v1134, %v1454
      %v1456 = vpop.f32.mrf.mxu0
      %1457 = vmatprep.mubr.f32.mxu0 0.0
      %1458 = vmatmul.mubr.f32.gmra.mxu0 %v1248
      %v1459 = vpop.f32.mrf.mxu0
      %v1460 = vadd.f32 %v1139, %v1459
      %v1461 = vpop.f32.mrf.mxu0
      %1462 = vmatprep.mubr.f32.mxu0 0.0
      %1463 = vmatmul.mubr.f32.gmra.mxu0 %v1251
      %v1464 = vpop.f32.mrf.mxu0
      %v1465 = vadd.f32 %v1144, %v1464
      %v1466 = vpop.f32.mrf.mxu0
      %1467 = vmatprep.mubr.f32.mxu0 0.0
      %1468 = vmatmul.mubr.f32.gmra.mxu0 %v1254
      %v1469 = vpop.f32.mrf.mxu0
      %v1470 = vadd.f32 %v1149, %v1469
      %v1471 = vpop.f32.mrf.mxu0
      %1472 = vmatprep.mubr.f32.mxu0 0.0
      %1473 = vmatmul.mubr.f32.gmra.mxu0 %v1257
      %v1474 = vpop.f32.mrf.mxu0
      %v1475 = vadd.f32 %v1154, %v1474
      %v1476 = vpop.f32.mrf.mxu0
      %1477 = vmatprep.mubr.f32.mxu0 0.0
      %1478 = vmatmul.mubr.f32.gmra.mxu0 %v1260
      %v1479 = vpop.f32.mrf.mxu0
      %v1480 = vadd.f32 %v1159, %v1479
      %v1481 = vpop.f32.mrf.mxu0
      %1482 = vmatprep.mubr.f32.mxu0 0.0
      %1483 = vmatmul.mubr.f32.gmra.mxu0 %v1263
      %v1484 = vpop.f32.mrf.mxu0
      %v1485 = vadd.f32 %v1164, %v1484
      %v1486 = vpop.f32.mrf.mxu0
      %1487 = vmatprep.mubr.f32.mxu0 0.0
      %1488 = vmatmul.mubr.f32.gmra.mxu0 %v1266
      %v1489 = vpop.f32.mrf.mxu0
      %v1490 = vadd.f32 %v1169, %v1489
      %v1491 = vpop.f32.mrf.mxu0
      %1492 = vdwg.mxu0
      %v1493 = vld [vmem:[#allocation2 + $0x2] sm:$0xff]
      %v1494 = vld [vmem:[#allocation2 + $0xa] sm:$0xff]
      %v1495 = vld [vmem:[#allocation2 + $0x1a] sm:$0xff]
      %v1496 = vld [vmem:[#allocation2 + $0x22] sm:$0xff]
      %v1497 = vld [vmem:[#allocation2 + $0x32] sm:$0xff]
      %v1498 = vld [vmem:[#allocation2 + $0x3a] sm:$0xff]
      %v1499 = vld [vmem:[#allocation2 + $0x4a] sm:$0xff]
      %v1500 = vld [vmem:[#allocation2 + $0x52] sm:$0xff]
      %v1501 = vld [vmem:[#allocation2 + $0x62] sm:$0xff]
      %v1502 = vld [vmem:[#allocation2 + $0x6a] sm:$0xff]
      %v1503 = vld [vmem:[#allocation2 + $0x7a] sm:$0xff]
      %v1504 = vld [vmem:[#allocation2 + $0x82] sm:$0xff]
      %v1505 = vld [vmem:[#allocation2 + $0x92] sm:$0xff]
      %v1506 = vld [vmem:[#allocation2 + $0x9a] sm:$0xff]
      %v1507 = vld [vmem:[#allocation2 + $0xaa] sm:$0xff]
      %v1508 = vld [vmem:[#allocation2 + $0xb2] sm:$0xff]
      %v1509 = vld [vmem:[#allocation2 + $0xc2] sm:$0xff]
      %v1510 = vld [vmem:[#allocation2 + $0xca] sm:$0xff]
      %v1511 = vld [vmem:[#allocation2 + $0xda] sm:$0xff]
      %v1512 = vld [vmem:[#allocation2 + $0xe2] sm:$0xff]
      %v1513 = vld [vmem:[#allocation2 + $0xf2] sm:$0xff]
      %v1514 = vld [vmem:[#allocation2 + $0xfa] sm:$0xff]
      %v1515 = vld [vmem:[#allocation2 + $0x10a] sm:$0xff]
      %v1516 = vld [vmem:[#allocation2 + $0x112] sm:$0xff]
      %v1517 = vld [vmem:[#allocation2 + $0x122] sm:$0xff]
      %v1518 = vld [vmem:[#allocation2 + $0x12a] sm:$0xff]
      %v1519 = vld [vmem:[#allocation2 + $0x13a] sm:$0xff]
      %v1520 = vld [vmem:[#allocation2 + $0x142] sm:$0xff]
      %v1521 = vld [vmem:[#allocation2 + $0x152] sm:$0xff]
      %v1522 = vld [vmem:[#allocation2 + $0x15a] sm:$0xff]
      %v1523 = vld [vmem:[#allocation2 + $0x16a] sm:$0xff]
      %v1524 = vld [vmem:[#allocation2 + $0x172] sm:$0xff]
      %s1525 = scalar_lea.vmem %s3, 128
      %v1526 = vld [vmem:[%s1525] sm:$0xff]
      %v1527 = vld [vmem:[%s1525 + $0x8] sm:$0xff]
      %v1528 = vld [vmem:[%s1525 + $0x10] sm:$0xff]
      %v1529 = vld [vmem:[%s1525 + $0x18] sm:$0xff]
      %v1530 = vld [vmem:[%s1525 + $0x20] sm:$0xff]
      %v1531 = vld [vmem:[%s1525 + $0x28] sm:$0xff]
      %v1532 = vld [vmem:[%s1525 + $0x30] sm:$0xff]
      %v1533 = vld [vmem:[%s1525 + $0x38] sm:$0xff]
      %v1535 = vsel %vm681, %v1493, 0
      %v1538 = vsel %vm681, %v1494, 0
      %v1541 = vsel %vm681, %v1495, 0
      %v1544 = vsel %vm681, %v1496, 0
      %v1547 = vsel %vm681, %v1497, 0
      %v1550 = vsel %vm681, %v1498, 0
      %v1553 = vsel %vm681, %v1499, 0
      %v1556 = vsel %vm681, %v1500, 0
      %v1559 = vsel %vm681, %v1501, 0
      %v1562 = vsel %vm681, %v1502, 0
      %v1565 = vsel %vm681, %v1503, 0
      %v1568 = vsel %vm681, %v1504, 0
      %v1571 = vsel %vm681, %v1505, 0
      %v1574 = vsel %vm681, %v1506, 0
      %v1577 = vsel %vm681, %v1507, 0
      %v1580 = vsel %vm681, %v1508, 0
      %v1583 = vsel %vm681, %v1509, 0
      %v1586 = vsel %vm681, %v1510, 0
      %v1589 = vsel %vm681, %v1511, 0
      %v1592 = vsel %vm681, %v1512, 0
      %v1595 = vsel %vm681, %v1513, 0
      %v1598 = vsel %vm681, %v1514, 0
      %v1601 = vsel %vm681, %v1515, 0
      %v1604 = vsel %vm681, %v1516, 0
      %v1607 = vsel %vm681, %v1517, 0
      %v1610 = vsel %vm681, %v1518, 0
      %v1613 = vsel %vm681, %v1519, 0
      %v1616 = vsel %vm681, %v1520, 0
      %v1619 = vsel %vm681, %v1521, 0
      %v1622 = vsel %vm681, %v1522, 0
      %v1625 = vsel %vm681, %v1523, 0
      %v1628 = vsel %vm681, %v1524, 0
      %1630 = vmatprep.subr.mxu0 0.0
      %1631 = vmatpush1.msra.mxu0 0.0
      %1632 = vmatprep.subr.mxu0 0.0
      %1633 = vmatpush1.msra.mxu0 0.0
      %1634 = vmatprep.subr.mxu0 0.0
      %1635 = vmatpush1.msra.mxu0 0.0
      %1636 = vmatprep.subr.mxu0 0.0
      %1637 = vmatpush1.msra.mxu0 0.0
      %1638 = vmatprep.subr.mxu0 0.0
      %1639 = vmatpush1.msra.mxu0 0.0
      %1640 = vmatprep.subr.mxu0 0.0
      %1641 = vmatpush1.msra.mxu0 0.0
      %1642 = vmatprep.subr.mxu0 0.0
      %1643 = vmatpush1.msra.mxu0 0.0
      %1644 = vmatprep.subr.mxu0 0.0
      %1645 = vmatpush1.msra.mxu0 0.0
      %1646 = vmatprep.subr.mxu0 0.0
      %1647 = vmatpush1.msra.mxu0 %v1533
      %1648 = vmatprep.subr.mxu0 0.0
      %1649 = vmatpush1.msra.mxu0 %v1532
      %1650 = vmatprep.subr.mxu0 0.0
      %1651 = vmatpush1.msra.mxu0 %v1531
      %1652 = vmatprep.subr.mxu0 0.0
      %1653 = vmatpush1.msra.mxu0 %v1530
      %1654 = vmatprep.subr.mxu0 0.0
      %1655 = vmatpush1.msra.mxu0 %v1529
      %1656 = vmatprep.subr.mxu0 0.0
      %1657 = vmatpush1.msra.mxu0 %v1528
      %1658 = vmatprep.subr.mxu0 0.0
      %1659 = vmatpush1.msra.mxu0 %v1527
      %1660 = vmatprep.subr.mxu0 0.0
      %1661 = vmatpush1.msra.mxu0 %v1526
      %1662 = vmatprep.subr.mxu0 0.0
      %1663 = vmatpush2.msra.mxu0 0.0
      %1664 = vmatprep.subr.mxu0 0.0
      %1665 = vmatpush2.msra.mxu0 0.0
      %1666 = vmatprep.subr.mxu0 0.0
      %1667 = vmatpush2.msra.mxu0 0.0
      %1668 = vmatprep.subr.mxu0 0.0
      %1669 = vmatpush2.msra.mxu0 0.0
      %1670 = vmatprep.subr.mxu0 0.0
      %1671 = vmatpush2.msra.mxu0 0.0
      %1672 = vmatprep.subr.mxu0 0.0
      %1673 = vmatpush2.msra.mxu0 0.0
      %1674 = vmatprep.subr.mxu0 0.0
      %1675 = vmatpush2.msra.mxu0 0.0
      %1676 = vmatprep.subr.mxu0 0.0
      %1677 = vmatpush2.msra.mxu0 0.0
      %1678 = vmatprep.subr.mxu0 0.0
      %1679 = vmatpush2.msra.mxu0 0.0
      %1680 = vmatprep.subr.mxu0 0.0
      %1681 = vmatpush2.msra.mxu0 0.0
      %1682 = vmatprep.subr.mxu0 0.0
      %1683 = vmatpush2.msra.mxu0 0.0
      %1684 = vmatprep.subr.mxu0 0.0
      %1685 = vmatpush2.msra.mxu0 0.0
      %1686 = vmatprep.subr.mxu0 0.0
      %1687 = vmatpush2.msra.mxu0 0.0
      %1688 = vmatprep.subr.mxu0 0.0
      %1689 = vmatpush2.msra.mxu0 0.0
      %1690 = vmatprep.subr.mxu0 0.0
      %1691 = vmatpush2.msra.mxu0 0.0
      %1692 = vmatprep.subr.mxu0 0.0
      %1693 = vmatpush2.msra.mxu0 0.0
      %1694 = vmatprep.mubr.f32.mxu0 0.0
      %1695 = vmatmul.mubr.f32.gmra.mxu0 %v1535
      %v1696 = vpop.f32.mrf.mxu0
      %v1697 = vadd.f32 0.0, %v1696
      %v1698 = vpop.f32.mrf.mxu0
      %1699 = vmatprep.mubr.f32.mxu0 0.0
      %1700 = vmatmul.mubr.f32.gmra.mxu0 %v1538
      %v1701 = vpop.f32.mrf.mxu0
      %v1702 = vadd.f32 0.0, %v1701
      %v1703 = vpop.f32.mrf.mxu0
      %1704 = vmatprep.mubr.f32.mxu0 0.0
      %1705 = vmatmul.mubr.f32.gmra.mxu0 %v1541
      %v1706 = vpop.f32.mrf.mxu0
      %v1707 = vadd.f32 0.0, %v1706
      %v1708 = vpop.f32.mrf.mxu0
      %1709 = vmatprep.mubr.f32.mxu0 0.0
      %1710 = vmatmul.mubr.f32.gmra.mxu0 %v1544
      %v1711 = vpop.f32.mrf.mxu0
      %v1712 = vadd.f32 0.0, %v1711
      %v1713 = vpop.f32.mrf.mxu0
      %1714 = vmatprep.mubr.f32.mxu0 0.0
      %1715 = vmatmul.mubr.f32.gmra.mxu0 %v1547
      %v1716 = vpop.f32.mrf.mxu0
      %v1717 = vadd.f32 0.0, %v1716
      %v1718 = vpop.f32.mrf.mxu0
      %1719 = vmatprep.mubr.f32.mxu0 0.0
      %1720 = vmatmul.mubr.f32.gmra.mxu0 %v1550
      %v1721 = vpop.f32.mrf.mxu0
      %v1722 = vadd.f32 0.0, %v1721
      %v1723 = vpop.f32.mrf.mxu0
      %1724 = vmatprep.mubr.f32.mxu0 0.0
      %1725 = vmatmul.mubr.f32.gmra.mxu0 %v1553
      %v1726 = vpop.f32.mrf.mxu0
      %v1727 = vadd.f32 0.0, %v1726
      %v1728 = vpop.f32.mrf.mxu0
      %1729 = vmatprep.mubr.f32.mxu0 0.0
      %1730 = vmatmul.mubr.f32.gmra.mxu0 %v1556
      %v1731 = vpop.f32.mrf.mxu0
      %v1732 = vadd.f32 0.0, %v1731
      %v1733 = vpop.f32.mrf.mxu0
      %1734 = vmatprep.mubr.f32.mxu0 0.0
      %1735 = vmatmul.mubr.f32.gmra.mxu0 %v1559
      %v1736 = vpop.f32.mrf.mxu0
      %v1737 = vadd.f32 0.0, %v1736
      %v1738 = vpop.f32.mrf.mxu0
      %1739 = vmatprep.mubr.f32.mxu0 0.0
      %1740 = vmatmul.mubr.f32.gmra.mxu0 %v1562
      %v1741 = vpop.f32.mrf.mxu0
      %v1742 = vadd.f32 0.0, %v1741
      %v1743 = vpop.f32.mrf.mxu0
      %1744 = vmatprep.mubr.f32.mxu0 0.0
      %1745 = vmatmul.mubr.f32.gmra.mxu0 %v1565
      %v1746 = vpop.f32.mrf.mxu0
      %v1747 = vadd.f32 0.0, %v1746
      %v1748 = vpop.f32.mrf.mxu0
      %1749 = vmatprep.mubr.f32.mxu0 0.0
      %1750 = vmatmul.mubr.f32.gmra.mxu0 %v1568
      %v1751 = vpop.f32.mrf.mxu0
      %v1752 = vadd.f32 0.0, %v1751
      %v1753 = vpop.f32.mrf.mxu0
      %1754 = vmatprep.mubr.f32.mxu0 0.0
      %1755 = vmatmul.mubr.f32.gmra.mxu0 %v1571
      %v1756 = vpop.f32.mrf.mxu0
      %v1757 = vadd.f32 0.0, %v1756
      %v1758 = vpop.f32.mrf.mxu0
      %1759 = vmatprep.mubr.f32.mxu0 0.0
      %1760 = vmatmul.mubr.f32.gmra.mxu0 %v1574
      %v1761 = vpop.f32.mrf.mxu0
      %v1762 = vadd.f32 0.0, %v1761
      %v1763 = vpop.f32.mrf.mxu0
      %1764 = vmatprep.mubr.f32.mxu0 0.0
      %1765 = vmatmul.mubr.f32.gmra.mxu0 %v1577
      %v1766 = vpop.f32.mrf.mxu0
      %v1767 = vadd.f32 0.0, %v1766
      %v1768 = vpop.f32.mrf.mxu0
      %1769 = vmatprep.mubr.f32.mxu0 0.0
      %1770 = vmatmul.mubr.f32.gmra.mxu0 %v1580
      %v1771 = vpop.f32.mrf.mxu0
      %v1772 = vadd.f32 0.0, %v1771
      %v1773 = vpop.f32.mrf.mxu0
      %1774 = vmatprep.mubr.f32.mxu0 0.0
      %1775 = vmatmul.mubr.f32.gmra.mxu0 %v1583
      %v1776 = vpop.f32.mrf.mxu0
      %v1777 = vadd.f32 0.0, %v1776
      %v1778 = vpop.f32.mrf.mxu0
      %1779 = vmatprep.mubr.f32.mxu0 0.0
      %1780 = vmatmul.mubr.f32.gmra.mxu0 %v1586
      %v1781 = vpop.f32.mrf.mxu0
      %v1782 = vadd.f32 0.0, %v1781
      %v1783 = vpop.f32.mrf.mxu0
      %1784 = vmatprep.mubr.f32.mxu0 0.0
      %1785 = vmatmul.mubr.f32.gmra.mxu0 %v1589
      %v1786 = vpop.f32.mrf.mxu0
      %v1787 = vadd.f32 0.0, %v1786
      %v1788 = vpop.f32.mrf.mxu0
      %1789 = vmatprep.mubr.f32.mxu0 0.0
      %1790 = vmatmul.mubr.f32.gmra.mxu0 %v1592
      %v1791 = vpop.f32.mrf.mxu0
      %v1792 = vadd.f32 0.0, %v1791
      %v1793 = vpop.f32.mrf.mxu0
      %1794 = vmatprep.mubr.f32.mxu0 0.0
      %1795 = vmatmul.mubr.f32.gmra.mxu0 %v1595
      %v1796 = vpop.f32.mrf.mxu0
      %v1797 = vadd.f32 0.0, %v1796
      %v1798 = vpop.f32.mrf.mxu0
      %1799 = vmatprep.mubr.f32.mxu0 0.0
      %1800 = vmatmul.mubr.f32.gmra.mxu0 %v1598
      %v1801 = vpop.f32.mrf.mxu0
      %v1802 = vadd.f32 0.0, %v1801
      %v1803 = vpop.f32.mrf.mxu0
      %1804 = vmatprep.mubr.f32.mxu0 0.0
      %1805 = vmatmul.mubr.f32.gmra.mxu0 %v1601
      %v1806 = vpop.f32.mrf.mxu0
      %v1807 = vadd.f32 0.0, %v1806
      %v1808 = vpop.f32.mrf.mxu0
      %1809 = vmatprep.mubr.f32.mxu0 0.0
      %1810 = vmatmul.mubr.f32.gmra.mxu0 %v1604
      %v1811 = vpop.f32.mrf.mxu0
      %v1812 = vadd.f32 0.0, %v1811
      %v1813 = vpop.f32.mrf.mxu0
      %1814 = vmatprep.mubr.f32.mxu0 0.0
      %1815 = vmatmul.mubr.f32.gmra.mxu0 %v1607
      %v1816 = vpop.f32.mrf.mxu0
      %v1817 = vadd.f32 0.0, %v1816
      %v1818 = vpop.f32.mrf.mxu0
      %1819 = vmatprep.mubr.f32.mxu0 0.0
      %1820 = vmatmul.mubr.f32.gmra.mxu0 %v1610
      %v1821 = vpop.f32.mrf.mxu0
      %v1822 = vadd.f32 0.0, %v1821
      %v1823 = vpop.f32.mrf.mxu0
      %1824 = vmatprep.mubr.f32.mxu0 0.0
      %1825 = vmatmul.mubr.f32.gmra.mxu0 %v1613
      %v1826 = vpop.f32.mrf.mxu0
      %v1827 = vadd.f32 0.0, %v1826
      %v1828 = vpop.f32.mrf.mxu0
      %1829 = vmatprep.mubr.f32.mxu0 0.0
      %1830 = vmatmul.mubr.f32.gmra.mxu0 %v1616
      %v1831 = vpop.f32.mrf.mxu0
      %v1832 = vadd.f32 0.0, %v1831
      %v1833 = vpop.f32.mrf.mxu0
      %1834 = vmatprep.mubr.f32.mxu0 0.0
      %1835 = vmatmul.mubr.f32.gmra.mxu0 %v1619
      %v1836 = vpop.f32.mrf.mxu0
      %v1837 = vadd.f32 0.0, %v1836
      %v1838 = vpop.f32.mrf.mxu0
      %1839 = vmatprep.mubr.f32.mxu0 0.0
      %1840 = vmatmul.mubr.f32.gmra.mxu0 %v1622
      %v1841 = vpop.f32.mrf.mxu0
      %v1842 = vadd.f32 0.0, %v1841
      %v1843 = vpop.f32.mrf.mxu0
      %1844 = vmatprep.mubr.f32.mxu0 0.0
      %1845 = vmatmul.mubr.f32.gmra.mxu0 %v1625
      %v1846 = vpop.f32.mrf.mxu0
      %v1847 = vadd.f32 0.0, %v1846
      %v1848 = vpop.f32.mrf.mxu0
      %1849 = vmatprep.mubr.f32.mxu0 0.0
      %1850 = vmatmul.mubr.f32.gmra.mxu0 %v1628
      %v1851 = vpop.f32.mrf.mxu0
      %v1852 = vadd.f32 0.0, %v1851
      %v1853 = vpop.f32.mrf.mxu0
      %1854 = vdwg.mxu0
      %v1855 = vadd.f32 %v1335, %v1697
      %v1856 = vadd.f32 %v1340, %v1702
      %v1857 = vadd.f32 %v1345, %v1707
      %v1858 = vadd.f32 %v1350, %v1712
      %v1859 = vadd.f32 %v1355, %v1717
      %v1860 = vadd.f32 %v1360, %v1722
      %v1861 = vadd.f32 %v1365, %v1727
      %v1862 = vadd.f32 %v1370, %v1732
      %v1863 = vadd.f32 %v1375, %v1737
      %v1864 = vadd.f32 %v1380, %v1742
      %v1865 = vadd.f32 %v1385, %v1747
      %v1866 = vadd.f32 %v1390, %v1752
      %v1867 = vadd.f32 %v1395, %v1757
      %v1868 = vadd.f32 %v1400, %v1762
      %v1869 = vadd.f32 %v1405, %v1767
      %v1870 = vadd.f32 %v1410, %v1772
      %v1871 = vadd.f32 %v1415, %v1777
      %v1872 = vadd.f32 %v1420, %v1782
      %v1873 = vadd.f32 %v1425, %v1787
      %v1874 = vadd.f32 %v1430, %v1792
      %v1875 = vadd.f32 %v1435, %v1797
      %v1876 = vadd.f32 %v1440, %v1802
      %v1877 = vadd.f32 %v1445, %v1807
      %v1878 = vadd.f32 %v1450, %v1812
      %v1879 = vadd.f32 %v1455, %v1817
      %v1880 = vadd.f32 %v1460, %v1822
      %v1881 = vadd.f32 %v1465, %v1827
      %v1882 = vadd.f32 %v1470, %v1832
      %v1883 = vadd.f32 %v1475, %v1837
      %v1884 = vadd.f32 %v1480, %v1842
      %v1885 = vadd.f32 %v1485, %v1847
      %v1886 = vadd.f32 %v1490, %v1852
      %v1887 = vld [vmem:[%s737] sm:$0xff]
      %v1888 = vld [vmem:[%s737 + $0x8] sm:$0xff]
      %v1889 = vld [vmem:[%s737 + $0x18] sm:$0xff]
      %v1890 = vld [vmem:[%s737 + $0x20] sm:$0xff]
      %v1891 = vld [vmem:[%s737 + $0x30] sm:$0xff]
      %v1892 = vld [vmem:[%s737 + $0x38] sm:$0xff]
      %v1893 = vld [vmem:[%s737 + $0x48] sm:$0xff]
      %v1894 = vld [vmem:[%s737 + $0x50] sm:$0xff]
      %v1895 = vld [vmem:[%s737 + $0x60] sm:$0xff]
      %v1896 = vld [vmem:[%s737 + $0x68] sm:$0xff]
      %v1897 = vld [vmem:[%s737 + $0x78] sm:$0xff]
      %v1898 = vld [vmem:[%s737 + $0x80] sm:$0xff]
      %v1899 = vld [vmem:[%s737 + $0x90] sm:$0xff]
      %v1900 = vld [vmem:[%s737 + $0x98] sm:$0xff]
      %v1901 = vld [vmem:[%s737 + $0xa8] sm:$0xff]
      %v1902 = vld [vmem:[%s737 + $0xb0] sm:$0xff]
      %v1903 = vld [vmem:[%s737 + $0xc0] sm:$0xff]
      %v1904 = vld [vmem:[%s737 + $0xc8] sm:$0xff]
      %v1905 = vld [vmem:[%s737 + $0xd8] sm:$0xff]
      %v1906 = vld [vmem:[%s737 + $0xe0] sm:$0xff]
      %v1907 = vld [vmem:[%s737 + $0xf0] sm:$0xff]
      %v1908 = vld [vmem:[%s737 + $0xf8] sm:$0xff]
      %v1909 = vld [vmem:[%s737 + $0x108] sm:$0xff]
      %v1910 = vld [vmem:[%s737 + $0x110] sm:$0xff]
      %v1911 = vld [vmem:[%s737 + $0x120] sm:$0xff]
      %v1912 = vld [vmem:[%s737 + $0x128] sm:$0xff]
      %v1913 = vld [vmem:[%s737 + $0x138] sm:$0xff]
      %v1914 = vld [vmem:[%s737 + $0x140] sm:$0xff]
      %v1915 = vld [vmem:[%s737 + $0x150] sm:$0xff]
      %v1916 = vld [vmem:[%s737 + $0x158] sm:$0xff]
      %v1917 = vld [vmem:[%s737 + $0x168] sm:$0xff]
      %v1918 = vld [vmem:[%s737 + $0x170] sm:$0xff]
      %s1919 = scalar_lea.vmem %s3, 192
      %v1920 = vld [vmem:[%s1919] sm:$0xff]
      %v1921 = vld [vmem:[%s1919 + $0x8] sm:$0xff]
      %v1922 = vld [vmem:[%s1919 + $0x10] sm:$0xff]
      %v1923 = vld [vmem:[%s1919 + $0x18] sm:$0xff]
      %v1924 = vld [vmem:[%s1919 + $0x20] sm:$0xff]
      %v1925 = vld [vmem:[%s1919 + $0x28] sm:$0xff]
      %v1926 = vld [vmem:[%s1919 + $0x30] sm:$0xff]
      %v1927 = vld [vmem:[%s1919 + $0x38] sm:$0xff]
      %v1929 = vsel %vm681, %v1887, 0
      %v1932 = vsel %vm681, %v1888, 0
      %v1935 = vsel %vm681, %v1889, 0
      %v1938 = vsel %vm681, %v1890, 0
      %v1941 = vsel %vm681, %v1891, 0
      %v1944 = vsel %vm681, %v1892, 0
      %v1947 = vsel %vm681, %v1893, 0
      %v1950 = vsel %vm681, %v1894, 0
      %v1953 = vsel %vm681, %v1895, 0
      %v1956 = vsel %vm681, %v1896, 0
      %v1959 = vsel %vm681, %v1897, 0
      %v1962 = vsel %vm681, %v1898, 0
      %v1965 = vsel %vm681, %v1899, 0
      %v1968 = vsel %vm681, %v1900, 0
      %v1971 = vsel %vm681, %v1901, 0
      %v1974 = vsel %vm681, %v1902, 0
      %v1977 = vsel %vm681, %v1903, 0
      %v1980 = vsel %vm681, %v1904, 0
      %v1983 = vsel %vm681, %v1905, 0
      %v1986 = vsel %vm681, %v1906, 0
      %v1989 = vsel %vm681, %v1907, 0
      %v1992 = vsel %vm681, %v1908, 0
      %v1995 = vsel %vm681, %v1909, 0
      %v1998 = vsel %vm681, %v1910, 0
      %v2001 = vsel %vm681, %v1911, 0
      %v2004 = vsel %vm681, %v1912, 0
      %v2007 = vsel %vm681, %v1913, 0
      %v2010 = vsel %vm681, %v1914, 0
      %v2013 = vsel %vm681, %v1915, 0
      %v2016 = vsel %vm681, %v1916, 0
      %v2019 = vsel %vm681, %v1917, 0
      %v2022 = vsel %vm681, %v1918, 0
      %2024 = vmatprep.subr.mxu0 0.0
      %2025 = vmatpush1.msra.mxu0 0.0
      %2026 = vmatprep.subr.mxu0 0.0
      %2027 = vmatpush1.msra.mxu0 0.0
      %2028 = vmatprep.subr.mxu0 0.0
      %2029 = vmatpush1.msra.mxu0 0.0
      %2030 = vmatprep.subr.mxu0 0.0
      %2031 = vmatpush1.msra.mxu0 0.0
      %2032 = vmatprep.subr.mxu0 0.0
      %2033 = vmatpush1.msra.mxu0 0.0
      %2034 = vmatprep.subr.mxu0 0.0
      %2035 = vmatpush1.msra.mxu0 0.0
      %2036 = vmatprep.subr.mxu0 0.0
      %2037 = vmatpush1.msra.mxu0 0.0
      %2038 = vmatprep.subr.mxu0 0.0
      %2039 = vmatpush1.msra.mxu0 0.0
      %2040 = vmatprep.subr.mxu0 0.0
      %2041 = vmatpush1.msra.mxu0 %v1927
      %2042 = vmatprep.subr.mxu0 0.0
      %2043 = vmatpush1.msra.mxu0 %v1926
      %2044 = vmatprep.subr.mxu0 0.0
      %2045 = vmatpush1.msra.mxu0 %v1925
      %2046 = vmatprep.subr.mxu0 0.0
      %2047 = vmatpush1.msra.mxu0 %v1924
      %2048 = vmatprep.subr.mxu0 0.0
      %2049 = vmatpush1.msra.mxu0 %v1923
      %2050 = vmatprep.subr.mxu0 0.0
      %2051 = vmatpush1.msra.mxu0 %v1922
      %2052 = vmatprep.subr.mxu0 0.0
      %2053 = vmatpush1.msra.mxu0 %v1921
      %2054 = vmatprep.subr.mxu0 0.0
      %2055 = vmatpush1.msra.mxu0 %v1920
      %2056 = vmatprep.subr.mxu0 0.0
      %2057 = vmatpush2.msra.mxu0 0.0
      %2058 = vmatprep.subr.mxu0 0.0
      %2059 = vmatpush2.msra.mxu0 0.0
      %2060 = vmatprep.subr.mxu0 0.0
      %2061 = vmatpush2.msra.mxu0 0.0
      %2062 = vmatprep.subr.mxu0 0.0
      %2063 = vmatpush2.msra.mxu0 0.0
      %2064 = vmatprep.subr.mxu0 0.0
      %2065 = vmatpush2.msra.mxu0 0.0
      %2066 = vmatprep.subr.mxu0 0.0
      %2067 = vmatpush2.msra.mxu0 0.0
      %2068 = vmatprep.subr.mxu0 0.0
      %2069 = vmatpush2.msra.mxu0 0.0
      %2070 = vmatprep.subr.mxu0 0.0
      %2071 = vmatpush2.msra.mxu0 0.0
      %2072 = vmatprep.subr.mxu0 0.0
      %2073 = vmatpush2.msra.mxu0 0.0
      %2074 = vmatprep.subr.mxu0 0.0
      %2075 = vmatpush2.msra.mxu0 0.0
      %2076 = vmatprep.subr.mxu0 0.0
      %2077 = vmatpush2.msra.mxu0 0.0
      %2078 = vmatprep.subr.mxu0 0.0
      %2079 = vmatpush2.msra.mxu0 0.0
      %2080 = vmatprep.subr.mxu0 0.0
      %2081 = vmatpush2.msra.mxu0 0.0
      %2082 = vmatprep.subr.mxu0 0.0
      %2083 = vmatpush2.msra.mxu0 0.0
      %2084 = vmatprep.subr.mxu0 0.0
      %2085 = vmatpush2.msra.mxu0 0.0
      %2086 = vmatprep.subr.mxu0 0.0
      %2087 = vmatpush2.msra.mxu0 0.0
      %2088 = vmatprep.mubr.f32.mxu0 0.0
      %2089 = vmatmul.mubr.f32.gmra.mxu0 %v1929
      %v2090 = vpop.f32.mrf.mxu0
      %v2091 = vadd.f32 0.0, %v2090
      %v2092 = vpop.f32.mrf.mxu0
      %2093 = vmatprep.mubr.f32.mxu0 0.0
      %2094 = vmatmul.mubr.f32.gmra.mxu0 %v1932
      %v2095 = vpop.f32.mrf.mxu0
      %v2096 = vadd.f32 0.0, %v2095
      %v2097 = vpop.f32.mrf.mxu0
      %2098 = vmatprep.mubr.f32.mxu0 0.0
      %2099 = vmatmul.mubr.f32.gmra.mxu0 %v1935
      %v2100 = vpop.f32.mrf.mxu0
      %v2101 = vadd.f32 0.0, %v2100
      %v2102 = vpop.f32.mrf.mxu0
      %2103 = vmatprep.mubr.f32.mxu0 0.0
      %2104 = vmatmul.mubr.f32.gmra.mxu0 %v1938
      %v2105 = vpop.f32.mrf.mxu0
      %v2106 = vadd.f32 0.0, %v2105
      %v2107 = vpop.f32.mrf.mxu0
      %2108 = vmatprep.mubr.f32.mxu0 0.0
      %2109 = vmatmul.mubr.f32.gmra.mxu0 %v1941
      %v2110 = vpop.f32.mrf.mxu0
      %v2111 = vadd.f32 0.0, %v2110
      %v2112 = vpop.f32.mrf.mxu0
      %2113 = vmatprep.mubr.f32.mxu0 0.0
      %2114 = vmatmul.mubr.f32.gmra.mxu0 %v1944
      %v2115 = vpop.f32.mrf.mxu0
      %v2116 = vadd.f32 0.0, %v2115
      %v2117 = vpop.f32.mrf.mxu0
      %2118 = vmatprep.mubr.f32.mxu0 0.0
      %2119 = vmatmul.mubr.f32.gmra.mxu0 %v1947
      %v2120 = vpop.f32.mrf.mxu0
      %v2121 = vadd.f32 0.0, %v2120
      %v2122 = vpop.f32.mrf.mxu0
      %2123 = vmatprep.mubr.f32.mxu0 0.0
      %2124 = vmatmul.mubr.f32.gmra.mxu0 %v1950
      %v2125 = vpop.f32.mrf.mxu0
      %v2126 = vadd.f32 0.0, %v2125
      %v2127 = vpop.f32.mrf.mxu0
      %2128 = vmatprep.mubr.f32.mxu0 0.0
      %2129 = vmatmul.mubr.f32.gmra.mxu0 %v1953
      %v2130 = vpop.f32.mrf.mxu0
      %v2131 = vadd.f32 0.0, %v2130
      %v2132 = vpop.f32.mrf.mxu0
      %2133 = vmatprep.mubr.f32.mxu0 0.0
      %2134 = vmatmul.mubr.f32.gmra.mxu0 %v1956
      %v2135 = vpop.f32.mrf.mxu0
      %v2136 = vadd.f32 0.0, %v2135
      %v2137 = vpop.f32.mrf.mxu0
      %2138 = vmatprep.mubr.f32.mxu0 0.0
      %2139 = vmatmul.mubr.f32.gmra.mxu0 %v1959
      %v2140 = vpop.f32.mrf.mxu0
      %v2141 = vadd.f32 0.0, %v2140
      %v2142 = vpop.f32.mrf.mxu0
      %2143 = vmatprep.mubr.f32.mxu0 0.0
      %2144 = vmatmul.mubr.f32.gmra.mxu0 %v1962
      %v2145 = vpop.f32.mrf.mxu0
      %v2146 = vadd.f32 0.0, %v2145
      %v2147 = vpop.f32.mrf.mxu0
      %2148 = vmatprep.mubr.f32.mxu0 0.0
      %2149 = vmatmul.mubr.f32.gmra.mxu0 %v1965
      %v2150 = vpop.f32.mrf.mxu0
      %v2151 = vadd.f32 0.0, %v2150
      %v2152 = vpop.f32.mrf.mxu0
      %2153 = vmatprep.mubr.f32.mxu0 0.0
      %2154 = vmatmul.mubr.f32.gmra.mxu0 %v1968
      %v2155 = vpop.f32.mrf.mxu0
      %v2156 = vadd.f32 0.0, %v2155
      %v2157 = vpop.f32.mrf.mxu0
      %2158 = vmatprep.mubr.f32.mxu0 0.0
      %2159 = vmatmul.mubr.f32.gmra.mxu0 %v1971
      %v2160 = vpop.f32.mrf.mxu0
      %v2161 = vadd.f32 0.0, %v2160
      %v2162 = vpop.f32.mrf.mxu0
      %2163 = vmatprep.mubr.f32.mxu0 0.0
      %2164 = vmatmul.mubr.f32.gmra.mxu0 %v1974
      %v2165 = vpop.f32.mrf.mxu0
      %v2166 = vadd.f32 0.0, %v2165
      %v2167 = vpop.f32.mrf.mxu0
      %2168 = vmatprep.mubr.f32.mxu0 0.0
      %2169 = vmatmul.mubr.f32.gmra.mxu0 %v1977
      %v2170 = vpop.f32.mrf.mxu0
      %v2171 = vadd.f32 0.0, %v2170
      %v2172 = vpop.f32.mrf.mxu0
      %2173 = vmatprep.mubr.f32.mxu0 0.0
      %2174 = vmatmul.mubr.f32.gmra.mxu0 %v1980
      %v2175 = vpop.f32.mrf.mxu0
      %v2176 = vadd.f32 0.0, %v2175
      %v2177 = vpop.f32.mrf.mxu0
      %2178 = vmatprep.mubr.f32.mxu0 0.0
      %2179 = vmatmul.mubr.f32.gmra.mxu0 %v1983
      %v2180 = vpop.f32.mrf.mxu0
      %v2181 = vadd.f32 0.0, %v2180
      %v2182 = vpop.f32.mrf.mxu0
      %2183 = vmatprep.mubr.f32.mxu0 0.0
      %2184 = vmatmul.mubr.f32.gmra.mxu0 %v1986
      %v2185 = vpop.f32.mrf.mxu0
      %v2186 = vadd.f32 0.0, %v2185
      %v2187 = vpop.f32.mrf.mxu0
      %2188 = vmatprep.mubr.f32.mxu0 0.0
      %2189 = vmatmul.mubr.f32.gmra.mxu0 %v1989
      %v2190 = vpop.f32.mrf.mxu0
      %v2191 = vadd.f32 0.0, %v2190
      %v2192 = vpop.f32.mrf.mxu0
      %2193 = vmatprep.mubr.f32.mxu0 0.0
      %2194 = vmatmul.mubr.f32.gmra.mxu0 %v1992
      %v2195 = vpop.f32.mrf.mxu0
      %v2196 = vadd.f32 0.0, %v2195
      %v2197 = vpop.f32.mrf.mxu0
      %2198 = vmatprep.mubr.f32.mxu0 0.0
      %2199 = vmatmul.mubr.f32.gmra.mxu0 %v1995
      %v2200 = vpop.f32.mrf.mxu0
      %v2201 = vadd.f32 0.0, %v2200
      %v2202 = vpop.f32.mrf.mxu0
      %2203 = vmatprep.mubr.f32.mxu0 0.0
      %2204 = vmatmul.mubr.f32.gmra.mxu0 %v1998
      %v2205 = vpop.f32.mrf.mxu0
      %v2206 = vadd.f32 0.0, %v2205
      %v2207 = vpop.f32.mrf.mxu0
      %2208 = vmatprep.mubr.f32.mxu0 0.0
      %2209 = vmatmul.mubr.f32.gmra.mxu0 %v2001
      %v2210 = vpop.f32.mrf.mxu0
      %v2211 = vadd.f32 0.0, %v2210
      %v2212 = vpop.f32.mrf.mxu0
      %2213 = vmatprep.mubr.f32.mxu0 0.0
      %2214 = vmatmul.mubr.f32.gmra.mxu0 %v2004
      %v2215 = vpop.f32.mrf.mxu0
      %v2216 = vadd.f32 0.0, %v2215
      %v2217 = vpop.f32.mrf.mxu0
      %2218 = vmatprep.mubr.f32.mxu0 0.0
      %2219 = vmatmul.mubr.f32.gmra.mxu0 %v2007
      %v2220 = vpop.f32.mrf.mxu0
      %v2221 = vadd.f32 0.0, %v2220
      %v2222 = vpop.f32.mrf.mxu0
      %2223 = vmatprep.mubr.f32.mxu0 0.0
      %2224 = vmatmul.mubr.f32.gmra.mxu0 %v2010
      %v2225 = vpop.f32.mrf.mxu0
      %v2226 = vadd.f32 0.0, %v2225
      %v2227 = vpop.f32.mrf.mxu0
      %2228 = vmatprep.mubr.f32.mxu0 0.0
      %2229 = vmatmul.mubr.f32.gmra.mxu0 %v2013
      %v2230 = vpop.f32.mrf.mxu0
      %v2231 = vadd.f32 0.0, %v2230
      %v2232 = vpop.f32.mrf.mxu0
      %2233 = vmatprep.mubr.f32.mxu0 0.0
      %2234 = vmatmul.mubr.f32.gmra.mxu0 %v2016
      %v2235 = vpop.f32.mrf.mxu0
      %v2236 = vadd.f32 0.0, %v2235
      %v2237 = vpop.f32.mrf.mxu0
      %2238 = vmatprep.mubr.f32.mxu0 0.0
      %2239 = vmatmul.mubr.f32.gmra.mxu0 %v2019
      %v2240 = vpop.f32.mrf.mxu0
      %v2241 = vadd.f32 0.0, %v2240
      %v2242 = vpop.f32.mrf.mxu0
      %2243 = vmatprep.mubr.f32.mxu0 0.0
      %2244 = vmatmul.mubr.f32.gmra.mxu0 %v2022
      %v2245 = vpop.f32.mrf.mxu0
      %v2246 = vadd.f32 0.0, %v2245
      %v2247 = vpop.f32.mrf.mxu0
      %2248 = vdwg.mxu0
      %v2249 = vadd.f32 %v1855, %v2091
      %v2250 = vadd.f32 %v1856, %v2096
      %v2251 = vadd.f32 %v1857, %v2101
      %v2252 = vadd.f32 %v1858, %v2106
      %v2253 = vadd.f32 %v1859, %v2111
      %v2254 = vadd.f32 %v1860, %v2116
      %v2255 = vadd.f32 %v1861, %v2121
      %v2256 = vadd.f32 %v1862, %v2126
      %v2257 = vadd.f32 %v1863, %v2131
      %v2258 = vadd.f32 %v1864, %v2136
      %v2259 = vadd.f32 %v1865, %v2141
      %v2260 = vadd.f32 %v1866, %v2146
      %v2261 = vadd.f32 %v1867, %v2151
      %v2262 = vadd.f32 %v1868, %v2156
      %v2263 = vadd.f32 %v1869, %v2161
      %v2264 = vadd.f32 %v1870, %v2166
      %v2265 = vadd.f32 %v1871, %v2171
      %v2266 = vadd.f32 %v1872, %v2176
      %v2267 = vadd.f32 %v1873, %v2181
      %v2268 = vadd.f32 %v1874, %v2186
      %v2269 = vadd.f32 %v1875, %v2191
      %v2270 = vadd.f32 %v1876, %v2196
      %v2271 = vadd.f32 %v1877, %v2201
      %v2272 = vadd.f32 %v1878, %v2206
      %v2273 = vadd.f32 %v1879, %v2211
      %v2274 = vadd.f32 %v1880, %v2216
      %v2275 = vadd.f32 %v1881, %v2221
      %v2276 = vadd.f32 %v1882, %v2226
      %v2277 = vadd.f32 %v1883, %v2231
      %v2278 = vadd.f32 %v1884, %v2236
      %v2279 = vadd.f32 %v1885, %v2241
      %v2280 = vadd.f32 %v1886, %v2246
      %v2281 = vld [vmem:[%s737 + $0x1] sm:$0xff]
      %v2282 = vld [vmem:[%s737 + $0x9] sm:$0xff]
      %v2283 = vld [vmem:[%s737 + $0x19] sm:$0xff]
      %v2284 = vld [vmem:[%s737 + $0x21] sm:$0xff]
      %v2285 = vld [vmem:[%s737 + $0x31] sm:$0xff]
      %v2286 = vld [vmem:[%s737 + $0x39] sm:$0xff]
      %v2287 = vld [vmem:[%s737 + $0x49] sm:$0xff]
      %v2288 = vld [vmem:[%s737 + $0x51] sm:$0xff]
      %v2289 = vld [vmem:[%s737 + $0x61] sm:$0xff]
      %v2290 = vld [vmem:[%s737 + $0x69] sm:$0xff]
      %v2291 = vld [vmem:[%s737 + $0x79] sm:$0xff]
      %v2292 = vld [vmem:[%s737 + $0x81] sm:$0xff]
      %v2293 = vld [vmem:[%s737 + $0x91] sm:$0xff]
      %v2294 = vld [vmem:[%s737 + $0x99] sm:$0xff]
      %v2295 = vld [vmem:[%s737 + $0xa9] sm:$0xff]
      %v2296 = vld [vmem:[%s737 + $0xb1] sm:$0xff]
      %v2297 = vld [vmem:[%s737 + $0xc1] sm:$0xff]
      %v2298 = vld [vmem:[%s737 + $0xc9] sm:$0xff]
      %v2299 = vld [vmem:[%s737 + $0xd9] sm:$0xff]
      %v2300 = vld [vmem:[%s737 + $0xe1] sm:$0xff]
      %v2301 = vld [vmem:[%s737 + $0xf1] sm:$0xff]
      %v2302 = vld [vmem:[%s737 + $0xf9] sm:$0xff]
      %v2303 = vld [vmem:[%s737 + $0x109] sm:$0xff]
      %v2304 = vld [vmem:[%s737 + $0x111] sm:$0xff]
      %v2305 = vld [vmem:[%s737 + $0x121] sm:$0xff]
      %v2306 = vld [vmem:[%s737 + $0x129] sm:$0xff]
      %v2307 = vld [vmem:[%s737 + $0x139] sm:$0xff]
      %v2308 = vld [vmem:[%s737 + $0x141] sm:$0xff]
      %v2309 = vld [vmem:[%s737 + $0x151] sm:$0xff]
      %v2310 = vld [vmem:[%s737 + $0x159] sm:$0xff]
      %v2311 = vld [vmem:[%s737 + $0x169] sm:$0xff]
      %v2312 = vld [vmem:[%s737 + $0x171] sm:$0xff]
      %s2313 = scalar_lea.vmem %s3, 256
      %v2314 = vld [vmem:[%s2313] sm:$0xff]
      %v2315 = vld [vmem:[%s2313 + $0x8] sm:$0xff]
      %v2316 = vld [vmem:[%s2313 + $0x10] sm:$0xff]
      %v2317 = vld [vmem:[%s2313 + $0x18] sm:$0xff]
      %v2318 = vld [vmem:[%s2313 + $0x20] sm:$0xff]
      %v2319 = vld [vmem:[%s2313 + $0x28] sm:$0xff]
      %v2320 = vld [vmem:[%s2313 + $0x30] sm:$0xff]
      %v2321 = vld [vmem:[%s2313 + $0x38] sm:$0xff]
      %v2323 = vsel %vm681, %v2281, 0
      %v2326 = vsel %vm681, %v2282, 0
      %v2329 = vsel %vm681, %v2283, 0
      %v2332 = vsel %vm681, %v2284, 0
      %v2335 = vsel %vm681, %v2285, 0
      %v2338 = vsel %vm681, %v2286, 0
      %v2341 = vsel %vm681, %v2287, 0
      %v2344 = vsel %vm681, %v2288, 0
      %v2347 = vsel %vm681, %v2289, 0
      %v2350 = vsel %vm681, %v2290, 0
      %v2353 = vsel %vm681, %v2291, 0
      %v2356 = vsel %vm681, %v2292, 0
      %v2359 = vsel %vm681, %v2293, 0
      %v2362 = vsel %vm681, %v2294, 0
      %v2365 = vsel %vm681, %v2295, 0
      %v2368 = vsel %vm681, %v2296, 0
      %v2371 = vsel %vm681, %v2297, 0
      %v2374 = vsel %vm681, %v2298, 0
      %v2377 = vsel %vm681, %v2299, 0
      %v2380 = vsel %vm681, %v2300, 0
      %v2383 = vsel %vm681, %v2301, 0
      %v2386 = vsel %vm681, %v2302, 0
      %v2389 = vsel %vm681, %v2303, 0
      %v2392 = vsel %vm681, %v2304, 0
      %v2395 = vsel %vm681, %v2305, 0
      %v2398 = vsel %vm681, %v2306, 0
      %v2401 = vsel %vm681, %v2307, 0
      %v2404 = vsel %vm681, %v2308, 0
      %v2407 = vsel %vm681, %v2309, 0
      %v2410 = vsel %vm681, %v2310, 0
      %v2413 = vsel %vm681, %v2311, 0
      %v2416 = vsel %vm681, %v2312, 0
      %2418 = vmatprep.subr.mxu0 0.0
      %2419 = vmatpush1.msra.mxu0 0.0
      %2420 = vmatprep.subr.mxu0 0.0
      %2421 = vmatpush1.msra.mxu0 0.0
      %2422 = vmatprep.subr.mxu0 0.0
      %2423 = vmatpush1.msra.mxu0 0.0
      %2424 = vmatprep.subr.mxu0 0.0
      %2425 = vmatpush1.msra.mxu0 0.0
      %2426 = vmatprep.subr.mxu0 0.0
      %2427 = vmatpush1.msra.mxu0 0.0
      %2428 = vmatprep.subr.mxu0 0.0
      %2429 = vmatpush1.msra.mxu0 0.0
      %2430 = vmatprep.subr.mxu0 0.0
      %2431 = vmatpush1.msra.mxu0 0.0
      %2432 = vmatprep.subr.mxu0 0.0
      %2433 = vmatpush1.msra.mxu0 0.0
      %2434 = vmatprep.subr.mxu0 0.0
      %2435 = vmatpush1.msra.mxu0 %v2321
      %2436 = vmatprep.subr.mxu0 0.0
      %2437 = vmatpush1.msra.mxu0 %v2320
      %2438 = vmatprep.subr.mxu0 0.0
      %2439 = vmatpush1.msra.mxu0 %v2319
      %2440 = vmatprep.subr.mxu0 0.0
      %2441 = vmatpush1.msra.mxu0 %v2318
      %2442 = vmatprep.subr.mxu0 0.0
      %2443 = vmatpush1.msra.mxu0 %v2317
      %2444 = vmatprep.subr.mxu0 0.0
      %2445 = vmatpush1.msra.mxu0 %v2316
      %2446 = vmatprep.subr.mxu0 0.0
      %2447 = vmatpush1.msra.mxu0 %v2315
      %2448 = vmatprep.subr.mxu0 0.0
      %2449 = vmatpush1.msra.mxu0 %v2314
      %2450 = vmatprep.subr.mxu0 0.0
      %2451 = vmatpush2.msra.mxu0 0.0
      %2452 = vmatprep.subr.mxu0 0.0
      %2453 = vmatpush2.msra.mxu0 0.0
      %2454 = vmatprep.subr.mxu0 0.0
      %2455 = vmatpush2.msra.mxu0 0.0
      %2456 = vmatprep.subr.mxu0 0.0
      %2457 = vmatpush2.msra.mxu0 0.0
      %2458 = vmatprep.subr.mxu0 0.0
      %2459 = vmatpush2.msra.mxu0 0.0
      %2460 = vmatprep.subr.mxu0 0.0
      %2461 = vmatpush2.msra.mxu0 0.0
      %2462 = vmatprep.subr.mxu0 0.0
      %2463 = vmatpush2.msra.mxu0 0.0
      %2464 = vmatprep.subr.mxu0 0.0
      %2465 = vmatpush2.msra.mxu0 0.0
      %2466 = vmatprep.subr.mxu0 0.0
      %2467 = vmatpush2.msra.mxu0 0.0
      %2468 = vmatprep.subr.mxu0 0.0
      %2469 = vmatpush2.msra.mxu0 0.0
      %2470 = vmatprep.subr.mxu0 0.0
      %2471 = vmatpush2.msra.mxu0 0.0
      %2472 = vmatprep.subr.mxu0 0.0
      %2473 = vmatpush2.msra.mxu0 0.0
      %2474 = vmatprep.subr.mxu0 0.0
      %2475 = vmatpush2.msra.mxu0 0.0
      %2476 = vmatprep.subr.mxu0 0.0
      %2477 = vmatpush2.msra.mxu0 0.0
      %2478 = vmatprep.subr.mxu0 0.0
      %2479 = vmatpush2.msra.mxu0 0.0
      %2480 = vmatprep.subr.mxu0 0.0
      %2481 = vmatpush2.msra.mxu0 0.0
      %2482 = vmatprep.mubr.f32.mxu0 0.0
      %2483 = vmatmul.mubr.f32.gmra.mxu0 %v2323
      %v2484 = vpop.f32.mrf.mxu0
      %v2485 = vadd.f32 0.0, %v2484
      %v2486 = vpop.f32.mrf.mxu0
      %2487 = vmatprep.mubr.f32.mxu0 0.0
      %2488 = vmatmul.mubr.f32.gmra.mxu0 %v2326
      %v2489 = vpop.f32.mrf.mxu0
      %v2490 = vadd.f32 0.0, %v2489
      %v2491 = vpop.f32.mrf.mxu0
      %2492 = vmatprep.mubr.f32.mxu0 0.0
      %2493 = vmatmul.mubr.f32.gmra.mxu0 %v2329
      %v2494 = vpop.f32.mrf.mxu0
      %v2495 = vadd.f32 0.0, %v2494
      %v2496 = vpop.f32.mrf.mxu0
      %2497 = vmatprep.mubr.f32.mxu0 0.0
      %2498 = vmatmul.mubr.f32.gmra.mxu0 %v2332
      %v2499 = vpop.f32.mrf.mxu0
      %v2500 = vadd.f32 0.0, %v2499
      %v2501 = vpop.f32.mrf.mxu0
      %2502 = vmatprep.mubr.f32.mxu0 0.0
      %2503 = vmatmul.mubr.f32.gmra.mxu0 %v2335
      %v2504 = vpop.f32.mrf.mxu0
      %v2505 = vadd.f32 0.0, %v2504
      %v2506 = vpop.f32.mrf.mxu0
      %2507 = vmatprep.mubr.f32.mxu0 0.0
      %2508 = vmatmul.mubr.f32.gmra.mxu0 %v2338
      %v2509 = vpop.f32.mrf.mxu0
      %v2510 = vadd.f32 0.0, %v2509
      %v2511 = vpop.f32.mrf.mxu0
      %2512 = vmatprep.mubr.f32.mxu0 0.0
      %2513 = vmatmul.mubr.f32.gmra.mxu0 %v2341
      %v2514 = vpop.f32.mrf.mxu0
      %v2515 = vadd.f32 0.0, %v2514
      %v2516 = vpop.f32.mrf.mxu0
      %2517 = vmatprep.mubr.f32.mxu0 0.0
      %2518 = vmatmul.mubr.f32.gmra.mxu0 %v2344
      %v2519 = vpop.f32.mrf.mxu0
      %v2520 = vadd.f32 0.0, %v2519
      %v2521 = vpop.f32.mrf.mxu0
      %2522 = vmatprep.mubr.f32.mxu0 0.0
      %2523 = vmatmul.mubr.f32.gmra.mxu0 %v2347
      %v2524 = vpop.f32.mrf.mxu0
      %v2525 = vadd.f32 0.0, %v2524
      %v2526 = vpop.f32.mrf.mxu0
      %2527 = vmatprep.mubr.f32.mxu0 0.0
      %2528 = vmatmul.mubr.f32.gmra.mxu0 %v2350
      %v2529 = vpop.f32.mrf.mxu0
      %v2530 = vadd.f32 0.0, %v2529
      %v2531 = vpop.f32.mrf.mxu0
      %2532 = vmatprep.mubr.f32.mxu0 0.0
      %2533 = vmatmul.mubr.f32.gmra.mxu0 %v2353
      %v2534 = vpop.f32.mrf.mxu0
      %v2535 = vadd.f32 0.0, %v2534
      %v2536 = vpop.f32.mrf.mxu0
      %2537 = vmatprep.mubr.f32.mxu0 0.0
      %2538 = vmatmul.mubr.f32.gmra.mxu0 %v2356
      %v2539 = vpop.f32.mrf.mxu0
      %v2540 = vadd.f32 0.0, %v2539
      %v2541 = vpop.f32.mrf.mxu0
      %2542 = vmatprep.mubr.f32.mxu0 0.0
      %2543 = vmatmul.mubr.f32.gmra.mxu0 %v2359
      %v2544 = vpop.f32.mrf.mxu0
      %v2545 = vadd.f32 0.0, %v2544
      %v2546 = vpop.f32.mrf.mxu0
      %2547 = vmatprep.mubr.f32.mxu0 0.0
      %2548 = vmatmul.mubr.f32.gmra.mxu0 %v2362
      %v2549 = vpop.f32.mrf.mxu0
      %v2550 = vadd.f32 0.0, %v2549
      %v2551 = vpop.f32.mrf.mxu0
      %2552 = vmatprep.mubr.f32.mxu0 0.0
      %2553 = vmatmul.mubr.f32.gmra.mxu0 %v2365
      %v2554 = vpop.f32.mrf.mxu0
      %v2555 = vadd.f32 0.0, %v2554
      %v2556 = vpop.f32.mrf.mxu0
      %2557 = vmatprep.mubr.f32.mxu0 0.0
      %2558 = vmatmul.mubr.f32.gmra.mxu0 %v2368
      %v2559 = vpop.f32.mrf.mxu0
      %v2560 = vadd.f32 0.0, %v2559
      %v2561 = vpop.f32.mrf.mxu0
      %2562 = vmatprep.mubr.f32.mxu0 0.0
      %2563 = vmatmul.mubr.f32.gmra.mxu0 %v2371
      %v2564 = vpop.f32.mrf.mxu0
      %v2565 = vadd.f32 0.0, %v2564
      %v2566 = vpop.f32.mrf.mxu0
      %2567 = vmatprep.mubr.f32.mxu0 0.0
      %2568 = vmatmul.mubr.f32.gmra.mxu0 %v2374
      %v2569 = vpop.f32.mrf.mxu0
      %v2570 = vadd.f32 0.0, %v2569
      %v2571 = vpop.f32.mrf.mxu0
      %2572 = vmatprep.mubr.f32.mxu0 0.0
      %2573 = vmatmul.mubr.f32.gmra.mxu0 %v2377
      %v2574 = vpop.f32.mrf.mxu0
      %v2575 = vadd.f32 0.0, %v2574
      %v2576 = vpop.f32.mrf.mxu0
      %2577 = vmatprep.mubr.f32.mxu0 0.0
      %2578 = vmatmul.mubr.f32.gmra.mxu0 %v2380
      %v2579 = vpop.f32.mrf.mxu0
      %v2580 = vadd.f32 0.0, %v2579
      %v2581 = vpop.f32.mrf.mxu0
      %2582 = vmatprep.mubr.f32.mxu0 0.0
      %2583 = vmatmul.mubr.f32.gmra.mxu0 %v2383
      %v2584 = vpop.f32.mrf.mxu0
      %v2585 = vadd.f32 0.0, %v2584
      %v2586 = vpop.f32.mrf.mxu0
      %2587 = vmatprep.mubr.f32.mxu0 0.0
      %2588 = vmatmul.mubr.f32.gmra.mxu0 %v2386
      %v2589 = vpop.f32.mrf.mxu0
      %v2590 = vadd.f32 0.0, %v2589
      %v2591 = vpop.f32.mrf.mxu0
      %2592 = vmatprep.mubr.f32.mxu0 0.0
      %2593 = vmatmul.mubr.f32.gmra.mxu0 %v2389
      %v2594 = vpop.f32.mrf.mxu0
      %v2595 = vadd.f32 0.0, %v2594
      %v2596 = vpop.f32.mrf.mxu0
      %2597 = vmatprep.mubr.f32.mxu0 0.0
      %2598 = vmatmul.mubr.f32.gmra.mxu0 %v2392
      %v2599 = vpop.f32.mrf.mxu0
      %v2600 = vadd.f32 0.0, %v2599
      %v2601 = vpop.f32.mrf.mxu0
      %2602 = vmatprep.mubr.f32.mxu0 0.0
      %2603 = vmatmul.mubr.f32.gmra.mxu0 %v2395
      %v2604 = vpop.f32.mrf.mxu0
      %v2605 = vadd.f32 0.0, %v2604
      %v2606 = vpop.f32.mrf.mxu0
      %2607 = vmatprep.mubr.f32.mxu0 0.0
      %2608 = vmatmul.mubr.f32.gmra.mxu0 %v2398
      %v2609 = vpop.f32.mrf.mxu0
      %v2610 = vadd.f32 0.0, %v2609
      %v2611 = vpop.f32.mrf.mxu0
      %2612 = vmatprep.mubr.f32.mxu0 0.0
      %2613 = vmatmul.mubr.f32.gmra.mxu0 %v2401
      %v2614 = vpop.f32.mrf.mxu0
      %v2615 = vadd.f32 0.0, %v2614
      %v2616 = vpop.f32.mrf.mxu0
      %2617 = vmatprep.mubr.f32.mxu0 0.0
      %2618 = vmatmul.mubr.f32.gmra.mxu0 %v2404
      %v2619 = vpop.f32.mrf.mxu0
      %v2620 = vadd.f32 0.0, %v2619
      %v2621 = vpop.f32.mrf.mxu0
      %2622 = vmatprep.mubr.f32.mxu0 0.0
      %2623 = vmatmul.mubr.f32.gmra.mxu0 %v2407
      %v2624 = vpop.f32.mrf.mxu0
      %v2625 = vadd.f32 0.0, %v2624
      %v2626 = vpop.f32.mrf.mxu0
      %2627 = vmatprep.mubr.f32.mxu0 0.0
      %2628 = vmatmul.mubr.f32.gmra.mxu0 %v2410
      %v2629 = vpop.f32.mrf.mxu0
      %v2630 = vadd.f32 0.0, %v2629
      %v2631 = vpop.f32.mrf.mxu0
      %2632 = vmatprep.mubr.f32.mxu0 0.0
      %2633 = vmatmul.mubr.f32.gmra.mxu0 %v2413
      %v2634 = vpop.f32.mrf.mxu0
      %v2635 = vadd.f32 0.0, %v2634
      %v2636 = vpop.f32.mrf.mxu0
      %2637 = vmatprep.mubr.f32.mxu0 0.0
      %2638 = vmatmul.mubr.f32.gmra.mxu0 %v2416
      %v2639 = vpop.f32.mrf.mxu0
      %v2640 = vadd.f32 0.0, %v2639
      %v2641 = vpop.f32.mrf.mxu0
      %2642 = vdwg.mxu0
      %v2643 = vadd.f32 %v2249, %v2485
      %v2644 = vadd.f32 %v2250, %v2490
      %v2645 = vadd.f32 %v2251, %v2495
      %v2646 = vadd.f32 %v2252, %v2500
      %v2647 = vadd.f32 %v2253, %v2505
      %v2648 = vadd.f32 %v2254, %v2510
      %v2649 = vadd.f32 %v2255, %v2515
      %v2650 = vadd.f32 %v2256, %v2520
      %v2651 = vadd.f32 %v2257, %v2525
      %v2652 = vadd.f32 %v2258, %v2530
      %v2653 = vadd.f32 %v2259, %v2535
      %v2654 = vadd.f32 %v2260, %v2540
      %v2655 = vadd.f32 %v2261, %v2545
      %v2656 = vadd.f32 %v2262, %v2550
      %v2657 = vadd.f32 %v2263, %v2555
      %v2658 = vadd.f32 %v2264, %v2560
      %v2659 = vadd.f32 %v2265, %v2565
      %v2660 = vadd.f32 %v2266, %v2570
      %v2661 = vadd.f32 %v2267, %v2575
      %v2662 = vadd.f32 %v2268, %v2580
      %v2663 = vadd.f32 %v2269, %v2585
      %v2664 = vadd.f32 %v2270, %v2590
      %v2665 = vadd.f32 %v2271, %v2595
      %v2666 = vadd.f32 %v2272, %v2600
      %v2667 = vadd.f32 %v2273, %v2605
      %v2668 = vadd.f32 %v2274, %v2610
      %v2669 = vadd.f32 %v2275, %v2615
      %v2670 = vadd.f32 %v2276, %v2620
      %v2671 = vadd.f32 %v2277, %v2625
      %v2672 = vadd.f32 %v2278, %v2630
      %v2673 = vadd.f32 %v2279, %v2635
      %v2674 = vadd.f32 %v2280, %v2640
      %v2675 = vld [vmem:[%s737 + $0x2] sm:$0xff]
      %v2676 = vld [vmem:[%s737 + $0xa] sm:$0xff]
      %v2677 = vld [vmem:[%s737 + $0x1a] sm:$0xff]
      %v2678 = vld [vmem:[%s737 + $0x22] sm:$0xff]
      %v2679 = vld [vmem:[%s737 + $0x32] sm:$0xff]
      %v2680 = vld [vmem:[%s737 + $0x3a] sm:$0xff]
      %v2681 = vld [vmem:[%s737 + $0x4a] sm:$0xff]
      %v2682 = vld [vmem:[%s737 + $0x52] sm:$0xff]
      %v2683 = vld [vmem:[%s737 + $0x62] sm:$0xff]
      %v2684 = vld [vmem:[%s737 + $0x6a] sm:$0xff]
      %v2685 = vld [vmem:[%s737 + $0x7a] sm:$0xff]
      %v2686 = vld [vmem:[%s737 + $0x82] sm:$0xff]
      %v2687 = vld [vmem:[%s737 + $0x92] sm:$0xff]
      %v2688 = vld [vmem:[%s737 + $0x9a] sm:$0xff]
      %v2689 = vld [vmem:[%s737 + $0xaa] sm:$0xff]
      %v2690 = vld [vmem:[%s737 + $0xb2] sm:$0xff]
      %v2691 = vld [vmem:[%s737 + $0xc2] sm:$0xff]
      %v2692 = vld [vmem:[%s737 + $0xca] sm:$0xff]
      %v2693 = vld [vmem:[%s737 + $0xda] sm:$0xff]
      %v2694 = vld [vmem:[%s737 + $0xe2] sm:$0xff]
      %v2695 = vld [vmem:[%s737 + $0xf2] sm:$0xff]
      %v2696 = vld [vmem:[%s737 + $0xfa] sm:$0xff]
      %v2697 = vld [vmem:[%s737 + $0x10a] sm:$0xff]
      %v2698 = vld [vmem:[%s737 + $0x112] sm:$0xff]
      %v2699 = vld [vmem:[%s737 + $0x122] sm:$0xff]
      %v2700 = vld [vmem:[%s737 + $0x12a] sm:$0xff]
      %v2701 = vld [vmem:[%s737 + $0x13a] sm:$0xff]
      %v2702 = vld [vmem:[%s737 + $0x142] sm:$0xff]
      %v2703 = vld [vmem:[%s737 + $0x152] sm:$0xff]
      %v2704 = vld [vmem:[%s737 + $0x15a] sm:$0xff]
      %v2705 = vld [vmem:[%s737 + $0x16a] sm:$0xff]
      %v2706 = vld [vmem:[%s737 + $0x172] sm:$0xff]
      %s2707 = scalar_lea.vmem %s3, 320
      %v2708 = vld [vmem:[%s2707] sm:$0xff]
      %v2709 = vld [vmem:[%s2707 + $0x8] sm:$0xff]
      %v2710 = vld [vmem:[%s2707 + $0x10] sm:$0xff]
      %v2711 = vld [vmem:[%s2707 + $0x18] sm:$0xff]
      %v2712 = vld [vmem:[%s2707 + $0x20] sm:$0xff]
      %v2713 = vld [vmem:[%s2707 + $0x28] sm:$0xff]
      %v2714 = vld [vmem:[%s2707 + $0x30] sm:$0xff]
      %v2715 = vld [vmem:[%s2707 + $0x38] sm:$0xff]
      %v2717 = vsel %vm681, %v2675, 0
      %v2720 = vsel %vm681, %v2676, 0
      %v2723 = vsel %vm681, %v2677, 0
      %v2726 = vsel %vm681, %v2678, 0
      %v2729 = vsel %vm681, %v2679, 0
      %v2732 = vsel %vm681, %v2680, 0
      %v2735 = vsel %vm681, %v2681, 0
      %v2738 = vsel %vm681, %v2682, 0
      %v2741 = vsel %vm681, %v2683, 0
      %v2744 = vsel %vm681, %v2684, 0
      %v2747 = vsel %vm681, %v2685, 0
      %v2750 = vsel %vm681, %v2686, 0
      %v2753 = vsel %vm681, %v2687, 0
      %v2756 = vsel %vm681, %v2688, 0
      %v2759 = vsel %vm681, %v2689, 0
      %v2762 = vsel %vm681, %v2690, 0
      %v2765 = vsel %vm681, %v2691, 0
      %v2768 = vsel %vm681, %v2692, 0
      %v2771 = vsel %vm681, %v2693, 0
      %v2774 = vsel %vm681, %v2694, 0
      %v2777 = vsel %vm681, %v2695, 0
      %v2780 = vsel %vm681, %v2696, 0
      %v2783 = vsel %vm681, %v2697, 0
      %v2786 = vsel %vm681, %v2698, 0
      %v2789 = vsel %vm681, %v2699, 0
      %v2792 = vsel %vm681, %v2700, 0
      %v2795 = vsel %vm681, %v2701, 0
      %v2798 = vsel %vm681, %v2702, 0
      %v2801 = vsel %vm681, %v2703, 0
      %v2804 = vsel %vm681, %v2704, 0
      %v2807 = vsel %vm681, %v2705, 0
      %v2810 = vsel %vm681, %v2706, 0
      %2812 = vmatprep.subr.mxu0 0.0
      %2813 = vmatpush1.msra.mxu0 0.0
      %2814 = vmatprep.subr.mxu0 0.0
      %2815 = vmatpush1.msra.mxu0 0.0
      %2816 = vmatprep.subr.mxu0 0.0
      %2817 = vmatpush1.msra.mxu0 0.0
      %2818 = vmatprep.subr.mxu0 0.0
      %2819 = vmatpush1.msra.mxu0 0.0
      %2820 = vmatprep.subr.mxu0 0.0
      %2821 = vmatpush1.msra.mxu0 0.0
      %2822 = vmatprep.subr.mxu0 0.0
      %2823 = vmatpush1.msra.mxu0 0.0
      %2824 = vmatprep.subr.mxu0 0.0
      %2825 = vmatpush1.msra.mxu0 0.0
      %2826 = vmatprep.subr.mxu0 0.0
      %2827 = vmatpush1.msra.mxu0 0.0
      %2828 = vmatprep.subr.mxu0 0.0
      %2829 = vmatpush1.msra.mxu0 %v2715
      %2830 = vmatprep.subr.mxu0 0.0
      %2831 = vmatpush1.msra.mxu0 %v2714
      %2832 = vmatprep.subr.mxu0 0.0
      %2833 = vmatpush1.msra.mxu0 %v2713
      %2834 = vmatprep.subr.mxu0 0.0
      %2835 = vmatpush1.msra.mxu0 %v2712
      %2836 = vmatprep.subr.mxu0 0.0
      %2837 = vmatpush1.msra.mxu0 %v2711
      %2838 = vmatprep.subr.mxu0 0.0
      %2839 = vmatpush1.msra.mxu0 %v2710
      %2840 = vmatprep.subr.mxu0 0.0
      %2841 = vmatpush1.msra.mxu0 %v2709
      %2842 = vmatprep.subr.mxu0 0.0
      %2843 = vmatpush1.msra.mxu0 %v2708
      %2844 = vmatprep.subr.mxu0 0.0
      %2845 = vmatpush2.msra.mxu0 0.0
      %2846 = vmatprep.subr.mxu0 0.0
      %2847 = vmatpush2.msra.mxu0 0.0
      %2848 = vmatprep.subr.mxu0 0.0
      %2849 = vmatpush2.msra.mxu0 0.0
      %2850 = vmatprep.subr.mxu0 0.0
      %2851 = vmatpush2.msra.mxu0 0.0
      %2852 = vmatprep.subr.mxu0 0.0
      %2853 = vmatpush2.msra.mxu0 0.0
      %2854 = vmatprep.subr.mxu0 0.0
      %2855 = vmatpush2.msra.mxu0 0.0
      %2856 = vmatprep.subr.mxu0 0.0
      %2857 = vmatpush2.msra.mxu0 0.0
      %2858 = vmatprep.subr.mxu0 0.0
      %2859 = vmatpush2.msra.mxu0 0.0
      %2860 = vmatprep.subr.mxu0 0.0
      %2861 = vmatpush2.msra.mxu0 0.0
      %2862 = vmatprep.subr.mxu0 0.0
      %2863 = vmatpush2.msra.mxu0 0.0
      %2864 = vmatprep.subr.mxu0 0.0
      %2865 = vmatpush2.msra.mxu0 0.0
      %2866 = vmatprep.subr.mxu0 0.0
      %2867 = vmatpush2.msra.mxu0 0.0
      %2868 = vmatprep.subr.mxu0 0.0
      %2869 = vmatpush2.msra.mxu0 0.0
      %2870 = vmatprep.subr.mxu0 0.0
      %2871 = vmatpush2.msra.mxu0 0.0
      %2872 = vmatprep.subr.mxu0 0.0
      %2873 = vmatpush2.msra.mxu0 0.0
      %2874 = vmatprep.subr.mxu0 0.0
      %2875 = vmatpush2.msra.mxu0 0.0
      %2876 = vmatprep.mubr.f32.mxu0 0.0
      %2877 = vmatmul.mubr.f32.gmra.mxu0 %v2717
      %v2878 = vpop.f32.mrf.mxu0
      %v2879 = vadd.f32 0.0, %v2878
      %v2880 = vpop.f32.mrf.mxu0
      %2881 = vmatprep.mubr.f32.mxu0 0.0
      %2882 = vmatmul.mubr.f32.gmra.mxu0 %v2720
      %v2883 = vpop.f32.mrf.mxu0
      %v2884 = vadd.f32 0.0, %v2883
      %v2885 = vpop.f32.mrf.mxu0
      %2886 = vmatprep.mubr.f32.mxu0 0.0
      %2887 = vmatmul.mubr.f32.gmra.mxu0 %v2723
      %v2888 = vpop.f32.mrf.mxu0
      %v2889 = vadd.f32 0.0, %v2888
      %v2890 = vpop.f32.mrf.mxu0
      %2891 = vmatprep.mubr.f32.mxu0 0.0
      %2892 = vmatmul.mubr.f32.gmra.mxu0 %v2726
      %v2893 = vpop.f32.mrf.mxu0
      %v2894 = vadd.f32 0.0, %v2893
      %v2895 = vpop.f32.mrf.mxu0
      %2896 = vmatprep.mubr.f32.mxu0 0.0
      %2897 = vmatmul.mubr.f32.gmra.mxu0 %v2729
      %v2898 = vpop.f32.mrf.mxu0
      %v2899 = vadd.f32 0.0, %v2898
      %v2900 = vpop.f32.mrf.mxu0
      %2901 = vmatprep.mubr.f32.mxu0 0.0
      %2902 = vmatmul.mubr.f32.gmra.mxu0 %v2732
      %v2903 = vpop.f32.mrf.mxu0
      %v2904 = vadd.f32 0.0, %v2903
      %v2905 = vpop.f32.mrf.mxu0
      %2906 = vmatprep.mubr.f32.mxu0 0.0
      %2907 = vmatmul.mubr.f32.gmra.mxu0 %v2735
      %v2908 = vpop.f32.mrf.mxu0
      %v2909 = vadd.f32 0.0, %v2908
      %v2910 = vpop.f32.mrf.mxu0
      %2911 = vmatprep.mubr.f32.mxu0 0.0
      %2912 = vmatmul.mubr.f32.gmra.mxu0 %v2738
      %v2913 = vpop.f32.mrf.mxu0
      %v2914 = vadd.f32 0.0, %v2913
      %v2915 = vpop.f32.mrf.mxu0
      %2916 = vmatprep.mubr.f32.mxu0 0.0
      %2917 = vmatmul.mubr.f32.gmra.mxu0 %v2741
      %v2918 = vpop.f32.mrf.mxu0
      %v2919 = vadd.f32 0.0, %v2918
      %v2920 = vpop.f32.mrf.mxu0
      %2921 = vmatprep.mubr.f32.mxu0 0.0
      %2922 = vmatmul.mubr.f32.gmra.mxu0 %v2744
      %v2923 = vpop.f32.mrf.mxu0
      %v2924 = vadd.f32 0.0, %v2923
      %v2925 = vpop.f32.mrf.mxu0
      %2926 = vmatprep.mubr.f32.mxu0 0.0
      %2927 = vmatmul.mubr.f32.gmra.mxu0 %v2747
      %v2928 = vpop.f32.mrf.mxu0
      %v2929 = vadd.f32 0.0, %v2928
      %v2930 = vpop.f32.mrf.mxu0
      %2931 = vmatprep.mubr.f32.mxu0 0.0
      %2932 = vmatmul.mubr.f32.gmra.mxu0 %v2750
      %v2933 = vpop.f32.mrf.mxu0
      %v2934 = vadd.f32 0.0, %v2933
      %v2935 = vpop.f32.mrf.mxu0
      %2936 = vmatprep.mubr.f32.mxu0 0.0
      %2937 = vmatmul.mubr.f32.gmra.mxu0 %v2753
      %v2938 = vpop.f32.mrf.mxu0
      %v2939 = vadd.f32 0.0, %v2938
      %v2940 = vpop.f32.mrf.mxu0
      %2941 = vmatprep.mubr.f32.mxu0 0.0
      %2942 = vmatmul.mubr.f32.gmra.mxu0 %v2756
      %v2943 = vpop.f32.mrf.mxu0
      %v2944 = vadd.f32 0.0, %v2943
      %v2945 = vpop.f32.mrf.mxu0
      %2946 = vmatprep.mubr.f32.mxu0 0.0
      %2947 = vmatmul.mubr.f32.gmra.mxu0 %v2759
      %v2948 = vpop.f32.mrf.mxu0
      %v2949 = vadd.f32 0.0, %v2948
      %v2950 = vpop.f32.mrf.mxu0
      %2951 = vmatprep.mubr.f32.mxu0 0.0
      %2952 = vmatmul.mubr.f32.gmra.mxu0 %v2762
      %v2953 = vpop.f32.mrf.mxu0
      %v2954 = vadd.f32 0.0, %v2953
      %v2955 = vpop.f32.mrf.mxu0
      %2956 = vmatprep.mubr.f32.mxu0 0.0
      %2957 = vmatmul.mubr.f32.gmra.mxu0 %v2765
      %v2958 = vpop.f32.mrf.mxu0
      %v2959 = vadd.f32 0.0, %v2958
      %v2960 = vpop.f32.mrf.mxu0
      %2961 = vmatprep.mubr.f32.mxu0 0.0
      %2962 = vmatmul.mubr.f32.gmra.mxu0 %v2768
      %v2963 = vpop.f32.mrf.mxu0
      %v2964 = vadd.f32 0.0, %v2963
      %v2965 = vpop.f32.mrf.mxu0
      %2966 = vmatprep.mubr.f32.mxu0 0.0
      %2967 = vmatmul.mubr.f32.gmra.mxu0 %v2771
      %v2968 = vpop.f32.mrf.mxu0
      %v2969 = vadd.f32 0.0, %v2968
      %v2970 = vpop.f32.mrf.mxu0
      %2971 = vmatprep.mubr.f32.mxu0 0.0
      %2972 = vmatmul.mubr.f32.gmra.mxu0 %v2774
      %v2973 = vpop.f32.mrf.mxu0
      %v2974 = vadd.f32 0.0, %v2973
      %v2975 = vpop.f32.mrf.mxu0
      %2976 = vmatprep.mubr.f32.mxu0 0.0
      %2977 = vmatmul.mubr.f32.gmra.mxu0 %v2777
      %v2978 = vpop.f32.mrf.mxu0
      %v2979 = vadd.f32 0.0, %v2978
      %v2980 = vpop.f32.mrf.mxu0
      %2981 = vmatprep.mubr.f32.mxu0 0.0
      %2982 = vmatmul.mubr.f32.gmra.mxu0 %v2780
      %v2983 = vpop.f32.mrf.mxu0
      %v2984 = vadd.f32 0.0, %v2983
      %v2985 = vpop.f32.mrf.mxu0
      %2986 = vmatprep.mubr.f32.mxu0 0.0
      %2987 = vmatmul.mubr.f32.gmra.mxu0 %v2783
      %v2988 = vpop.f32.mrf.mxu0
      %v2989 = vadd.f32 0.0, %v2988
      %v2990 = vpop.f32.mrf.mxu0
      %2991 = vmatprep.mubr.f32.mxu0 0.0
      %2992 = vmatmul.mubr.f32.gmra.mxu0 %v2786
      %v2993 = vpop.f32.mrf.mxu0
      %v2994 = vadd.f32 0.0, %v2993
      %v2995 = vpop.f32.mrf.mxu0
      %2996 = vmatprep.mubr.f32.mxu0 0.0
      %2997 = vmatmul.mubr.f32.gmra.mxu0 %v2789
      %v2998 = vpop.f32.mrf.mxu0
      %v2999 = vadd.f32 0.0, %v2998
      %v3000 = vpop.f32.mrf.mxu0
      %3001 = vmatprep.mubr.f32.mxu0 0.0
      %3002 = vmatmul.mubr.f32.gmra.mxu0 %v2792
      %v3003 = vpop.f32.mrf.mxu0
      %v3004 = vadd.f32 0.0, %v3003
      %v3005 = vpop.f32.mrf.mxu0
      %3006 = vmatprep.mubr.f32.mxu0 0.0
      %3007 = vmatmul.mubr.f32.gmra.mxu0 %v2795
      %v3008 = vpop.f32.mrf.mxu0
      %v3009 = vadd.f32 0.0, %v3008
      %v3010 = vpop.f32.mrf.mxu0
      %3011 = vmatprep.mubr.f32.mxu0 0.0
      %3012 = vmatmul.mubr.f32.gmra.mxu0 %v2798
      %v3013 = vpop.f32.mrf.mxu0
      %v3014 = vadd.f32 0.0, %v3013
      %v3015 = vpop.f32.mrf.mxu0
      %3016 = vmatprep.mubr.f32.mxu0 0.0
      %3017 = vmatmul.mubr.f32.gmra.mxu0 %v2801
      %v3018 = vpop.f32.mrf.mxu0
      %v3019 = vadd.f32 0.0, %v3018
      %v3020 = vpop.f32.mrf.mxu0
      %3021 = vmatprep.mubr.f32.mxu0 0.0
      %3022 = vmatmul.mubr.f32.gmra.mxu0 %v2804
      %v3023 = vpop.f32.mrf.mxu0
      %v3024 = vadd.f32 0.0, %v3023
      %v3025 = vpop.f32.mrf.mxu0
      %3026 = vmatprep.mubr.f32.mxu0 0.0
      %3027 = vmatmul.mubr.f32.gmra.mxu0 %v2807
      %v3028 = vpop.f32.mrf.mxu0
      %v3029 = vadd.f32 0.0, %v3028
      %v3030 = vpop.f32.mrf.mxu0
      %3031 = vmatprep.mubr.f32.mxu0 0.0
      %3032 = vmatmul.mubr.f32.gmra.mxu0 %v2810
      %v3033 = vpop.f32.mrf.mxu0
      %v3034 = vadd.f32 0.0, %v3033
      %v3035 = vpop.f32.mrf.mxu0
      %3036 = vdwg.mxu0
      %v3037 = vadd.f32 %v2643, %v2879
      %v3038 = vadd.f32 %v2644, %v2884
      %v3039 = vadd.f32 %v2645, %v2889
      %v3040 = vadd.f32 %v2646, %v2894
      %v3041 = vadd.f32 %v2647, %v2899
      %v3042 = vadd.f32 %v2648, %v2904
      %v3043 = vadd.f32 %v2649, %v2909
      %v3044 = vadd.f32 %v2650, %v2914
      %v3045 = vadd.f32 %v2651, %v2919
      %v3046 = vadd.f32 %v2652, %v2924
      %v3047 = vadd.f32 %v2653, %v2929
      %v3048 = vadd.f32 %v2654, %v2934
      %v3049 = vadd.f32 %v2655, %v2939
      %v3050 = vadd.f32 %v2656, %v2944
      %v3051 = vadd.f32 %v2657, %v2949
      %v3052 = vadd.f32 %v2658, %v2954
      %v3053 = vadd.f32 %v2659, %v2959
      %v3054 = vadd.f32 %v2660, %v2964
      %v3055 = vadd.f32 %v2661, %v2969
      %v3056 = vadd.f32 %v2662, %v2974
      %v3057 = vadd.f32 %v2663, %v2979
      %v3058 = vadd.f32 %v2664, %v2984
      %v3059 = vadd.f32 %v2665, %v2989
      %v3060 = vadd.f32 %v2666, %v2994
      %v3061 = vadd.f32 %v2667, %v2999
      %v3062 = vadd.f32 %v2668, %v3004
      %v3063 = vadd.f32 %v2669, %v3009
      %v3064 = vadd.f32 %v2670, %v3014
      %v3065 = vadd.f32 %v2671, %v3019
      %v3066 = vadd.f32 %v2672, %v3024
      %v3067 = vadd.f32 %v2673, %v3029
      %v3068 = vadd.f32 %v2674, %v3034
      %s3069 = scalar_lea.vmem [#allocation2], 48
      %v3070 = vld [vmem:[%s3069] sm:$0xff]
      %v3071 = vld [vmem:[%s3069 + $0x8] sm:$0xff]
      %v3072 = vld [vmem:[%s3069 + $0x18] sm:$0xff]
      %v3073 = vld [vmem:[%s3069 + $0x20] sm:$0xff]
      %v3074 = vld [vmem:[%s3069 + $0x30] sm:$0xff]
      %v3075 = vld [vmem:[%s3069 + $0x38] sm:$0xff]
      %v3076 = vld [vmem:[%s3069 + $0x48] sm:$0xff]
      %v3077 = vld [vmem:[%s3069 + $0x50] sm:$0xff]
      %v3078 = vld [vmem:[%s3069 + $0x60] sm:$0xff]
      %v3079 = vld [vmem:[%s3069 + $0x68] sm:$0xff]
      %v3080 = vld [vmem:[%s3069 + $0x78] sm:$0xff]
      %v3081 = vld [vmem:[%s3069 + $0x80] sm:$0xff]
      %v3082 = vld [vmem:[%s3069 + $0x90] sm:$0xff]
      %v3083 = vld [vmem:[%s3069 + $0x98] sm:$0xff]
      %v3084 = vld [vmem:[%s3069 + $0xa8] sm:$0xff]
      %v3085 = vld [vmem:[%s3069 + $0xb0] sm:$0xff]
      %v3086 = vld [vmem:[%s3069 + $0xc0] sm:$0xff]
      %v3087 = vld [vmem:[%s3069 + $0xc8] sm:$0xff]
      %v3088 = vld [vmem:[%s3069 + $0xd8] sm:$0xff]
      %v3089 = vld [vmem:[%s3069 + $0xe0] sm:$0xff]
      %v3090 = vld [vmem:[%s3069 + $0xf0] sm:$0xff]
      %v3091 = vld [vmem:[%s3069 + $0xf8] sm:$0xff]
      %v3092 = vld [vmem:[%s3069 + $0x108] sm:$0xff]
      %v3093 = vld [vmem:[%s3069 + $0x110] sm:$0xff]
      %v3094 = vld [vmem:[%s3069 + $0x120] sm:$0xff]
      %v3095 = vld [vmem:[%s3069 + $0x128] sm:$0xff]
      %v3096 = vld [vmem:[%s3069 + $0x138] sm:$0xff]
      %v3097 = vld [vmem:[%s3069 + $0x140] sm:$0xff]
      %v3098 = vld [vmem:[%s3069 + $0x150] sm:$0xff]
      %v3099 = vld [vmem:[%s3069 + $0x158] sm:$0xff]
      %v3100 = vld [vmem:[%s3069 + $0x168] sm:$0xff]
      %v3101 = vld [vmem:[%s3069 + $0x170] sm:$0xff]
      %s3102 = scalar_lea.vmem %s3, 384
      %v3103 = vld [vmem:[%s3102] sm:$0xff]
      %v3104 = vld [vmem:[%s3102 + $0x8] sm:$0xff]
      %v3105 = vld [vmem:[%s3102 + $0x10] sm:$0xff]
      %v3106 = vld [vmem:[%s3102 + $0x18] sm:$0xff]
      %v3107 = vld [vmem:[%s3102 + $0x20] sm:$0xff]
      %v3108 = vld [vmem:[%s3102 + $0x28] sm:$0xff]
      %v3109 = vld [vmem:[%s3102 + $0x30] sm:$0xff]
      %v3110 = vld [vmem:[%s3102 + $0x38] sm:$0xff]
      %v3112 = vsel %vm681, %v3070, 0
      %v3115 = vsel %vm681, %v3071, 0
      %v3118 = vsel %vm681, %v3072, 0
      %v3121 = vsel %vm681, %v3073, 0
      %v3124 = vsel %vm681, %v3074, 0
      %v3127 = vsel %vm681, %v3075, 0
      %v3130 = vsel %vm681, %v3076, 0
      %v3133 = vsel %vm681, %v3077, 0
      %v3136 = vsel %vm681, %v3078, 0
      %v3139 = vsel %vm681, %v3079, 0
      %v3142 = vsel %vm681, %v3080, 0
      %v3145 = vsel %vm681, %v3081, 0
      %v3148 = vsel %vm681, %v3082, 0
      %v3151 = vsel %vm681, %v3083, 0
      %v3154 = vsel %vm681, %v3084, 0
      %v3157 = vsel %vm681, %v3085, 0
      %v3160 = vsel %vm681, %v3086, 0
      %v3163 = vsel %vm681, %v3087, 0
      %v3166 = vsel %vm681, %v3088, 0
      %v3169 = vsel %vm681, %v3089, 0
      %v3172 = vsel %vm681, %v3090, 0
      %v3175 = vsel %vm681, %v3091, 0
      %v3178 = vsel %vm681, %v3092, 0
      %v3181 = vsel %vm681, %v3093, 0
      %v3184 = vsel %vm681, %v3094, 0
      %v3187 = vsel %vm681, %v3095, 0
      %v3190 = vsel %vm681, %v3096, 0
      %v3193 = vsel %vm681, %v3097, 0
      %v3196 = vsel %vm681, %v3098, 0
      %v3199 = vsel %vm681, %v3099, 0
      %v3202 = vsel %vm681, %v3100, 0
      %v3205 = vsel %vm681, %v3101, 0
      %3207 = vmatprep.subr.mxu0 0.0
      %3208 = vmatpush1.msra.mxu0 0.0
      %3209 = vmatprep.subr.mxu0 0.0
      %3210 = vmatpush1.msra.mxu0 0.0
      %3211 = vmatprep.subr.mxu0 0.0
      %3212 = vmatpush1.msra.mxu0 0.0
      %3213 = vmatprep.subr.mxu0 0.0
      %3214 = vmatpush1.msra.mxu0 0.0
      %3215 = vmatprep.subr.mxu0 0.0
      %3216 = vmatpush1.msra.mxu0 0.0
      %3217 = vmatprep.subr.mxu0 0.0
      %3218 = vmatpush1.msra.mxu0 0.0
      %3219 = vmatprep.subr.mxu0 0.0
      %3220 = vmatpush1.msra.mxu0 0.0
      %3221 = vmatprep.subr.mxu0 0.0
      %3222 = vmatpush1.msra.mxu0 0.0
      %3223 = vmatprep.subr.mxu0 0.0
      %3224 = vmatpush1.msra.mxu0 %v3110
      %3225 = vmatprep.subr.mxu0 0.0
      %3226 = vmatpush1.msra.mxu0 %v3109
      %3227 = vmatprep.subr.mxu0 0.0
      %3228 = vmatpush1.msra.mxu0 %v3108
      %3229 = vmatprep.subr.mxu0 0.0
      %3230 = vmatpush1.msra.mxu0 %v3107
      %3231 = vmatprep.subr.mxu0 0.0
      %3232 = vmatpush1.msra.mxu0 %v3106
      %3233 = vmatprep.subr.mxu0 0.0
      %3234 = vmatpush1.msra.mxu0 %v3105
      %3235 = vmatprep.subr.mxu0 0.0
      %3236 = vmatpush1.msra.mxu0 %v3104
      %3237 = vmatprep.subr.mxu0 0.0
      %3238 = vmatpush1.msra.mxu0 %v3103
      %3239 = vmatprep.subr.mxu0 0.0
      %3240 = vmatpush2.msra.mxu0 0.0
      %3241 = vmatprep.subr.mxu0 0.0
      %3242 = vmatpush2.msra.mxu0 0.0
      %3243 = vmatprep.subr.mxu0 0.0
      %3244 = vmatpush2.msra.mxu0 0.0
      %3245 = vmatprep.subr.mxu0 0.0
      %3246 = vmatpush2.msra.mxu0 0.0
      %3247 = vmatprep.subr.mxu0 0.0
      %3248 = vmatpush2.msra.mxu0 0.0
      %3249 = vmatprep.subr.mxu0 0.0
      %3250 = vmatpush2.msra.mxu0 0.0
      %3251 = vmatprep.subr.mxu0 0.0
      %3252 = vmatpush2.msra.mxu0 0.0
      %3253 = vmatprep.subr.mxu0 0.0
      %3254 = vmatpush2.msra.mxu0 0.0
      %3255 = vmatprep.subr.mxu0 0.0
      %3256 = vmatpush2.msra.mxu0 0.0
      %3257 = vmatprep.subr.mxu0 0.0
      %3258 = vmatpush2.msra.mxu0 0.0
      %3259 = vmatprep.subr.mxu0 0.0
      %3260 = vmatpush2.msra.mxu0 0.0
      %3261 = vmatprep.subr.mxu0 0.0
      %3262 = vmatpush2.msra.mxu0 0.0
      %3263 = vmatprep.subr.mxu0 0.0
      %3264 = vmatpush2.msra.mxu0 0.0
      %3265 = vmatprep.subr.mxu0 0.0
      %3266 = vmatpush2.msra.mxu0 0.0
      %3267 = vmatprep.subr.mxu0 0.0
      %3268 = vmatpush2.msra.mxu0 0.0
      %3269 = vmatprep.subr.mxu0 0.0
      %3270 = vmatpush2.msra.mxu0 0.0
      %3271 = vmatprep.mubr.f32.mxu0 0.0
      %3272 = vmatmul.mubr.f32.gmra.mxu0 %v3112
      %v3273 = vpop.f32.mrf.mxu0
      %v3274 = vadd.f32 0.0, %v3273
      %v3275 = vpop.f32.mrf.mxu0
      %3276 = vmatprep.mubr.f32.mxu0 0.0
      %3277 = vmatmul.mubr.f32.gmra.mxu0 %v3115
      %v3278 = vpop.f32.mrf.mxu0
      %v3279 = vadd.f32 0.0, %v3278
      %v3280 = vpop.f32.mrf.mxu0
      %3281 = vmatprep.mubr.f32.mxu0 0.0
      %3282 = vmatmul.mubr.f32.gmra.mxu0 %v3118
      %v3283 = vpop.f32.mrf.mxu0
      %v3284 = vadd.f32 0.0, %v3283
      %v3285 = vpop.f32.mrf.mxu0
      %3286 = vmatprep.mubr.f32.mxu0 0.0
      %3287 = vmatmul.mubr.f32.gmra.mxu0 %v3121
      %v3288 = vpop.f32.mrf.mxu0
      %v3289 = vadd.f32 0.0, %v3288
      %v3290 = vpop.f32.mrf.mxu0
      %3291 = vmatprep.mubr.f32.mxu0 0.0
      %3292 = vmatmul.mubr.f32.gmra.mxu0 %v3124
      %v3293 = vpop.f32.mrf.mxu0
      %v3294 = vadd.f32 0.0, %v3293
      %v3295 = vpop.f32.mrf.mxu0
      %3296 = vmatprep.mubr.f32.mxu0 0.0
      %3297 = vmatmul.mubr.f32.gmra.mxu0 %v3127
      %v3298 = vpop.f32.mrf.mxu0
      %v3299 = vadd.f32 0.0, %v3298
      %v3300 = vpop.f32.mrf.mxu0
      %3301 = vmatprep.mubr.f32.mxu0 0.0
      %3302 = vmatmul.mubr.f32.gmra.mxu0 %v3130
      %v3303 = vpop.f32.mrf.mxu0
      %v3304 = vadd.f32 0.0, %v3303
      %v3305 = vpop.f32.mrf.mxu0
      %3306 = vmatprep.mubr.f32.mxu0 0.0
      %3307 = vmatmul.mubr.f32.gmra.mxu0 %v3133
      %v3308 = vpop.f32.mrf.mxu0
      %v3309 = vadd.f32 0.0, %v3308
      %v3310 = vpop.f32.mrf.mxu0
      %3311 = vmatprep.mubr.f32.mxu0 0.0
      %3312 = vmatmul.mubr.f32.gmra.mxu0 %v3136
      %v3313 = vpop.f32.mrf.mxu0
      %v3314 = vadd.f32 0.0, %v3313
      %v3315 = vpop.f32.mrf.mxu0
      %3316 = vmatprep.mubr.f32.mxu0 0.0
      %3317 = vmatmul.mubr.f32.gmra.mxu0 %v3139
      %v3318 = vpop.f32.mrf.mxu0
      %v3319 = vadd.f32 0.0, %v3318
      %v3320 = vpop.f32.mrf.mxu0
      %3321 = vmatprep.mubr.f32.mxu0 0.0
      %3322 = vmatmul.mubr.f32.gmra.mxu0 %v3142
      %v3323 = vpop.f32.mrf.mxu0
      %v3324 = vadd.f32 0.0, %v3323
      %v3325 = vpop.f32.mrf.mxu0
      %3326 = vmatprep.mubr.f32.mxu0 0.0
      %3327 = vmatmul.mubr.f32.gmra.mxu0 %v3145
      %v3328 = vpop.f32.mrf.mxu0
      %v3329 = vadd.f32 0.0, %v3328
      %v3330 = vpop.f32.mrf.mxu0
      %3331 = vmatprep.mubr.f32.mxu0 0.0
      %3332 = vmatmul.mubr.f32.gmra.mxu0 %v3148
      %v3333 = vpop.f32.mrf.mxu0
      %v3334 = vadd.f32 0.0, %v3333
      %v3335 = vpop.f32.mrf.mxu0
      %3336 = vmatprep.mubr.f32.mxu0 0.0
      %3337 = vmatmul.mubr.f32.gmra.mxu0 %v3151
      %v3338 = vpop.f32.mrf.mxu0
      %v3339 = vadd.f32 0.0, %v3338
      %v3340 = vpop.f32.mrf.mxu0
      %3341 = vmatprep.mubr.f32.mxu0 0.0
      %3342 = vmatmul.mubr.f32.gmra.mxu0 %v3154
      %v3343 = vpop.f32.mrf.mxu0
      %v3344 = vadd.f32 0.0, %v3343
      %v3345 = vpop.f32.mrf.mxu0
      %3346 = vmatprep.mubr.f32.mxu0 0.0
      %3347 = vmatmul.mubr.f32.gmra.mxu0 %v3157
      %v3348 = vpop.f32.mrf.mxu0
      %v3349 = vadd.f32 0.0, %v3348
      %v3350 = vpop.f32.mrf.mxu0
      %3351 = vmatprep.mubr.f32.mxu0 0.0
      %3352 = vmatmul.mubr.f32.gmra.mxu0 %v3160
      %v3353 = vpop.f32.mrf.mxu0
      %v3354 = vadd.f32 0.0, %v3353
      %v3355 = vpop.f32.mrf.mxu0
      %3356 = vmatprep.mubr.f32.mxu0 0.0
      %3357 = vmatmul.mubr.f32.gmra.mxu0 %v3163
      %v3358 = vpop.f32.mrf.mxu0
      %v3359 = vadd.f32 0.0, %v3358
      %v3360 = vpop.f32.mrf.mxu0
      %3361 = vmatprep.mubr.f32.mxu0 0.0
      %3362 = vmatmul.mubr.f32.gmra.mxu0 %v3166
      %v3363 = vpop.f32.mrf.mxu0
      %v3364 = vadd.f32 0.0, %v3363
      %v3365 = vpop.f32.mrf.mxu0
      %3366 = vmatprep.mubr.f32.mxu0 0.0
      %3367 = vmatmul.mubr.f32.gmra.mxu0 %v3169
      %v3368 = vpop.f32.mrf.mxu0
      %v3369 = vadd.f32 0.0, %v3368
      %v3370 = vpop.f32.mrf.mxu0
      %3371 = vmatprep.mubr.f32.mxu0 0.0
      %3372 = vmatmul.mubr.f32.gmra.mxu0 %v3172
      %v3373 = vpop.f32.mrf.mxu0
      %v3374 = vadd.f32 0.0, %v3373
      %v3375 = vpop.f32.mrf.mxu0
      %3376 = vmatprep.mubr.f32.mxu0 0.0
      %3377 = vmatmul.mubr.f32.gmra.mxu0 %v3175
      %v3378 = vpop.f32.mrf.mxu0
      %v3379 = vadd.f32 0.0, %v3378
      %v3380 = vpop.f32.mrf.mxu0
      %3381 = vmatprep.mubr.f32.mxu0 0.0
      %3382 = vmatmul.mubr.f32.gmra.mxu0 %v3178
      %v3383 = vpop.f32.mrf.mxu0
      %v3384 = vadd.f32 0.0, %v3383
      %v3385 = vpop.f32.mrf.mxu0
      %3386 = vmatprep.mubr.f32.mxu0 0.0
      %3387 = vmatmul.mubr.f32.gmra.mxu0 %v3181
      %v3388 = vpop.f32.mrf.mxu0
      %v3389 = vadd.f32 0.0, %v3388
      %v3390 = vpop.f32.mrf.mxu0
      %3391 = vmatprep.mubr.f32.mxu0 0.0
      %3392 = vmatmul.mubr.f32.gmra.mxu0 %v3184
      %v3393 = vpop.f32.mrf.mxu0
      %v3394 = vadd.f32 0.0, %v3393
      %v3395 = vpop.f32.mrf.mxu0
      %3396 = vmatprep.mubr.f32.mxu0 0.0
      %3397 = vmatmul.mubr.f32.gmra.mxu0 %v3187
      %v3398 = vpop.f32.mrf.mxu0
      %v3399 = vadd.f32 0.0, %v3398
      %v3400 = vpop.f32.mrf.mxu0
      %3401 = vmatprep.mubr.f32.mxu0 0.0
      %3402 = vmatmul.mubr.f32.gmra.mxu0 %v3190
      %v3403 = vpop.f32.mrf.mxu0
      %v3404 = vadd.f32 0.0, %v3403
      %v3405 = vpop.f32.mrf.mxu0
      %3406 = vmatprep.mubr.f32.mxu0 0.0
      %3407 = vmatmul.mubr.f32.gmra.mxu0 %v3193
      %v3408 = vpop.f32.mrf.mxu0
      %v3409 = vadd.f32 0.0, %v3408
      %v3410 = vpop.f32.mrf.mxu0
      %3411 = vmatprep.mubr.f32.mxu0 0.0
      %3412 = vmatmul.mubr.f32.gmra.mxu0 %v3196
      %v3413 = vpop.f32.mrf.mxu0
      %v3414 = vadd.f32 0.0, %v3413
      %v3415 = vpop.f32.mrf.mxu0
      %3416 = vmatprep.mubr.f32.mxu0 0.0
      %3417 = vmatmul.mubr.f32.gmra.mxu0 %v3199
      %v3418 = vpop.f32.mrf.mxu0
      %v3419 = vadd.f32 0.0, %v3418
      %v3420 = vpop.f32.mrf.mxu0
      %3421 = vmatprep.mubr.f32.mxu0 0.0
      %3422 = vmatmul.mubr.f32.gmra.mxu0 %v3202
      %v3423 = vpop.f32.mrf.mxu0
      %v3424 = vadd.f32 0.0, %v3423
      %v3425 = vpop.f32.mrf.mxu0
      %3426 = vmatprep.mubr.f32.mxu0 0.0
      %3427 = vmatmul.mubr.f32.gmra.mxu0 %v3205
      %v3428 = vpop.f32.mrf.mxu0
      %v3429 = vadd.f32 0.0, %v3428
      %v3430 = vpop.f32.mrf.mxu0
      %3431 = vdwg.mxu0
      %v3432 = vadd.f32 %v3037, %v3274
      %v3433 = vadd.f32 %v3038, %v3279
      %v3434 = vadd.f32 %v3039, %v3284
      %v3435 = vadd.f32 %v3040, %v3289
      %v3436 = vadd.f32 %v3041, %v3294
      %v3437 = vadd.f32 %v3042, %v3299
      %v3438 = vadd.f32 %v3043, %v3304
      %v3439 = vadd.f32 %v3044, %v3309
      %v3440 = vadd.f32 %v3045, %v3314
      %v3441 = vadd.f32 %v3046, %v3319
      %v3442 = vadd.f32 %v3047, %v3324
      %v3443 = vadd.f32 %v3048, %v3329
      %v3444 = vadd.f32 %v3049, %v3334
      %v3445 = vadd.f32 %v3050, %v3339
      %v3446 = vadd.f32 %v3051, %v3344
      %v3447 = vadd.f32 %v3052, %v3349
      %v3448 = vadd.f32 %v3053, %v3354
      %v3449 = vadd.f32 %v3054, %v3359
      %v3450 = vadd.f32 %v3055, %v3364
      %v3451 = vadd.f32 %v3056, %v3369
      %v3452 = vadd.f32 %v3057, %v3374
      %v3453 = vadd.f32 %v3058, %v3379
      %v3454 = vadd.f32 %v3059, %v3384
      %v3455 = vadd.f32 %v3060, %v3389
      %v3456 = vadd.f32 %v3061, %v3394
      %v3457 = vadd.f32 %v3062, %v3399
      %v3458 = vadd.f32 %v3063, %v3404
      %v3459 = vadd.f32 %v3064, %v3409
      %v3460 = vadd.f32 %v3065, %v3414
      %v3461 = vadd.f32 %v3066, %v3419
      %v3462 = vadd.f32 %v3067, %v3424
      %v3463 = vadd.f32 %v3068, %v3429
      %v3464 = vld [vmem:[%s3069 + $0x1] sm:$0xff]
      %v3465 = vld [vmem:[%s3069 + $0x9] sm:$0xff]
      %v3466 = vld [vmem:[%s3069 + $0x19] sm:$0xff]
      %v3467 = vld [vmem:[%s3069 + $0x21] sm:$0xff]
      %v3468 = vld [vmem:[%s3069 + $0x31] sm:$0xff]
      %v3469 = vld [vmem:[%s3069 + $0x39] sm:$0xff]
      %v3470 = vld [vmem:[%s3069 + $0x49] sm:$0xff]
      %v3471 = vld [vmem:[%s3069 + $0x51] sm:$0xff]
      %v3472 = vld [vmem:[%s3069 + $0x61] sm:$0xff]
      %v3473 = vld [vmem:[%s3069 + $0x69] sm:$0xff]
      %v3474 = vld [vmem:[%s3069 + $0x79] sm:$0xff]
      %v3475 = vld [vmem:[%s3069 + $0x81] sm:$0xff]
      %v3476 = vld [vmem:[%s3069 + $0x91] sm:$0xff]
      %v3477 = vld [vmem:[%s3069 + $0x99] sm:$0xff]
      %v3478 = vld [vmem:[%s3069 + $0xa9] sm:$0xff]
      %v3479 = vld [vmem:[%s3069 + $0xb1] sm:$0xff]
      %v3480 = vld [vmem:[%s3069 + $0xc1] sm:$0xff]
      %v3481 = vld [vmem:[%s3069 + $0xc9] sm:$0xff]
      %v3482 = vld [vmem:[%s3069 + $0xd9] sm:$0xff]
      %v3483 = vld [vmem:[%s3069 + $0xe1] sm:$0xff]
      %v3484 = vld [vmem:[%s3069 + $0xf1] sm:$0xff]
      %v3485 = vld [vmem:[%s3069 + $0xf9] sm:$0xff]
      %v3486 = vld [vmem:[%s3069 + $0x109] sm:$0xff]
      %v3487 = vld [vmem:[%s3069 + $0x111] sm:$0xff]
      %v3488 = vld [vmem:[%s3069 + $0x121] sm:$0xff]
      %v3489 = vld [vmem:[%s3069 + $0x129] sm:$0xff]
      %v3490 = vld [vmem:[%s3069 + $0x139] sm:$0xff]
      %v3491 = vld [vmem:[%s3069 + $0x141] sm:$0xff]
      %v3492 = vld [vmem:[%s3069 + $0x151] sm:$0xff]
      %v3493 = vld [vmem:[%s3069 + $0x159] sm:$0xff]
      %v3494 = vld [vmem:[%s3069 + $0x169] sm:$0xff]
      %v3495 = vld [vmem:[%s3069 + $0x171] sm:$0xff]
      %s3496 = scalar_lea.vmem %s3, 448
      %v3497 = vld [vmem:[%s3496] sm:$0xff]
      %v3498 = vld [vmem:[%s3496 + $0x8] sm:$0xff]
      %v3499 = vld [vmem:[%s3496 + $0x10] sm:$0xff]
      %v3500 = vld [vmem:[%s3496 + $0x18] sm:$0xff]
      %v3501 = vld [vmem:[%s3496 + $0x20] sm:$0xff]
      %v3502 = vld [vmem:[%s3496 + $0x28] sm:$0xff]
      %v3503 = vld [vmem:[%s3496 + $0x30] sm:$0xff]
      %v3504 = vld [vmem:[%s3496 + $0x38] sm:$0xff]
      %v3506 = vsel %vm681, %v3464, 0
      %v3509 = vsel %vm681, %v3465, 0
      %v3512 = vsel %vm681, %v3466, 0
      %v3515 = vsel %vm681, %v3467, 0
      %v3518 = vsel %vm681, %v3468, 0
      %v3521 = vsel %vm681, %v3469, 0
      %v3524 = vsel %vm681, %v3470, 0
      %v3527 = vsel %vm681, %v3471, 0
      %v3530 = vsel %vm681, %v3472, 0
      %v3533 = vsel %vm681, %v3473, 0
      %v3536 = vsel %vm681, %v3474, 0
      %v3539 = vsel %vm681, %v3475, 0
      %v3542 = vsel %vm681, %v3476, 0
      %v3545 = vsel %vm681, %v3477, 0
      %v3548 = vsel %vm681, %v3478, 0
      %v3551 = vsel %vm681, %v3479, 0
      %v3554 = vsel %vm681, %v3480, 0
      %v3557 = vsel %vm681, %v3481, 0
      %v3560 = vsel %vm681, %v3482, 0
      %v3563 = vsel %vm681, %v3483, 0
      %v3566 = vsel %vm681, %v3484, 0
      %v3569 = vsel %vm681, %v3485, 0
      %v3572 = vsel %vm681, %v3486, 0
      %v3575 = vsel %vm681, %v3487, 0
      %v3578 = vsel %vm681, %v3488, 0
      %v3581 = vsel %vm681, %v3489, 0
      %v3584 = vsel %vm681, %v3490, 0
      %v3587 = vsel %vm681, %v3491, 0
      %v3590 = vsel %vm681, %v3492, 0
      %v3593 = vsel %vm681, %v3493, 0
      %v3596 = vsel %vm681, %v3494, 0
      %v3599 = vsel %vm681, %v3495, 0
      %3601 = vmatprep.subr.mxu0 0.0
      %3602 = vmatpush1.msra.mxu0 0.0
      %3603 = vmatprep.subr.mxu0 0.0
      %3604 = vmatpush1.msra.mxu0 0.0
      %3605 = vmatprep.subr.mxu0 0.0
      %3606 = vmatpush1.msra.mxu0 0.0
      %3607 = vmatprep.subr.mxu0 0.0
      %3608 = vmatpush1.msra.mxu0 0.0
      %3609 = vmatprep.subr.mxu0 0.0
      %3610 = vmatpush1.msra.mxu0 0.0
      %3611 = vmatprep.subr.mxu0 0.0
      %3612 = vmatpush1.msra.mxu0 0.0
      %3613 = vmatprep.subr.mxu0 0.0
      %3614 = vmatpush1.msra.mxu0 0.0
      %3615 = vmatprep.subr.mxu0 0.0
      %3616 = vmatpush1.msra.mxu0 0.0
      %3617 = vmatprep.subr.mxu0 0.0
      %3618 = vmatpush1.msra.mxu0 %v3504
      %3619 = vmatprep.subr.mxu0 0.0
      %3620 = vmatpush1.msra.mxu0 %v3503
      %3621 = vmatprep.subr.mxu0 0.0
      %3622 = vmatpush1.msra.mxu0 %v3502
      %3623 = vmatprep.subr.mxu0 0.0
      %3624 = vmatpush1.msra.mxu0 %v3501
      %3625 = vmatprep.subr.mxu0 0.0
      %3626 = vmatpush1.msra.mxu0 %v3500
      %3627 = vmatprep.subr.mxu0 0.0
      %3628 = vmatpush1.msra.mxu0 %v3499
      %3629 = vmatprep.subr.mxu0 0.0
      %3630 = vmatpush1.msra.mxu0 %v3498
      %3631 = vmatprep.subr.mxu0 0.0
      %3632 = vmatpush1.msra.mxu0 %v3497
      %3633 = vmatprep.subr.mxu0 0.0
      %3634 = vmatpush2.msra.mxu0 0.0
      %3635 = vmatprep.subr.mxu0 0.0
      %3636 = vmatpush2.msra.mxu0 0.0
      %3637 = vmatprep.subr.mxu0 0.0
      %3638 = vmatpush2.msra.mxu0 0.0
      %3639 = vmatprep.subr.mxu0 0.0
      %3640 = vmatpush2.msra.mxu0 0.0
      %3641 = vmatprep.subr.mxu0 0.0
      %3642 = vmatpush2.msra.mxu0 0.0
      %3643 = vmatprep.subr.mxu0 0.0
      %3644 = vmatpush2.msra.mxu0 0.0
      %3645 = vmatprep.subr.mxu0 0.0
      %3646 = vmatpush2.msra.mxu0 0.0
      %3647 = vmatprep.subr.mxu0 0.0
      %3648 = vmatpush2.msra.mxu0 0.0
      %3649 = vmatprep.subr.mxu0 0.0
      %3650 = vmatpush2.msra.mxu0 0.0
      %3651 = vmatprep.subr.mxu0 0.0
      %3652 = vmatpush2.msra.mxu0 0.0
      %3653 = vmatprep.subr.mxu0 0.0
      %3654 = vmatpush2.msra.mxu0 0.0
      %3655 = vmatprep.subr.mxu0 0.0
      %3656 = vmatpush2.msra.mxu0 0.0
      %3657 = vmatprep.subr.mxu0 0.0
      %3658 = vmatpush2.msra.mxu0 0.0
      %3659 = vmatprep.subr.mxu0 0.0
      %3660 = vmatpush2.msra.mxu0 0.0
      %3661 = vmatprep.subr.mxu0 0.0
      %3662 = vmatpush2.msra.mxu0 0.0
      %3663 = vmatprep.subr.mxu0 0.0
      %3664 = vmatpush2.msra.mxu0 0.0
      %3665 = vmatprep.mubr.f32.mxu0 0.0
      %3666 = vmatmul.mubr.f32.gmra.mxu0 %v3506
      %v3667 = vpop.f32.mrf.mxu0
      %v3668 = vadd.f32 0.0, %v3667
      %v3669 = vpop.f32.mrf.mxu0
      %3670 = vmatprep.mubr.f32.mxu0 0.0
      %3671 = vmatmul.mubr.f32.gmra.mxu0 %v3509
      %v3672 = vpop.f32.mrf.mxu0
      %v3673 = vadd.f32 0.0, %v3672
      %v3674 = vpop.f32.mrf.mxu0
      %3675 = vmatprep.mubr.f32.mxu0 0.0
      %3676 = vmatmul.mubr.f32.gmra.mxu0 %v3512
      %v3677 = vpop.f32.mrf.mxu0
      %v3678 = vadd.f32 0.0, %v3677
      %v3679 = vpop.f32.mrf.mxu0
      %3680 = vmatprep.mubr.f32.mxu0 0.0
      %3681 = vmatmul.mubr.f32.gmra.mxu0 %v3515
      %v3682 = vpop.f32.mrf.mxu0
      %v3683 = vadd.f32 0.0, %v3682
      %v3684 = vpop.f32.mrf.mxu0
      %3685 = vmatprep.mubr.f32.mxu0 0.0
      %3686 = vmatmul.mubr.f32.gmra.mxu0 %v3518
      %v3687 = vpop.f32.mrf.mxu0
      %v3688 = vadd.f32 0.0, %v3687
      %v3689 = vpop.f32.mrf.mxu0
      %3690 = vmatprep.mubr.f32.mxu0 0.0
      %3691 = vmatmul.mubr.f32.gmra.mxu0 %v3521
      %v3692 = vpop.f32.mrf.mxu0
      %v3693 = vadd.f32 0.0, %v3692
      %v3694 = vpop.f32.mrf.mxu0
      %3695 = vmatprep.mubr.f32.mxu0 0.0
      %3696 = vmatmul.mubr.f32.gmra.mxu0 %v3524
      %v3697 = vpop.f32.mrf.mxu0
      %v3698 = vadd.f32 0.0, %v3697
      %v3699 = vpop.f32.mrf.mxu0
      %3700 = vmatprep.mubr.f32.mxu0 0.0
      %3701 = vmatmul.mubr.f32.gmra.mxu0 %v3527
      %v3702 = vpop.f32.mrf.mxu0
      %v3703 = vadd.f32 0.0, %v3702
      %v3704 = vpop.f32.mrf.mxu0
      %3705 = vmatprep.mubr.f32.mxu0 0.0
      %3706 = vmatmul.mubr.f32.gmra.mxu0 %v3530
      %v3707 = vpop.f32.mrf.mxu0
      %v3708 = vadd.f32 0.0, %v3707
      %v3709 = vpop.f32.mrf.mxu0
      %3710 = vmatprep.mubr.f32.mxu0 0.0
      %3711 = vmatmul.mubr.f32.gmra.mxu0 %v3533
      %v3712 = vpop.f32.mrf.mxu0
      %v3713 = vadd.f32 0.0, %v3712
      %v3714 = vpop.f32.mrf.mxu0
      %3715 = vmatprep.mubr.f32.mxu0 0.0
      %3716 = vmatmul.mubr.f32.gmra.mxu0 %v3536
      %v3717 = vpop.f32.mrf.mxu0
      %v3718 = vadd.f32 0.0, %v3717
      %v3719 = vpop.f32.mrf.mxu0
      %3720 = vmatprep.mubr.f32.mxu0 0.0
      %3721 = vmatmul.mubr.f32.gmra.mxu0 %v3539
      %v3722 = vpop.f32.mrf.mxu0
      %v3723 = vadd.f32 0.0, %v3722
      %v3724 = vpop.f32.mrf.mxu0
      %3725 = vmatprep.mubr.f32.mxu0 0.0
      %3726 = vmatmul.mubr.f32.gmra.mxu0 %v3542
      %v3727 = vpop.f32.mrf.mxu0
      %v3728 = vadd.f32 0.0, %v3727
      %v3729 = vpop.f32.mrf.mxu0
      %3730 = vmatprep.mubr.f32.mxu0 0.0
      %3731 = vmatmul.mubr.f32.gmra.mxu0 %v3545
      %v3732 = vpop.f32.mrf.mxu0
      %v3733 = vadd.f32 0.0, %v3732
      %v3734 = vpop.f32.mrf.mxu0
      %3735 = vmatprep.mubr.f32.mxu0 0.0
      %3736 = vmatmul.mubr.f32.gmra.mxu0 %v3548
      %v3737 = vpop.f32.mrf.mxu0
      %v3738 = vadd.f32 0.0, %v3737
      %v3739 = vpop.f32.mrf.mxu0
      %3740 = vmatprep.mubr.f32.mxu0 0.0
      %3741 = vmatmul.mubr.f32.gmra.mxu0 %v3551
      %v3742 = vpop.f32.mrf.mxu0
      %v3743 = vadd.f32 0.0, %v3742
      %v3744 = vpop.f32.mrf.mxu0
      %3745 = vmatprep.mubr.f32.mxu0 0.0
      %3746 = vmatmul.mubr.f32.gmra.mxu0 %v3554
      %v3747 = vpop.f32.mrf.mxu0
      %v3748 = vadd.f32 0.0, %v3747
      %v3749 = vpop.f32.mrf.mxu0
      %3750 = vmatprep.mubr.f32.mxu0 0.0
      %3751 = vmatmul.mubr.f32.gmra.mxu0 %v3557
      %v3752 = vpop.f32.mrf.mxu0
      %v3753 = vadd.f32 0.0, %v3752
      %v3754 = vpop.f32.mrf.mxu0
      %3755 = vmatprep.mubr.f32.mxu0 0.0
      %3756 = vmatmul.mubr.f32.gmra.mxu0 %v3560
      %v3757 = vpop.f32.mrf.mxu0
      %v3758 = vadd.f32 0.0, %v3757
      %v3759 = vpop.f32.mrf.mxu0
      %3760 = vmatprep.mubr.f32.mxu0 0.0
      %3761 = vmatmul.mubr.f32.gmra.mxu0 %v3563
      %v3762 = vpop.f32.mrf.mxu0
      %v3763 = vadd.f32 0.0, %v3762
      %v3764 = vpop.f32.mrf.mxu0
      %3765 = vmatprep.mubr.f32.mxu0 0.0
      %3766 = vmatmul.mubr.f32.gmra.mxu0 %v3566
      %v3767 = vpop.f32.mrf.mxu0
      %v3768 = vadd.f32 0.0, %v3767
      %v3769 = vpop.f32.mrf.mxu0
      %3770 = vmatprep.mubr.f32.mxu0 0.0
      %3771 = vmatmul.mubr.f32.gmra.mxu0 %v3569
      %v3772 = vpop.f32.mrf.mxu0
      %v3773 = vadd.f32 0.0, %v3772
      %v3774 = vpop.f32.mrf.mxu0
      %3775 = vmatprep.mubr.f32.mxu0 0.0
      %3776 = vmatmul.mubr.f32.gmra.mxu0 %v3572
      %v3777 = vpop.f32.mrf.mxu0
      %v3778 = vadd.f32 0.0, %v3777
      %v3779 = vpop.f32.mrf.mxu0
      %3780 = vmatprep.mubr.f32.mxu0 0.0
      %3781 = vmatmul.mubr.f32.gmra.mxu0 %v3575
      %v3782 = vpop.f32.mrf.mxu0
      %v3783 = vadd.f32 0.0, %v3782
      %v3784 = vpop.f32.mrf.mxu0
      %3785 = vmatprep.mubr.f32.mxu0 0.0
      %3786 = vmatmul.mubr.f32.gmra.mxu0 %v3578
      %v3787 = vpop.f32.mrf.mxu0
      %v3788 = vadd.f32 0.0, %v3787
      %v3789 = vpop.f32.mrf.mxu0
      %3790 = vmatprep.mubr.f32.mxu0 0.0
      %3791 = vmatmul.mubr.f32.gmra.mxu0 %v3581
      %v3792 = vpop.f32.mrf.mxu0
      %v3793 = vadd.f32 0.0, %v3792
      %v3794 = vpop.f32.mrf.mxu0
      %3795 = vmatprep.mubr.f32.mxu0 0.0
      %3796 = vmatmul.mubr.f32.gmra.mxu0 %v3584
      %v3797 = vpop.f32.mrf.mxu0
      %v3798 = vadd.f32 0.0, %v3797
      %v3799 = vpop.f32.mrf.mxu0
      %3800 = vmatprep.mubr.f32.mxu0 0.0
      %3801 = vmatmul.mubr.f32.gmra.mxu0 %v3587
      %v3802 = vpop.f32.mrf.mxu0
      %v3803 = vadd.f32 0.0, %v3802
      %v3804 = vpop.f32.mrf.mxu0
      %3805 = vmatprep.mubr.f32.mxu0 0.0
      %3806 = vmatmul.mubr.f32.gmra.mxu0 %v3590
      %v3807 = vpop.f32.mrf.mxu0
      %v3808 = vadd.f32 0.0, %v3807
      %v3809 = vpop.f32.mrf.mxu0
      %3810 = vmatprep.mubr.f32.mxu0 0.0
      %3811 = vmatmul.mubr.f32.gmra.mxu0 %v3593
      %v3812 = vpop.f32.mrf.mxu0
      %v3813 = vadd.f32 0.0, %v3812
      %v3814 = vpop.f32.mrf.mxu0
      %3815 = vmatprep.mubr.f32.mxu0 0.0
      %3816 = vmatmul.mubr.f32.gmra.mxu0 %v3596
      %v3817 = vpop.f32.mrf.mxu0
      %v3818 = vadd.f32 0.0, %v3817
      %v3819 = vpop.f32.mrf.mxu0
      %3820 = vmatprep.mubr.f32.mxu0 0.0
      %3821 = vmatmul.mubr.f32.gmra.mxu0 %v3599
      %v3822 = vpop.f32.mrf.mxu0
      %v3823 = vadd.f32 0.0, %v3822
      %v3824 = vpop.f32.mrf.mxu0
      %3825 = vdwg.mxu0
      %v3826 = vadd.f32 %v3432, %v3668
      %v3827 = vadd.f32 %v3433, %v3673
      %v3828 = vadd.f32 %v3434, %v3678
      %v3829 = vadd.f32 %v3435, %v3683
      %v3830 = vadd.f32 %v3436, %v3688
      %v3831 = vadd.f32 %v3437, %v3693
      %v3832 = vadd.f32 %v3438, %v3698
      %v3833 = vadd.f32 %v3439, %v3703
      %v3834 = vadd.f32 %v3440, %v3708
      %v3835 = vadd.f32 %v3441, %v3713
      %v3836 = vadd.f32 %v3442, %v3718
      %v3837 = vadd.f32 %v3443, %v3723
      %v3838 = vadd.f32 %v3444, %v3728
      %v3839 = vadd.f32 %v3445, %v3733
      %v3840 = vadd.f32 %v3446, %v3738
      %v3841 = vadd.f32 %v3447, %v3743
      %v3842 = vadd.f32 %v3448, %v3748
      %v3843 = vadd.f32 %v3449, %v3753
      %v3844 = vadd.f32 %v3450, %v3758
      %v3845 = vadd.f32 %v3451, %v3763
      %v3846 = vadd.f32 %v3452, %v3768
      %v3847 = vadd.f32 %v3453, %v3773
      %v3848 = vadd.f32 %v3454, %v3778
      %v3849 = vadd.f32 %v3455, %v3783
      %v3850 = vadd.f32 %v3456, %v3788
      %v3851 = vadd.f32 %v3457, %v3793
      %v3852 = vadd.f32 %v3458, %v3798
      %v3853 = vadd.f32 %v3459, %v3803
      %v3854 = vadd.f32 %v3460, %v3808
      %v3855 = vadd.f32 %v3461, %v3813
      %v3856 = vadd.f32 %v3462, %v3818
      %v3857 = vadd.f32 %v3463, %v3823
      %v3858 = vld [vmem:[%s3069 + $0x2] sm:$0xff]
      %v3859 = vld [vmem:[%s3069 + $0xa] sm:$0xff]
      %v3860 = vld [vmem:[%s3069 + $0x1a] sm:$0xff]
      %v3861 = vld [vmem:[%s3069 + $0x22] sm:$0xff]
      %v3862 = vld [vmem:[%s3069 + $0x32] sm:$0xff]
      %v3863 = vld [vmem:[%s3069 + $0x3a] sm:$0xff]
      %v3864 = vld [vmem:[%s3069 + $0x4a] sm:$0xff]
      %v3865 = vld [vmem:[%s3069 + $0x52] sm:$0xff]
      %v3866 = vld [vmem:[%s3069 + $0x62] sm:$0xff]
      %v3867 = vld [vmem:[%s3069 + $0x6a] sm:$0xff]
      %v3868 = vld [vmem:[%s3069 + $0x7a] sm:$0xff]
      %v3869 = vld [vmem:[%s3069 + $0x82] sm:$0xff]
      %v3870 = vld [vmem:[%s3069 + $0x92] sm:$0xff]
      %v3871 = vld [vmem:[%s3069 + $0x9a] sm:$0xff]
      %v3872 = vld [vmem:[%s3069 + $0xaa] sm:$0xff]
      %v3873 = vld [vmem:[%s3069 + $0xb2] sm:$0xff]
      %v3874 = vld [vmem:[%s3069 + $0xc2] sm:$0xff]
      %v3875 = vld [vmem:[%s3069 + $0xca] sm:$0xff]
      %v3876 = vld [vmem:[%s3069 + $0xda] sm:$0xff]
      %v3877 = vld [vmem:[%s3069 + $0xe2] sm:$0xff]
      %v3878 = vld [vmem:[%s3069 + $0xf2] sm:$0xff]
      %v3879 = vld [vmem:[%s3069 + $0xfa] sm:$0xff]
      %v3880 = vld [vmem:[%s3069 + $0x10a] sm:$0xff]
      %v3881 = vld [vmem:[%s3069 + $0x112] sm:$0xff]
      %v3882 = vld [vmem:[%s3069 + $0x122] sm:$0xff]
      %v3883 = vld [vmem:[%s3069 + $0x12a] sm:$0xff]
      %v3884 = vld [vmem:[%s3069 + $0x13a] sm:$0xff]
      %v3885 = vld [vmem:[%s3069 + $0x142] sm:$0xff]
      %v3886 = vld [vmem:[%s3069 + $0x152] sm:$0xff]
      %v3887 = vld [vmem:[%s3069 + $0x15a] sm:$0xff]
      %v3888 = vld [vmem:[%s3069 + $0x16a] sm:$0xff]
      %v3889 = vld [vmem:[%s3069 + $0x172] sm:$0xff]
      %s3890 = scalar_lea.vmem %s3, 512
      %v3891 = vld [vmem:[%s3890] sm:$0xff]
      %v3892 = vld [vmem:[%s3890 + $0x8] sm:$0xff]
      %v3893 = vld [vmem:[%s3890 + $0x10] sm:$0xff]
      %v3894 = vld [vmem:[%s3890 + $0x18] sm:$0xff]
      %v3895 = vld [vmem:[%s3890 + $0x20] sm:$0xff]
      %v3896 = vld [vmem:[%s3890 + $0x28] sm:$0xff]
      %v3897 = vld [vmem:[%s3890 + $0x30] sm:$0xff]
      %v3898 = vld [vmem:[%s3890 + $0x38] sm:$0xff]
      %v3900 = vsel %vm681, %v3858, 0
      %v3903 = vsel %vm681, %v3859, 0
      %v3906 = vsel %vm681, %v3860, 0
      %v3909 = vsel %vm681, %v3861, 0
      %v3912 = vsel %vm681, %v3862, 0
      %v3915 = vsel %vm681, %v3863, 0
      %v3918 = vsel %vm681, %v3864, 0
      %v3921 = vsel %vm681, %v3865, 0
      %v3924 = vsel %vm681, %v3866, 0
      %v3927 = vsel %vm681, %v3867, 0
      %v3930 = vsel %vm681, %v3868, 0
      %v3933 = vsel %vm681, %v3869, 0
      %v3936 = vsel %vm681, %v3870, 0
      %v3939 = vsel %vm681, %v3871, 0
      %v3942 = vsel %vm681, %v3872, 0
      %v3945 = vsel %vm681, %v3873, 0
      %v3948 = vsel %vm681, %v3874, 0
      %v3951 = vsel %vm681, %v3875, 0
      %v3954 = vsel %vm681, %v3876, 0
      %v3957 = vsel %vm681, %v3877, 0
      %v3960 = vsel %vm681, %v3878, 0
      %v3963 = vsel %vm681, %v3879, 0
      %v3966 = vsel %vm681, %v3880, 0
      %v3969 = vsel %vm681, %v3881, 0
      %v3972 = vsel %vm681, %v3882, 0
      %v3975 = vsel %vm681, %v3883, 0
      %v3978 = vsel %vm681, %v3884, 0
      %v3981 = vsel %vm681, %v3885, 0
      %v3984 = vsel %vm681, %v3886, 0
      %v3987 = vsel %vm681, %v3887, 0
      %v3990 = vsel %vm681, %v3888, 0
      %v3993 = vsel %vm681, %v3889, 0
      %3995 = vmatprep.subr.mxu0 0.0
      %3996 = vmatpush1.msra.mxu0 0.0
      %3997 = vmatprep.subr.mxu0 0.0
      %3998 = vmatpush1.msra.mxu0 0.0
      %3999 = vmatprep.subr.mxu0 0.0
      %4000 = vmatpush1.msra.mxu0 0.0
      %4001 = vmatprep.subr.mxu0 0.0
      %4002 = vmatpush1.msra.mxu0 0.0
      %4003 = vmatprep.subr.mxu0 0.0
      %4004 = vmatpush1.msra.mxu0 0.0
      %4005 = vmatprep.subr.mxu0 0.0
      %4006 = vmatpush1.msra.mxu0 0.0
      %4007 = vmatprep.subr.mxu0 0.0
      %4008 = vmatpush1.msra.mxu0 0.0
      %4009 = vmatprep.subr.mxu0 0.0
      %4010 = vmatpush1.msra.mxu0 0.0
      %4011 = vmatprep.subr.mxu0 0.0
      %4012 = vmatpush1.msra.mxu0 %v3898
      %4013 = vmatprep.subr.mxu0 0.0
      %4014 = vmatpush1.msra.mxu0 %v3897
      %4015 = vmatprep.subr.mxu0 0.0
      %4016 = vmatpush1.msra.mxu0 %v3896
      %4017 = vmatprep.subr.mxu0 0.0
      %4018 = vmatpush1.msra.mxu0 %v3895
      %4019 = vmatprep.subr.mxu0 0.0
      %4020 = vmatpush1.msra.mxu0 %v3894
      %4021 = vmatprep.subr.mxu0 0.0
      %4022 = vmatpush1.msra.mxu0 %v3893
      %4023 = vmatprep.subr.mxu0 0.0
      %4024 = vmatpush1.msra.mxu0 %v3892
      %4025 = vmatprep.subr.mxu0 0.0
      %4026 = vmatpush1.msra.mxu0 %v3891
      %4027 = vmatprep.subr.mxu0 0.0
      %4028 = vmatpush2.msra.mxu0 0.0
      %4029 = vmatprep.subr.mxu0 0.0
      %4030 = vmatpush2.msra.mxu0 0.0
      %4031 = vmatprep.subr.mxu0 0.0
      %4032 = vmatpush2.msra.mxu0 0.0
      %4033 = vmatprep.subr.mxu0 0.0
      %4034 = vmatpush2.msra.mxu0 0.0
      %4035 = vmatprep.subr.mxu0 0.0
      %4036 = vmatpush2.msra.mxu0 0.0
      %4037 = vmatprep.subr.mxu0 0.0
      %4038 = vmatpush2.msra.mxu0 0.0
      %4039 = vmatprep.subr.mxu0 0.0
      %4040 = vmatpush2.msra.mxu0 0.0
      %4041 = vmatprep.subr.mxu0 0.0
      %4042 = vmatpush2.msra.mxu0 0.0
      %4043 = vmatprep.subr.mxu0 0.0
      %4044 = vmatpush2.msra.mxu0 0.0
      %4045 = vmatprep.subr.mxu0 0.0
      %4046 = vmatpush2.msra.mxu0 0.0
      %4047 = vmatprep.subr.mxu0 0.0
      %4048 = vmatpush2.msra.mxu0 0.0
      %4049 = vmatprep.subr.mxu0 0.0
      %4050 = vmatpush2.msra.mxu0 0.0
      %4051 = vmatprep.subr.mxu0 0.0
      %4052 = vmatpush2.msra.mxu0 0.0
      %4053 = vmatprep.subr.mxu0 0.0
      %4054 = vmatpush2.msra.mxu0 0.0
      %4055 = vmatprep.subr.mxu0 0.0
      %4056 = vmatpush2.msra.mxu0 0.0
      %4057 = vmatprep.subr.mxu0 0.0
      %4058 = vmatpush2.msra.mxu0 0.0
      %4059 = vmatprep.mubr.f32.mxu0 0.0
      %4060 = vmatmul.mubr.f32.gmra.mxu0 %v3900
      %v4061 = vpop.f32.mrf.mxu0
      %v4062 = vadd.f32 0.0, %v4061
      %v4063 = vpop.f32.mrf.mxu0
      %4064 = vmatprep.mubr.f32.mxu0 0.0
      %4065 = vmatmul.mubr.f32.gmra.mxu0 %v3903
      %v4066 = vpop.f32.mrf.mxu0
      %v4067 = vadd.f32 0.0, %v4066
      %v4068 = vpop.f32.mrf.mxu0
      %4069 = vmatprep.mubr.f32.mxu0 0.0
      %4070 = vmatmul.mubr.f32.gmra.mxu0 %v3906
      %v4071 = vpop.f32.mrf.mxu0
      %v4072 = vadd.f32 0.0, %v4071
      %v4073 = vpop.f32.mrf.mxu0
      %4074 = vmatprep.mubr.f32.mxu0 0.0
      %4075 = vmatmul.mubr.f32.gmra.mxu0 %v3909
      %v4076 = vpop.f32.mrf.mxu0
      %v4077 = vadd.f32 0.0, %v4076
      %v4078 = vpop.f32.mrf.mxu0
      %4079 = vmatprep.mubr.f32.mxu0 0.0
      %4080 = vmatmul.mubr.f32.gmra.mxu0 %v3912
      %v4081 = vpop.f32.mrf.mxu0
      %v4082 = vadd.f32 0.0, %v4081
      %v4083 = vpop.f32.mrf.mxu0
      %4084 = vmatprep.mubr.f32.mxu0 0.0
      %4085 = vmatmul.mubr.f32.gmra.mxu0 %v3915
      %v4086 = vpop.f32.mrf.mxu0
      %v4087 = vadd.f32 0.0, %v4086
      %v4088 = vpop.f32.mrf.mxu0
      %4089 = vmatprep.mubr.f32.mxu0 0.0
      %4090 = vmatmul.mubr.f32.gmra.mxu0 %v3918
      %v4091 = vpop.f32.mrf.mxu0
      %v4092 = vadd.f32 0.0, %v4091
      %v4093 = vpop.f32.mrf.mxu0
      %4094 = vmatprep.mubr.f32.mxu0 0.0
      %4095 = vmatmul.mubr.f32.gmra.mxu0 %v3921
      %v4096 = vpop.f32.mrf.mxu0
      %v4097 = vadd.f32 0.0, %v4096
      %v4098 = vpop.f32.mrf.mxu0
      %4099 = vmatprep.mubr.f32.mxu0 0.0
      %4100 = vmatmul.mubr.f32.gmra.mxu0 %v3924
      %v4101 = vpop.f32.mrf.mxu0
      %v4102 = vadd.f32 0.0, %v4101
      %v4103 = vpop.f32.mrf.mxu0
      %4104 = vmatprep.mubr.f32.mxu0 0.0
      %4105 = vmatmul.mubr.f32.gmra.mxu0 %v3927
      %v4106 = vpop.f32.mrf.mxu0
      %v4107 = vadd.f32 0.0, %v4106
      %v4108 = vpop.f32.mrf.mxu0
      %4109 = vmatprep.mubr.f32.mxu0 0.0
      %4110 = vmatmul.mubr.f32.gmra.mxu0 %v3930
      %v4111 = vpop.f32.mrf.mxu0
      %v4112 = vadd.f32 0.0, %v4111
      %v4113 = vpop.f32.mrf.mxu0
      %4114 = vmatprep.mubr.f32.mxu0 0.0
      %4115 = vmatmul.mubr.f32.gmra.mxu0 %v3933
      %v4116 = vpop.f32.mrf.mxu0
      %v4117 = vadd.f32 0.0, %v4116
      %v4118 = vpop.f32.mrf.mxu0
      %4119 = vmatprep.mubr.f32.mxu0 0.0
      %4120 = vmatmul.mubr.f32.gmra.mxu0 %v3936
      %v4121 = vpop.f32.mrf.mxu0
      %v4122 = vadd.f32 0.0, %v4121
      %v4123 = vpop.f32.mrf.mxu0
      %4124 = vmatprep.mubr.f32.mxu0 0.0
      %4125 = vmatmul.mubr.f32.gmra.mxu0 %v3939
      %v4126 = vpop.f32.mrf.mxu0
      %v4127 = vadd.f32 0.0, %v4126
      %v4128 = vpop.f32.mrf.mxu0
      %4129 = vmatprep.mubr.f32.mxu0 0.0
      %4130 = vmatmul.mubr.f32.gmra.mxu0 %v3942
      %v4131 = vpop.f32.mrf.mxu0
      %v4132 = vadd.f32 0.0, %v4131
      %v4133 = vpop.f32.mrf.mxu0
      %4134 = vmatprep.mubr.f32.mxu0 0.0
      %4135 = vmatmul.mubr.f32.gmra.mxu0 %v3945
      %v4136 = vpop.f32.mrf.mxu0
      %v4137 = vadd.f32 0.0, %v4136
      %v4138 = vpop.f32.mrf.mxu0
      %4139 = vmatprep.mubr.f32.mxu0 0.0
      %4140 = vmatmul.mubr.f32.gmra.mxu0 %v3948
      %v4141 = vpop.f32.mrf.mxu0
      %v4142 = vadd.f32 0.0, %v4141
      %v4143 = vpop.f32.mrf.mxu0
      %4144 = vmatprep.mubr.f32.mxu0 0.0
      %4145 = vmatmul.mubr.f32.gmra.mxu0 %v3951
      %v4146 = vpop.f32.mrf.mxu0
      %v4147 = vadd.f32 0.0, %v4146
      %v4148 = vpop.f32.mrf.mxu0
      %4149 = vmatprep.mubr.f32.mxu0 0.0
      %4150 = vmatmul.mubr.f32.gmra.mxu0 %v3954
      %v4151 = vpop.f32.mrf.mxu0
      %v4152 = vadd.f32 0.0, %v4151
      %v4153 = vpop.f32.mrf.mxu0
      %4154 = vmatprep.mubr.f32.mxu0 0.0
      %4155 = vmatmul.mubr.f32.gmra.mxu0 %v3957
      %v4156 = vpop.f32.mrf.mxu0
      %v4157 = vadd.f32 0.0, %v4156
      %v4158 = vpop.f32.mrf.mxu0
      %4159 = vmatprep.mubr.f32.mxu0 0.0
      %4160 = vmatmul.mubr.f32.gmra.mxu0 %v3960
      %v4161 = vpop.f32.mrf.mxu0
      %v4162 = vadd.f32 0.0, %v4161
      %v4163 = vpop.f32.mrf.mxu0
      %4164 = vmatprep.mubr.f32.mxu0 0.0
      %4165 = vmatmul.mubr.f32.gmra.mxu0 %v3963
      %v4166 = vpop.f32.mrf.mxu0
      %v4167 = vadd.f32 0.0, %v4166
      %v4168 = vpop.f32.mrf.mxu0
      %4169 = vmatprep.mubr.f32.mxu0 0.0
      %4170 = vmatmul.mubr.f32.gmra.mxu0 %v3966
      %v4171 = vpop.f32.mrf.mxu0
      %v4172 = vadd.f32 0.0, %v4171
      %v4173 = vpop.f32.mrf.mxu0
      %4174 = vmatprep.mubr.f32.mxu0 0.0
      %4175 = vmatmul.mubr.f32.gmra.mxu0 %v3969
      %v4176 = vpop.f32.mrf.mxu0
      %v4177 = vadd.f32 0.0, %v4176
      %v4178 = vpop.f32.mrf.mxu0
      %4179 = vmatprep.mubr.f32.mxu0 0.0
      %4180 = vmatmul.mubr.f32.gmra.mxu0 %v3972
      %v4181 = vpop.f32.mrf.mxu0
      %v4182 = vadd.f32 0.0, %v4181
      %v4183 = vpop.f32.mrf.mxu0
      %4184 = vmatprep.mubr.f32.mxu0 0.0
      %4185 = vmatmul.mubr.f32.gmra.mxu0 %v3975
      %v4186 = vpop.f32.mrf.mxu0
      %v4187 = vadd.f32 0.0, %v4186
      %v4188 = vpop.f32.mrf.mxu0
      %4189 = vmatprep.mubr.f32.mxu0 0.0
      %4190 = vmatmul.mubr.f32.gmra.mxu0 %v3978
      %v4191 = vpop.f32.mrf.mxu0
      %v4192 = vadd.f32 0.0, %v4191
      %v4193 = vpop.f32.mrf.mxu0
      %4194 = vmatprep.mubr.f32.mxu0 0.0
      %4195 = vmatmul.mubr.f32.gmra.mxu0 %v3981
      %v4196 = vpop.f32.mrf.mxu0
      %v4197 = vadd.f32 0.0, %v4196
      %v4198 = vpop.f32.mrf.mxu0
      %4199 = vmatprep.mubr.f32.mxu0 0.0
      %4200 = vmatmul.mubr.f32.gmra.mxu0 %v3984
      %v4201 = vpop.f32.mrf.mxu0
      %v4202 = vadd.f32 0.0, %v4201
      %v4203 = vpop.f32.mrf.mxu0
      %4204 = vmatprep.mubr.f32.mxu0 0.0
      %4205 = vmatmul.mubr.f32.gmra.mxu0 %v3987
      %v4206 = vpop.f32.mrf.mxu0
      %v4207 = vadd.f32 0.0, %v4206
      %v4208 = vpop.f32.mrf.mxu0
      %4209 = vmatprep.mubr.f32.mxu0 0.0
      %4210 = vmatmul.mubr.f32.gmra.mxu0 %v3990
      %v4211 = vpop.f32.mrf.mxu0
      %v4212 = vadd.f32 0.0, %v4211
      %v4213 = vpop.f32.mrf.mxu0
      %4214 = vmatprep.mubr.f32.mxu0 0.0
      %4215 = vmatmul.mubr.f32.gmra.mxu0 %v3993
      %v4216 = vpop.f32.mrf.mxu0
      %v4217 = vadd.f32 0.0, %v4216
      %v4218 = vpop.f32.mrf.mxu0
      %4219 = vdwg.mxu0
      %v4220 = vadd.f32 %v3826, %v4062
      %v4221 = vadd.f32 %v3827, %v4067
      %v4222 = vadd.f32 %v3828, %v4072
      %v4223 = vadd.f32 %v3829, %v4077
      %v4224 = vadd.f32 %v3830, %v4082
      %v4225 = vadd.f32 %v3831, %v4087
      %v4226 = vadd.f32 %v3832, %v4092
      %v4227 = vadd.f32 %v3833, %v4097
      %v4228 = vadd.f32 %v3834, %v4102
      %v4229 = vadd.f32 %v3835, %v4107
      %v4230 = vadd.f32 %v3836, %v4112
      %v4231 = vadd.f32 %v3837, %v4117
      %v4232 = vadd.f32 %v3838, %v4122
      %v4233 = vadd.f32 %v3839, %v4127
      %v4234 = vadd.f32 %v3840, %v4132
      %v4235 = vadd.f32 %v3841, %v4137
      %v4236 = vadd.f32 %v3842, %v4142
      %v4237 = vadd.f32 %v3843, %v4147
      %v4238 = vadd.f32 %v3844, %v4152
      %v4239 = vadd.f32 %v3845, %v4157
      %v4240 = vadd.f32 %v3846, %v4162
      %v4241 = vadd.f32 %v3847, %v4167
      %v4242 = vadd.f32 %v3848, %v4172
      %v4243 = vadd.f32 %v3849, %v4177
      %v4244 = vadd.f32 %v3850, %v4182
      %v4245 = vadd.f32 %v3851, %v4187
      %v4246 = vadd.f32 %v3852, %v4192
      %v4247 = vadd.f32 %v3853, %v4197
      %v4248 = vadd.f32 %v3854, %v4202
      %v4249 = vadd.f32 %v3855, %v4207
      %v4250 = vadd.f32 %v3856, %v4212
      %v4251 = vadd.f32 %v3857, %v4217
      %v4252 = vld [vmem:[%s4] sm:$0x1]
      %v4254 = vlaneseq
      %v4255 = vshrl.u32 %v4254, 7
      %v4256 = vsub.s32 0, %v4255
      %v4257 = vrot.slane %v4252, %v4256
      %v4259 = vadd.f32 %v4220, %v4257
      %v4260 = vadd.f32 %v4221, %v4257
      %v4261 = vadd.f32 %v4222, %v4257
      %v4262 = vadd.f32 %v4223, %v4257
      %v4263 = vadd.f32 %v4224, %v4257
      %v4264 = vadd.f32 %v4225, %v4257
      %v4265 = vadd.f32 %v4226, %v4257
      %v4266 = vadd.f32 %v4227, %v4257
      %v4267 = vadd.f32 %v4228, %v4257
      %v4268 = vadd.f32 %v4229, %v4257
      %v4269 = vadd.f32 %v4230, %v4257
      %v4270 = vadd.f32 %v4231, %v4257
      %v4271 = vadd.f32 %v4232, %v4257
      %v4272 = vadd.f32 %v4233, %v4257
      %v4273 = vadd.f32 %v4234, %v4257
      %v4274 = vadd.f32 %v4235, %v4257
      %v4275 = vadd.f32 %v4236, %v4257
      %v4276 = vadd.f32 %v4237, %v4257
      %v4277 = vadd.f32 %v4238, %v4257
      %v4278 = vadd.f32 %v4239, %v4257
      %v4279 = vadd.f32 %v4240, %v4257
      %v4280 = vadd.f32 %v4241, %v4257
      %v4281 = vadd.f32 %v4242, %v4257
      %v4282 = vadd.f32 %v4243, %v4257
      %v4283 = vadd.f32 %v4244, %v4257
      %v4284 = vadd.f32 %v4245, %v4257
      %v4285 = vadd.f32 %v4246, %v4257
      %v4286 = vadd.f32 %v4247, %v4257
      %v4287 = vadd.f32 %v4248, %v4257
      %v4288 = vadd.f32 %v4249, %v4257
      %v4289 = vadd.f32 %v4250, %v4257
      %v4290 = vadd.f32 %v4251, %v4257
      %v4291 = vmax.f32 %v4259, 0.0
      %v4292 = vmax.f32 %v4260, 0.0
      %v4293 = vmax.f32 %v4261, 0.0
      %v4294 = vmax.f32 %v4262, 0.0
      %v4295 = vmax.f32 %v4263, 0.0
      %v4296 = vmax.f32 %v4264, 0.0
      %v4297 = vmax.f32 %v4265, 0.0
      %v4298 = vmax.f32 %v4266, 0.0
      %v4299 = vmax.f32 %v4267, 0.0
      %v4300 = vmax.f32 %v4268, 0.0
      %v4301 = vmax.f32 %v4269, 0.0
      %v4302 = vmax.f32 %v4270, 0.0
      %v4303 = vmax.f32 %v4271, 0.0
      %v4304 = vmax.f32 %v4272, 0.0
      %v4305 = vmax.f32 %v4273, 0.0
      %v4306 = vmax.f32 %v4274, 0.0
      %v4307 = vmax.f32 %v4275, 0.0
      %v4308 = vmax.f32 %v4276, 0.0
      %v4309 = vmax.f32 %v4277, 0.0
      %v4310 = vmax.f32 %v4278, 0.0
      %v4311 = vmax.f32 %v4279, 0.0
      %v4312 = vmax.f32 %v4280, 0.0
      %v4313 = vmax.f32 %v4281, 0.0
      %v4314 = vmax.f32 %v4282, 0.0
      %v4315 = vmax.f32 %v4283, 0.0
      %v4316 = vmax.f32 %v4284, 0.0
      %v4317 = vmax.f32 %v4285, 0.0
      %v4318 = vmax.f32 %v4286, 0.0
      %v4319 = vmax.f32 %v4287, 0.0
      %v4320 = vmax.f32 %v4288, 0.0
      %v4321 = vmax.f32 %v4289, 0.0
      %v4322 = vmax.f32 %v4290, 0.0
      %v4323 = vld [vmem:[%s5] sm:$0x1]
      %v4324 = vld [vmem:[#allocation3] sm:$0x1]
      %4326 = vset.pattern.permute.xlu0 0
      %4327 = vperm.xlu0 %4326, %v4324
      %v4328 = vpop.permute.xlu0 %4327
      %v4330 = vlaneseq
      %v4331 = vshrl.u32 %v4330, 7
      %v4332 = vsub.s32 0, %v4331
      %v4333 = vrot.slane %v4328, %v4332
      %v4335 = vsel %vm681, %v4323, 0
      %v4338 = vsel %vm681, %v4291, 0
      %v4341 = vsel %vm681, %v4292, 0
      %v4344 = vsel %vm681, %v4293, 0
      %v4347 = vsel %vm681, %v4294, 0
      %v4350 = vsel %vm681, %v4295, 0
      %v4353 = vsel %vm681, %v4296, 0
      %v4356 = vsel %vm681, %v4297, 0
      %v4359 = vsel %vm681, %v4298, 0
      %v4362 = vsel %vm681, %v4299, 0
      %v4365 = vsel %vm681, %v4300, 0
      %v4368 = vsel %vm681, %v4301, 0
      %v4371 = vsel %vm681, %v4302, 0
      %v4374 = vsel %vm681, %v4303, 0
      %v4377 = vsel %vm681, %v4304, 0
      %v4380 = vsel %vm681, %v4305, 0
      %v4383 = vsel %vm681, %v4306, 0
      %v4386 = vsel %vm681, %v4307, 0
      %v4389 = vsel %vm681, %v4308, 0
      %v4392 = vsel %vm681, %v4309, 0
      %v4395 = vsel %vm681, %v4310, 0
      %v4398 = vsel %vm681, %v4311, 0
      %v4401 = vsel %vm681, %v4312, 0
      %v4404 = vsel %vm681, %v4313, 0
      %v4407 = vsel %vm681, %v4314, 0
      %v4410 = vsel %vm681, %v4315, 0
      %v4413 = vsel %vm681, %v4316, 0
      %v4416 = vsel %vm681, %v4317, 0
      %v4419 = vsel %vm681, %v4318, 0
      %v4422 = vsel %vm681, %v4319, 0
      %v4425 = vsel %vm681, %v4320, 0
      %v4428 = vsel %vm681, %v4321, 0
      %v4431 = vsel %vm681, %v4322, 0
      %4433 = vmatprep.subr.mxu0 0.0
      %4434 = vmatpush1.xpose.msra.mxu0 %v4383
      %4435 = vmatprep.subr.mxu0 0.0
      %4436 = vmatpush1.xpose.msra.mxu0 %v4380
      %4437 = vmatprep.subr.mxu0 0.0
      %4438 = vmatpush1.xpose.msra.mxu0 %v4377
      %4439 = vmatprep.subr.mxu0 0.0
      %4440 = vmatpush1.xpose.msra.mxu0 %v4374
      %4441 = vmatprep.subr.mxu0 0.0
      %4442 = vmatpush1.xpose.msra.mxu0 %v4371
      %4443 = vmatprep.subr.mxu0 0.0
      %4444 = vmatpush1.xpose.msra.mxu0 %v4368
      %4445 = vmatprep.subr.mxu0 0.0
      %4446 = vmatpush1.xpose.msra.mxu0 %v4365
      %4447 = vmatprep.subr.mxu0 0.0
      %4448 = vmatpush1.xpose.msra.mxu0 %v4362
      %4449 = vmatprep.subr.mxu0 0.0
      %4450 = vmatpush1.xpose.msra.mxu0 %v4359
      %4451 = vmatprep.subr.mxu0 0.0
      %4452 = vmatpush1.xpose.msra.mxu0 %v4356
      %4453 = vmatprep.subr.mxu0 0.0
      %4454 = vmatpush1.xpose.msra.mxu0 %v4353
      %4455 = vmatprep.subr.mxu0 0.0
      %4456 = vmatpush1.xpose.msra.mxu0 %v4350
      %4457 = vmatprep.subr.mxu0 0.0
      %4458 = vmatpush1.xpose.msra.mxu0 %v4347
      %4459 = vmatprep.subr.mxu0 0.0
      %4460 = vmatpush1.xpose.msra.mxu0 %v4344
      %4461 = vmatprep.subr.mxu0 0.0
      %4462 = vmatpush1.xpose.msra.mxu0 %v4341
      %4463 = vmatprep.subr.mxu0 0.0
      %4464 = vmatpush1.xpose.msra.mxu0 %v4338
      %4465 = vmatprep.subr.mxu0 0.0
      %4466 = vmatpush2.xpose.msra.mxu0 %v4431
      %4467 = vmatprep.subr.mxu0 0.0
      %4468 = vmatpush2.xpose.msra.mxu0 %v4428
      %4469 = vmatprep.subr.mxu0 0.0
      %4470 = vmatpush2.xpose.msra.mxu0 %v4425
      %4471 = vmatprep.subr.mxu0 0.0
      %4472 = vmatpush2.xpose.msra.mxu0 %v4422
      %4473 = vmatprep.subr.mxu0 0.0
      %4474 = vmatpush2.xpose.msra.mxu0 %v4419
      %4475 = vmatprep.subr.mxu0 0.0
      %4476 = vmatpush2.xpose.msra.mxu0 %v4416
      %4477 = vmatprep.subr.mxu0 0.0
      %4478 = vmatpush2.xpose.msra.mxu0 %v4413
      %4479 = vmatprep.subr.mxu0 0.0
      %4480 = vmatpush2.xpose.msra.mxu0 %v4410
      %4481 = vmatprep.subr.mxu0 0.0
      %4482 = vmatpush2.xpose.msra.mxu0 %v4407
      %4483 = vmatprep.subr.mxu0 0.0
      %4484 = vmatpush2.xpose.msra.mxu0 %v4404
      %4485 = vmatprep.subr.mxu0 0.0
      %4486 = vmatpush2.xpose.msra.mxu0 %v4401
      %4487 = vmatprep.subr.mxu0 0.0
      %4488 = vmatpush2.xpose.msra.mxu0 %v4398
      %4489 = vmatprep.subr.mxu0 0.0
      %4490 = vmatpush2.xpose.msra.mxu0 %v4395
      %4491 = vmatprep.subr.mxu0 0.0
      %4492 = vmatpush2.xpose.msra.mxu0 %v4392
      %4493 = vmatprep.subr.mxu0 0.0
      %4494 = vmatpush2.xpose.msra.mxu0 %v4389
      %4495 = vmatprep.subr.mxu0 0.0
      %4496 = vmatpush2.xpose.msra.mxu0 %v4386
      %4497 = vmatprep.mubr.f32.mxu0 0.0
      %4498 = vmatmul.mubr.f32.gmra.mxu0 %v4335
      %v4499 = vpop.f32.mrf.mxu0
      %v4500 = vadd.f32 %v4333, %v4499
      %v4501 = vpop.f32.mrf.mxu0
      %v4502 = vadd.f32 %v4333, %v4501
      %4503 = vdwg.mxu0
      %v4506 = vcombine.low %v4500, %v4502
      %v4508 = vunpack.c.l.s4 1966171168
      %v4509 = vunpack.c.0.s8 %v4508
      %v4510 = vlaneseq
      %v4511 = vshrl.u32 %v4510, 7
      %v4512 = vsub.s32 %v4509, %v4511
      %v4513 = vrot.slane %v4506, %v4512
      %v4515 = vunpack.c.l.s4 1966171168
      %v4516 = vunpack.c.0.s8 %v4515
      %v4517 = vlaneseq
      %v4518 = vshrl.u32 %v4517, 7
      %v4519 = vsub.s32 %v4516, %v4518
      %v4520 = vrot.slane %v4513, %v4519
      %v4522 = vlaneseq
      %vm4523 = vcmp.ge.s32.totalorder %v4522, 0
      %vm4524 = vcmp.lt.s32.totalorder %v4522, 256
      %vm4525 = vmand %vm4523, %vm4524
      %4526 = vst.msk [vmem:[%s278] sm:$0x3] %vm4525, %v4520
      %p4527 = scmp.lt.s32.totalorder %s20, 1
      %s4528 = scalar_select %p4527, %s20, 1
      %s4529 = smul.addr %s4528, 2
      %s4530 = scalar_lea.vmem %s7, %s4529
      // Predicated region
      $region49: #{ds_layer_pallas.1} parent=47 // pred_check
        %p4531 = pneg %p190
      $region50: #{ds_layer_pallas.1} parent=47 // pred_check_branch
        %4533 = sbr.rel (%p4531) target = $region52
      $region51: #{ds_layer_pallas.1} parent=47 // pred_region
        _
      $region52: #{ds_layer_pallas.1} parent=47 // pred_fallthru
        _
    $region48: #{ds_layer_pallas.1} parent=5 // pred_fallthru
      _
    %p4534 = scmp.le.s32.totalorder 2, %s15
    // Predicated region
    $region53: #{ds_layer_pallas.1} parent=5 // pred_check
      %p4535 = pneg %p4534
    $region54: #{ds_layer_pallas.1} parent=5 // pred_check_branch
      %4537 = sbr.rel (%p4535) target = $region56
    $region55: #{ds_layer_pallas.1} parent=5 // pred_region
      %s4538 = ssub.s32 %s15, 2
      // Predicated region
      $region57: #{ds_layer_pallas.1} parent=55 // pred_check
        %p4539 = pneg %p196
      $region58: #{ds_layer_pallas.1} parent=55 // pred_check_branch
        %4541 = sbr.rel (%p4539) target = $region60
      $region59: #{ds_layer_pallas.1} parent=55 // pred_region
        %p4542 = scmp.lt.s32.totalorder %s21, 1
        %s4543 = scalar_select %p4542, %s21, 1
        %s4544 = smul.addr %s4543, 2
        %s4545 = scalar_lea.vmem %s7, %s4544
      $region60: #{ds_layer_pallas.1} parent=55 // pred_fallthru
        _
    $region56: #{ds_layer_pallas.1} parent=5 // pred_fallthru
      _
  $region6: #{ds_layer_pallas.1} parent=0 // loop_footer
    %s19 = sadd.s32 1, %s15
  $region7: #{ds_layer_pallas.1} parent=0 // loop_footer_branch
    %14 = sbr.rel target = $region3
  $region8: #{ds_layer_pallas.1} parent=0 // loop_exit
    _

</llo_original>
